<compile_context>
chip_gen: v7x
topology: tpu7x:2x2x1
jax: 0.10.0
libtpu: 0.0.40
codegen_flags: <defaults>
</compile_context>

<pallas_src>
import functools

import jax
import jax.numpy as jnp
from jax.experimental import pallas as pl
from jax.experimental.pallas import tpu as pltpu


def _round_up(x, m):
    return ((x + m - 1) // m) * m


# ----------------------------------------------------------------------------
# Pallas kernel 1: fused reduce1(fea_c) / reduce2(fea_p) = PReLU + 1x1 conv.
# Both weight sets are processed in the same grid step via a block-diagonal
# weight, giving a single (2*Cout, tile_p) dense store.
# ----------------------------------------------------------------------------
def _fused_conv1x1_prelu_kernel(slopes_ref, xc_ref, xp_ref, w_ref, b_ref, o_ref):
    a1 = slopes_ref[0]                         # PReLU slopes (scalars from SMEM)
    a2 = slopes_ref[1]
    xc = xc_ref[0].astype(jnp.float32)         # (Cin, TP)  bf16 storage, f32 math
    xp = xp_ref[0].astype(jnp.float32)
    xc = jnp.where(xc >= 0, xc, a1 * xc)       # PReLU before conv (Conv2dBlock order)
    xp = jnp.where(xp >= 0, xp, a2 * xp)
    x = jnp.concatenate([xc, xp], axis=0)      # (2*Cin, TP), 8-aligned sublane concat
    y = jnp.dot(w_ref[...], x, preferred_element_type=jnp.float32)  # (2*Cout, TP)
    o_ref[0] = (y + b_ref[...]).astype(o_ref.dtype)   # dense 8-sublane store


def fused_conv1x1_prelu_pair(xc, xp, w1, b1, w2, b2, a1, a2, tile_p=2048):
    """PReLU + 1x1 conv for (xc, w1/a1) and (xp, w2/a2), fused in one call.

    xc, xp: (N, Cin, h, w).  Returns (N, 2*Cout, h, w):
      channels [:Cout]  = conv1(prelu(xc, a1)),  [Cout:] = conv2(prelu(xp, a2)).
    """
    N, Cin, h, w = xc.shape
    Cout = w1.shape[0]
    hw = h * w
    hw128 = _round_up(hw, 128)
    tp = min(_round_up(tile_p, 128), hw128)
    if hw128 // tp < 2 and hw128 >= 256:       # keep >=2 p-steps per sample
        tp = _round_up(hw128 // 2, 128)
    hwp = _round_up(hw, tp)

    def prep(x):
        x = x.reshape(N, Cin, hw)              # contiguous, no transpose needed
        x = jnp.pad(x, ((0, 0), (0, 0), (0, hwp - hw)))
        return x.astype(jnp.bfloat16)          # halves the dominant HBM read
    xcp, xpp = prep(xc), prep(xp)

    z = jnp.zeros((Cout, Cin), jnp.float32)
    w_bd = jnp.concatenate(                    # block-diagonal (2*Cout, 2*Cin)
        [jnp.concatenate([w1, z], axis=1),
         jnp.concatenate([z, w2], axis=1)], axis=0).astype(jnp.float32)
    bias = jnp.concatenate([b1, b2]).reshape(2 * Cout, 1).astype(jnp.float32)
    slopes = jnp.stack([a1, a2]).astype(jnp.float32)               # (2,) -> SMEM

    out = pl.pallas_call(
        _fused_conv1x1_prelu_kernel,
        out_shape=jax.ShapeDtypeStruct((N, 2 * Cout, hwp), jnp.float32),
        grid=(N, hwp // tp),
        in_specs=[
            pl.BlockSpec(memory_space=pltpu.MemorySpace.SMEM),        # slopes
            pl.BlockSpec((1, Cin, tp), lambda n, p: (n, 0, p)),       # xc (bf16)
            pl.BlockSpec((1, Cin, tp), lambda n, p: (n, 0, p)),       # xp (bf16)
            pl.BlockSpec((2 * Cout, 2 * Cin), lambda n, p: (0, 0)),   # block-diag W
            pl.BlockSpec((2 * Cout, 1), lambda n, p: (0, 0)),         # bias
        ],
        out_specs=pl.BlockSpec((1, 2 * Cout, tp), lambda n, p: (n, 0, p)),
        compiler_params=pltpu.CompilerParams(
            dimension_semantics=("parallel", "parallel")),
    )(slopes, xcp, xpp, w_bd, bias)
    return out[:, :, :hw].reshape(N, 2 * Cout, h, w)


# ----------------------------------------------------------------------------
# Pallas kernel 2: batched, transposed correlation
#     S^T = K^T Q^T  (Lk, Lq-tile),   softmax over the cloth axis (Lk, axis 1),
#     O^T = V^T P    (2, Lq-tile)
# The Lq axis is tiled by the grid (exact: softmax is over Lk), bounding the
# f32 (lb, Lk, tile_m) temps regardless of the mask size L.
# ----------------------------------------------------------------------------
def _correlation_kernel(k_ref, q_ref, v_ref, o_ref, *, approx_recip):
    k = k_ref[...].astype(jnp.float32)          # (lb, C, Lk)  dense bf16 block
    q = q_ref[...].astype(jnp.float32)          # (lb, C, TM)
    v = v_ref[...]                              # (lb, 2, Lk)  f32
    kt = jnp.swapaxes(k, 1, 2)                  # tiny in-kernel (C, Lk) transpose
    # S^T[b, l, m] = sum_c K[b, c, l] * Q[b, c, m]
    s = jnp.einsum('blc,bcm->blm', kt, q, preferred_element_type=jnp.float32)
    m = jnp.max(s, axis=1, keepdims=True)       # softmax over Lk (axis 1)
    e = jnp.exp(s - m)
    d = jnp.sum(e, axis=1, keepdims=True)
    if approx_recip:
        p = e * pl.reciprocal(d, approx=True)   # EUP slot (optional, approximate)
    else:
        p = e / d                               # exact, matches the reference
    # O^T = V^T @ P -> (lb, 2, TM): lane-dense along the Lq tile.
    o = jnp.einsum('bvl,blm->bvm', v, p, preferred_element_type=jnp.float32)
    o_ref[...] = o.astype(o_ref.dtype)


def correlation_flow_t(kt, qt, vt, landmarks_per_step=8, tile_m=256,
                       approx_recip=False,
                       temp_budget_bytes=18 * 1024 * 1024,
                       vmem_limit_bytes=40 * 1024 * 1024):
    """kt: (M, C, Lk), qt: (M, C, Lq), vt: (M, 2, Lk) -> (M, 2, Lq); M = N*32."""
    M, C, L = qt.shape
    Lk = kt.shape[2]
    # lane-dense Lq tile (multiple of 128)
    tm = max(128, min(_round_up(tile_m, 128), _round_up(L, 128)))
    Lqp = _round_up(L, tm)
    # batch as many landmarks per step as the f32 (lb, Lk, tm) temps allow
    lb = max(1, min(landmarks_per_step, M))
    while lb > 1 and 3 * lb * Lk * tm * 4 > temp_budget_bytes:
        lb //= 2
    Mp = _round_up(M, lb)

    # zero-padded landmarks / Lq columns produce finite values that are sliced off
    kp = jnp.pad(kt, ((0, Mp - M), (0, 0), (0, 0))).astype(jnp.bfloat16)
    qp = jnp.pad(qt, ((0, Mp - M), (0, 0), (0, Lqp - L))).astype(jnp.bfloat16)
    vp = jnp.pad(vt, ((0, Mp - M), (0, 0), (0, 0))).astype(jnp.float32)

    kernel = functools.partial(_correlation_kernel, approx_recip=approx_recip)
    out = pl.pallas_call(
        kernel,
        out_shape=jax.ShapeDtypeStruct((Mp, 2, Lqp), jnp.float32),
        # Lq tiles innermost: K / V block indices only change with the landmark
        # group, so their DMA is skipped across consecutive Lq steps.
        grid=(Mp // lb, Lqp // tm),
        in_specs=[
            pl.BlockSpec((lb, C, Lk), lambda g, t: (g, 0, 0)),   # K^T (cloth)
            pl.BlockSpec((lb, C, tm), lambda g, t: (g, 0, t)),   # Q^T (person)
            pl.BlockSpec((lb, 2, Lk), lambda g, t: (g, 0, 0)),   # V^T (locations)
        ],
        out_specs=pl.BlockSpec((lb, 2, tm), lambda g, t: (g, 0, t)),
        compiler_params=pltpu.CompilerParams(
            dimension_semantics=("parallel", "parallel"),
            vmem_limit_bytes=vmem_limit_bytes),
    )(kp, qp, vp)
    return out[:M, :, :L]


# ----------------------------------------------------------------------------
# CorrelationLayer
# ----------------------------------------------------------------------------
class CorrelationLayerPallas:
    def __init__(self, init_scale=5, key=None):
        self.init_scale = init_scale
        init_h, init_w = 192 / init_scale, 256 / init_scale
        step_h_half = [i + 1 for i in range(0, int(init_h + 1), 2)]
        self.step_h = list(reversed(step_h_half[1:])) + step_h_half
        step_w_half = [i + 1 for i in range(0, int(init_w + 1), 2)]
        self.step_w = list(reversed(step_w_half[1:])) + step_w_half
        self.mask_h, self.mask_w = len(self.step_h), len(self.step_w)

        # deterministic synthetic parameters:
        # reduce1/reduce2 = Conv2dBlock(64, 4, 1, 1, norm='none', act='prelu')
        if key is None:
            key = jax.random.PRNGKey(0)
        k1, k2, k3, k4 = jax.random.split(key, 4)
        self.w1 = jax.random.normal(k1, (4, 64), jnp.float32) * 0.1   # (Cout, Cin)
        self.b1 = jax.random.normal(k2, (4,), jnp.float32) * 0.1
        self.w2 = jax.random.normal(k3, (4, 64), jnp.float32) * 0.1
        self.b2 = jax.random.normal(k4, (4,), jnp.float32) * 0.1
        self.a1 = jnp.float32(0.25)   # PReLU default init (single shared slope)
        self.a2 = jnp.float32(0.25)

    @staticmethod
    def _upsample_nearest(x, scale):
        s = int(round(float(scale)))
        return jnp.repeat(jnp.repeat(x, s, axis=2), s, axis=3)

    def _reduce_pair(self, xc, xp):
        """Fused reduce1(xc) / reduce2(xp) in a single pallas_call."""
        Cout = self.w1.shape[0]
        y = fused_conv1x1_prelu_pair(xc, xp, self.w1, self.b1,
                                     self.w2, self.b2, self.a1, self.a2)
        return y[:, :Cout], y[:, Cout:]

    def forward(self, location, fea_c, fea_p, scale_param, H, W,
                c_landmark, p_landmark):
        init_h = W / self.init_scale        # note: swapped, as in reference
        init_w = H / self.init_scale
        N = fea_c.shape[0]
        fea_H = fea_c.shape[2]
        downsample_ratio = H / fea_H
        mh, mw = self.mask_h, self.mask_w
        L = mh * mw

        # Reduce BEFORE upsampling: PReLU + 1x1 conv commute exactly with nearest
        # upsample -> identical result, 4x fewer conv rows, 16x less upsample data.
        fea_c_red, fea_p_red = self._reduce_pair(fea_c, fea_p)            # (N,4,h,w)
        fea_cn = self._upsample_nearest(fea_c_red, downsample_ratio)      # (N,4,H,W)
        fea_pn = self._upsample_nearest(fea_p_red, downsample_ratio)
        C = fea_cn.shape[1]

        # soft box masks (small elementwise glue)
        step_h = jnp.asarray(self.step_h, jnp.float32)
        step_w = jnp.asarray(self.step_w, jnp.float32)
        sig = jax.nn.sigmoid
        adj_cw = scale_param[:, :, 0, 0]
        adj_ch = scale_param[:, :, 0, 1]
        adj_pw = scale_param[:, :, 1, 0]
        adj_ph = scale_param[:, :, 1, 1]
        c_h = (init_h * sig(adj_ch))[:, :, None]
        c_w = (init_w * sig(adj_cw))[:, :, None]
        p_h = (init_h * sig(adj_ph))[:, :, None]
        p_w = (init_w * sig(adj_pw))[:, :, None]
        src_box_h = sig((c_h - step_h[None, None, :]) * 2)   # (N, 32, mh)
        src_box_w = sig((c_w - step_w[None, None, :]) * 2)   # (N, 32, mw)
        tar_box_h = sig((p_h - step_h[None, None, :]) * 2)
        tar_box_w = sig((p_w - step_w[None, None, :]) * 2)
        src_mask = src_box_h[..., :, None] * src_box_w[..., None, :]   # (N,32,mh,mw)
        tar_mask = tar_box_h[..., :, None] * tar_box_w[..., None, :]

        ys = jnp.arange(mh)
        xs = jnp.arange(mw)

        def window(cx, cy):
            cxt = jnp.trunc(cx)
            cyt = jnp.trunc(cy)
            left = jnp.floor(cxt - mw / 2.0).astype(jnp.int32)
            right = jnp.floor(cxt + mw / 2.0).astype(jnp.int32)
            top = jnp.floor(cyt - mh / 2.0).astype(jnp.int32)
            bottom = jnp.floor(cyt + mh / 2.0).astype(jnp.int32)
            dx1 = jnp.maximum(0, -left)
            dx2 = jnp.maximum(0, right - W)
            dy1 = jnp.maximum(0, -top)
            dy2 = jnp.maximum(0, bottom - H)
            new_left = left + dx1
            new_top = top + dy1
            new_w = (right - dx2) - new_left
            new_h = (bottom - dy2) - new_top
            return new_top, new_left, new_h, new_w, dy1, dx1

        # TODO(synk): data-dependent variable-size crop/paste kept in vmapped
        # plain-JAX gather/scatter (no clean rectangular BlockSpec equivalent).
        def extract_one(feaC_b, feaP_b, loc_i, smask_i, tmask_i, c_lm, p_lm):
            valid = jnp.logical_not(((c_lm[0] == 0) & (c_lm[1] == 0)) |
                                    ((p_lm[0] == 0) & (p_lm[1] == 0)))
            c_top, c_left, c_hh, c_ww, c_dy1, c_dx1 = window(c_lm[0], c_lm[1])
            p_top, p_left, p_hh, p_ww, p_dy1, p_dx1 = window(p_lm[0], p_lm[1])

            def gather_img(img, top, left):
                yi = jnp.clip(top + ys, 0, H - 1)
                xi = jnp.clip(left + xs, 0, W - 1)
                return img[:, yi][:, :, xi]

            def gather_msk(mk, dy1, dx1):
                yi = jnp.clip(dy1 + ys, 0, mh - 1)
                xi = jnp.clip(dx1 + xs, 0, mw - 1)
                return mk[yi][:, xi]

            c_in = (ys[:, None] < c_hh) & (xs[None, :] < c_ww) & valid
            p_in = (ys[:, None] < p_hh) & (xs[None, :] < p_ww) & valid

            cloth = jnp.where(c_in[None],
                              gather_img(feaC_b, c_top, c_left) *
                              gather_msk(smask_i, c_dy1, c_dx1)[None], 0.0)
            person = jnp.where(p_in[None],
                               gather_img(feaP_b, p_top, p_left) *
                               gather_msk(tmask_i, p_dy1, p_dx1)[None], 0.0)
            locp = jnp.where(c_in[None], gather_img(loc_i, c_top, c_left), -1.0)
            coords = jnp.where(valid,
                               jnp.stack([p_top, p_top + p_hh, p_left,
                                          p_left + p_ww, p_hh, p_ww]), 0)
            return cloth, person, locp, coords

        loc_r = location.reshape(N, 32, 2, H, W)
        inner = jax.vmap(extract_one, in_axes=(None, None, 0, 0, 0, 0, 0))
        cloth_p, person_p, loc_p, coords = jax.vmap(inner)(
            fea_cn, fea_pn, loc_r, src_mask, tar_mask, c_landmark, p_landmark)
        # cloth_p/person_p: (N,32,C,mh,mw); loc_p: (N,32,2,mh,mw); coords: (N,32,6)

        # ---- hot path in Pallas: transposed, Lq-tiled, landmark-batched corr ----
        M = N * 32
        Qt = person_p.reshape(M, C, L)                     # (M, C, Lq), no transpose
        Kt = cloth_p.reshape(M, C, L)                      # (M, C, Lk), no transpose
        Vt = loc_p.reshape(M, 2, L)                        # (M, 2, Lk)
        Ot = correlation_flow_t(Kt, Qt, Vt)                # (M, 2, Lq) f32
        one_flow = Ot.reshape(N, 32, 2, mh, mw)

        # ---- scatter flow patches back to the full-res flow / mask (glue) ----
        Ys = jnp.arange(H)
        Xs = jnp.arange(W)

        def scatter_one(flow_i, coord):
            top, bottom, left, right, hh, ww = (coord[k] for k in range(6))
            ok = (hh > 0) & (ww > 0)
            iny = (Ys >= top) & (Ys < bottom)
            inx = (Xs >= left) & (Xs < right)
            inside = ok & iny[:, None] & inx[None, :]
            yi = jnp.clip(Ys - top, 0, mh - 1)
            xi = jnp.clip(Xs - left, 0, mw - 1)
            g = flow_i[:, yi][:, :, xi]                      # (2, H, W)
            flow_plane = jnp.where(inside[None], g, -1.0)
            mask_plane = jnp.where(inside, 1.0, 0.0)
            return flow_plane, mask_plane

        flow_planes, mask_planes = jax.vmap(jax.vmap(scatter_one))(one_flow, coords)
        landmark_flow = flow_planes.reshape(N, 64, H, W)
        mask = mask_planes.reshape(N, 32, H, W)
        return landmark_flow, mask


# ----------------------------------------------------------------------------
if __name__ == "__main__":
    key = jax.random.PRNGKey(0)
    N, H, W = 2, 20, 20
    fea_H = fea_W = 10

    # init_scale=24 keeps the landmark mask small (mask_h=9, mask_w=11, L=99)
    layer = CorrelationLayerPallas(init_scale=24, key=jax.random.PRNGKey(0))

    ks = jax.random.split(key, 6)
    fea_c = jax.random.normal(ks[0], (N, 64, fea_H, fea_W), jnp.float32)
    fea_p = jax.random.normal(ks[1], (N, 64, fea_H, fea_W), jnp.float32)
    location = jax.random.normal(ks[2], (N, 64, H, W), jnp.float32)
    scale_param = jax.random.normal(ks[3], (N, 32, 2, 2), jnp.float32)
    c_landmark = jnp.floor(jax.random.uniform(ks[4], (N, 32, 2),
                                              minval=4.0, maxval=16.0)).astype(jnp.float32)
    p_landmark = jnp.floor(jax.random.uniform(ks[5], (N, 32, 2),
                                              minval=4.0, maxval=16.0)).astype(jnp.float32)
    # exercise the "missing landmark" skip path of the reference code
    c_landmark = c_landmark.at[0, 3].set(0.0)
    p_landmark = p_landmark.at[1, 7].set(0.0)

    fwd = jax.jit(layer.forward, static_argnums=(4, 5))
    flow, mask = fwd(location, fea_c, fea_p, scale_param, H, W,
                     c_landmark, p_landmark)
    flow, mask = jax.block_until_ready((flow, mask))

    assert flow.shape == (N, 64, H, W)
    assert mask.shape == (N, 32, H, W)
    assert bool(jnp.all(jnp.isfinite(flow)))
    assert bool(jnp.all(jnp.isfinite(mask)))
    print("KERNEL_OK")
</pallas_src>

<mosaic_0001>
module attributes {stable_mosaic.version = 11 : i64} {
  func.func private @main(%arg0: i32) attributes {dimension_semantics = [#tpu.dimension_semantics<core_parallel>], iteration_bounds = array<i64: 2>, tpu.core_type = #tpu.core_type<sc_scalar_subcore>, window_params = []} {
    return
  }
}

module attributes {stable_mosaic.version = 11 : i64} {
  func.func private @main(%arg0: i32) attributes {dimension_semantics = [#tpu.dimension_semantics<core_parallel>], iteration_bounds = array<i64: 2>, tpu.core_type = #tpu.core_type<sc_scalar_subcore>, window_params = []} {
    return
  }
}

module attributes {stable_mosaic.version = 11 : i64} {
  func.func @_fused_conv1x1_prelu_kernel(%arg0: i32, %arg1: i32, %arg2: memref<2xf32, #tpu.memory_space<smem>>, %arg3: memref<1x64x128xbf16, #tpu.memory_space<vmem>>, %arg4: memref<1x64x128xbf16, #tpu.memory_space<vmem>>, %arg5: memref<8x128xf32, #tpu.memory_space<vmem>>, %arg6: memref<8x1xf32, #tpu.memory_space<vmem>>, %arg7: memref<1x8x128xf32, #tpu.memory_space<vmem>>) attributes {dimension_semantics = [#tpu.dimension_semantics<parallel>, #tpu.dimension_semantics<parallel>], iteration_bounds = array<i64: 2, 1>, scalar_prefetch = 0 : i64, scratch_operands = 0 : i64, tpu.core_type = #tpu.core_type<tc>, window_params = [{transform_indices = @transform_0, window_bounds = array<i64: 2>}, {transform_indices = @transform_1, window_bounds = array<i64: 1, 64, 128>}, {transform_indices = @transform_2, window_bounds = array<i64: 1, 64, 128>}, {pipeline_mode = #tpu.pipeline_mode<synchronous>, transform_indices = @transform_3, window_bounds = array<i64: 8, 128>}, {pipeline_mode = #tpu.pipeline_mode<synchronous>, transform_indices = @transform_4, window_bounds = array<i64: 8, 1>}, {transform_indices = @transform_5, window_bounds = array<i64: 1, 8, 128>}]} {
    %c0 = arith.constant 0 : index
    %0 = memref.load %arg2[%c0] : memref<2xf32, #tpu.memory_space<smem>>
    %c1 = arith.constant 1 : index
    %1 = memref.load %arg2[%c1] : memref<2xf32, #tpu.memory_space<smem>>
    %c0_0 = arith.constant 0 : index
    %c0_1 = arith.constant 0 : index
    %c0_2 = arith.constant 0 : index
    %2 = vector.load %arg3[%c0_0, %c0_1, %c0_2] : memref<1x64x128xbf16, #tpu.memory_space<vmem>>, vector<1x64x128xbf16>
    %3 = vector.shape_cast %2 : vector<1x64x128xbf16> to vector<64x128xbf16>
    %4 = arith.extf %3 : vector<64x128xbf16> to vector<64x128xf32>
    %c0_3 = arith.constant 0 : index
    %c0_4 = arith.constant 0 : index
    %c0_5 = arith.constant 0 : index
    %5 = vector.load %arg4[%c0_3, %c0_4, %c0_5] : memref<1x64x128xbf16, #tpu.memory_space<vmem>>, vector<1x64x128xbf16>
    %6 = vector.shape_cast %5 : vector<1x64x128xbf16> to vector<64x128xbf16>
    %7 = arith.extf %6 : vector<64x128xbf16> to vector<64x128xf32>
    %cst = arith.constant 0.000000e+00 : f32
    %8 = vector.broadcast %cst : f32 to vector<64x128xf32>
    %9 = arith.cmpf oge, %4, %8 : vector<64x128xf32>
    %10 = vector.broadcast %0 : f32 to vector<64x128xf32>
    %11 = arith.mulf %10, %4 : vector<64x128xf32>
    %12 = arith.select %9, %4, %11 : vector<64x128xi1>, vector<64x128xf32>
    %cst_6 = arith.constant 0.000000e+00 : f32
    %13 = vector.broadcast %cst_6 : f32 to vector<64x128xf32>
    %14 = arith.cmpf oge, %7, %13 : vector<64x128xf32>
    %15 = vector.broadcast %1 : f32 to vector<64x128xf32>
    %16 = arith.mulf %15, %7 : vector<64x128xf32>
    %17 = arith.select %14, %7, %16 : vector<64x128xi1>, vector<64x128xf32>
    %18 = tpu.concatenate %12, %17 in 0 : vector<64x128xf32>, vector<64x128xf32> -> vector<128x128xf32>
    %c0_7 = arith.constant 0 : index
    %c0_8 = arith.constant 0 : index
    %19 = vector.load %arg5[%c0_7, %c0_8] : memref<8x128xf32, #tpu.memory_space<vmem>>, vector<8x128xf32>
    %cst_9 = arith.constant dense<0.000000e+00> : vector<8x128xf32>
    %20 = tpu.matmul %19, %18, %cst_9 {dimension_numbers = #tpu.dot_dimension_numbers<[1], [0], [0], [1], [0, 0, 1, 1], [], []>} : vector<8x128xf32>, vector<128x128xf32>, vector<8x128xf32> -> vector<8x128xf32>
    %c0_10 = arith.constant 0 : index
    %c0_11 = arith.constant 0 : index
    %21 = vector.load %arg6[%c0_10, %c0_11] : memref<8x1xf32, #tpu.memory_space<vmem>>, vector<8x1xf32>
    %22 = vector.broadcast %21 : vector<8x1xf32> to vector<8x128xf32>
    %23 = arith.addf %20, %22 : vector<8x128xf32>
    %c0_12 = arith.constant 0 : index
    %c0_13 = arith.constant 0 : index
    %c0_14 = arith.constant 0 : index
    %24 = vector.load %arg7[%c0_12, %c0_13, %c0_14] : memref<1x8x128xf32, #tpu.memory_space<vmem>>, vector<1x8x128xf32>
    %25 = vector.shape_cast %24 : vector<1x8x128xf32> to vector<8x128xf32>
    %26 = vector.shape_cast %23 : vector<8x128xf32> to vector<1x8x128xf32>
    tpu.vector_store %arg7[%c0_12, %c0_13, %c0_14], %26 {strides = array<i32>} : memref<1x8x128xf32, #tpu.memory_space<vmem>>, vector<1x8x128xf32>,
    return
  }
  func.func @transform_0(%arg0: i32, %arg1: i32) -> i32 {
    %c0_i32 = arith.constant 0 : i32
    %c0_i32_0 = arith.constant 0 : i32
    return %c0_i32 : i32
  }
  func.func @transform_1(%arg0: i32, %arg1: i32) -> (i32, i32, i32) {
    %c0_i32 = arith.constant 0 : i32
    %c0_i32_0 = arith.constant 0 : i32
    return %arg0, %c0_i32, %arg1 : i32, i32, i32
  }
  func.func @transform_2(%arg0: i32, %arg1: i32) -> (i32, i32, i32) {
    %c0_i32 = arith.constant 0 : i32
    %c0_i32_0 = arith.constant 0 : i32
    return %arg0, %c0_i32, %arg1 : i32, i32, i32
  }
  func.func @transform_3(%arg0: i32, %arg1: i32) -> (i32, i32) {
    %c0_i32 = arith.constant 0 : i32
    %c0_i32_0 = arith.constant 0 : i32
    %c0_i32_1 = arith.constant 0 : i32
    return %c0_i32, %c0_i32_0 : i32, i32
  }
  func.func @transform_4(%arg0: i32, %arg1: i32) -> (i32, i32) {
    %c0_i32 = arith.constant 0 : i32
    %c0_i32_0 = arith.constant 0 : i32
    %c0_i32_1 = arith.constant 0 : i32
    return %c0_i32, %c0_i32_0 : i32, i32
  }
  func.func @transform_5(%arg0: i32, %arg1: i32) -> (i32, i32, i32) {
    %c0_i32 = arith.constant 0 : i32
    %c0_i32_0 = arith.constant 0 : i32
    return %arg0, %c0_i32, %arg1 : i32, i32, i32
  }
}

module attributes {stable_mosaic.version = 11 : i64} {
  func.func @_correlation_kernel(%arg0: i32, %arg1: i32, %arg2: memref<8x4x99xbf16, #tpu.memory_space<vmem>>, %arg3: memref<8x4x128xbf16, #tpu.memory_space<vmem>>, %arg4: memref<8x2x99xf32, #tpu.memory_space<vmem>>, %arg5: memref<8x2x128xf32, #tpu.memory_space<vmem>>) attributes {dimension_semantics = [#tpu.dimension_semantics<parallel>, #tpu.dimension_semantics<parallel>], iteration_bounds = array<i64: 8, 1>, scalar_prefetch = 0 : i64, scratch_operands = 0 : i64, tpu.core_type = #tpu.core_type<tc>, window_params = [{transform_indices = @transform_0, window_bounds = array<i64: 8, 4, 99>}, {transform_indices = @transform_1, window_bounds = array<i64: 8, 4, 128>}, {transform_indices = @transform_2, window_bounds = array<i64: 8, 2, 99>}, {transform_indices = @transform_3, window_bounds = array<i64: 8, 2, 128>}]} {
    %c0 = arith.constant 0 : index
    %c0_0 = arith.constant 0 : index
    %c0_1 = arith.constant 0 : index
    %0 = vector.load %arg2[%c0, %c0_0, %c0_1] : memref<8x4x99xbf16, #tpu.memory_space<vmem>>, vector<8x4x99xbf16>
    %1 = arith.extf %0 : vector<8x4x99xbf16> to vector<8x4x99xf32>
    %c0_2 = arith.constant 0 : index
    %c0_3 = arith.constant 0 : index
    %c0_4 = arith.constant 0 : index
    %2 = vector.load %arg3[%c0_2, %c0_3, %c0_4] : memref<8x4x128xbf16, #tpu.memory_space<vmem>>, vector<8x4x128xbf16>
    %3 = arith.extf %2 : vector<8x4x128xbf16> to vector<8x4x128xf32>
    %c0_5 = arith.constant 0 : index
    %c0_6 = arith.constant 0 : index
    %c0_7 = arith.constant 0 : index
    %4 = vector.load %arg4[%c0_5, %c0_6, %c0_7] : memref<8x2x99xf32, #tpu.memory_space<vmem>>, vector<8x2x99xf32>
    %5 = tpu.transpose %1, [0, 2, 1] : vector<8x4x99xf32> -> vector<8x99x4xf32>
    "tpu.trace_start"() <{level = 10 : i32, message = "blc,bcm->blm"}> : () -> ()
    %cst = arith.constant dense<0.000000e+00> : vector<8x99x128xf32>
    %6 = tpu.matmul %5, %3, %cst {dimension_numbers = #tpu.dot_dimension_numbers<[2], [1], [1], [2], [0, 0, 0, 1, 1, 2], [0], [0]>} : vector<8x99x4xf32>, vector<8x4x128xf32>, vector<8x99x128xf32> -> vector<8x99x128xf32>
    "tpu.trace_stop"() : () -> ()
    %cst_8 = arith.constant dense<0xFF800000> : vector<8x128xf32>
    %7 = vector.multi_reduction <maximumf>, %6, %cst_8 [1] : vector<8x99x128xf32> to vector<8x128xf32>
    %8 = vector.shape_cast %7 : vector<8x128xf32> to vector<8x1x128xf32>
    %9 = vector.broadcast %8 : vector<8x1x128xf32> to vector<8x99x128xf32>
    %10 = arith.subf %6, %9 : vector<8x99x128xf32>
    %11 = math.exp %10 : vector<8x99x128xf32>
    %cst_9 = arith.constant dense<0.000000e+00> : vector<8x128xf32>
    %12 = vector.multi_reduction <add>, %11, %cst_9 [1] : vector<8x99x128xf32> to vector<8x128xf32>
    %13 = vector.shape_cast %12 : vector<8x128xf32> to vector<8x1x128xf32>
    %14 = vector.broadcast %13 : vector<8x1x128xf32> to vector<8x99x128xf32>
    %15 = arith.divf %11, %14 : vector<8x99x128xf32>
    "tpu.trace_start"() <{level = 10 : i32, message = "bvl,blm->bvm"}> : () -> ()
    %cst_10 = arith.constant dense<0.000000e+00> : vector<8x2x128xf32>
    %16 = tpu.matmul %4, %15, %cst_10 {dimension_numbers = #tpu.dot_dimension_numbers<[2], [1], [1], [2], [0, 0, 0, 1, 1, 2], [0], [0]>} : vector<8x2x99xf32>, vector<8x99x128xf32>, vector<8x2x128xf32> -> vector<8x2x128xf32>
    "tpu.trace_stop"() : () -> ()
    %c0_11 = arith.constant 0 : index
    %c0_12 = arith.constant 0 : index
    %c0_13 = arith.constant 0 : index
    %17 = vector.load %arg5[%c0_11, %c0_12, %c0_13] : memref<8x2x128xf32, #tpu.memory_space<vmem>>, vector<8x2x128xf32>
    tpu.vector_store %arg5[%c0_11, %c0_12, %c0_13], %16 {strides = array<i32>} : memref<8x2x128xf32, #tpu.memory_space<vmem>>, vector<8x2x128xf32>,
    return
  }
  func.func @transform_0(%arg0: i32, %arg1: i32) -> (i32, i32, i32) {
    %c0_i32 = arith.constant 0 : i32
    %c0_i32_0 = arith.constant 0 : i32
    %c0_i32_1 = arith.constant 0 : i32
    return %arg0, %c0_i32, %c0_i32_0 : i32, i32, i32
  }
  func.func @transform_1(%arg0: i32, %arg1: i32) -> (i32, i32, i32) {
    %c0_i32 = arith.constant 0 : i32
    %c0_i32_0 = arith.constant 0 : i32
    return %arg0, %c0_i32, %arg1 : i32, i32, i32
  }
  func.func @transform_2(%arg0: i32, %arg1: i32) -> (i32, i32, i32) {
    %c0_i32 = arith.constant 0 : i32
    %c0_i32_0 = arith.constant 0 : i32
    %c0_i32_1 = arith.constant 0 : i32
    return %arg0, %c0_i32, %c0_i32_0 : i32, i32, i32
  }
  func.func @transform_3(%arg0: i32, %arg1: i32) -> (i32, i32, i32) {
    %c0_i32 = arith.constant 0 : i32
    %c0_i32_0 = arith.constant 0 : i32
    return %arg0, %c0_i32, %arg1 : i32, i32, i32
  }
}

</mosaic_0001>

<llo_original>
// kernel: forward.2
$region0: #{forward.2}
  #allocation0 [shape = 'u32[]', space=smem, size = 0x4, offset = 0x4, fixed_abs, tag = 'smem constant byte address 0x4 - core index']
  #allocation1 [shape = 'u32[144,128]{1,0:T(1,128)}', space=vmem, size = 0x12000, scoped, tag = 'internal scratch']
  %s0 = inlined_call_operand.vmem [shape: f32[2], index: 0, kind: input, shape index: {}]
  %s1 = inlined_call_operand.vmem [shape: bf16[2,64,128], index: 1, kind: input, shape index: {}]
  %s2 = inlined_call_operand.vmem [shape: bf16[2,64,128], index: 2, kind: input, shape index: {}]
  %s3 = inlined_call_operand.vmem [shape: f32[8,128], index: 3, kind: input, shape index: {}]
  %s4 = inlined_call_operand.vmem [shape: f32[8,1], index: 4, kind: input, shape index: {}]
  %s5 = inlined_call_operand.vmem [shape: f32[2,8,128], index: 5, kind: output, shape index: {}]
  %s6 = sld [smem:[#allocation0]]
  $region57: #{forward.2} parent=0
    _
  %s8 = ssub.s32 1, %s6
  %s9 = scalar_select 0, %s8, %s6
  $region1: #{forward.2} parent=0
    #allocation2 [shape = 'u8[512]{0}', space=smem, size = 0x200, scoped, tag = 'input window, operand 0, single buffered']
    #allocation3 [shape = 's32[2]{0}', space=sflag, size = 0x8, scoped, tag = 'scoped memory for forward.2']
    %10 = vsyncpa [#allocation3], 0
    loop: start=0, step=1, limit=4
    $region2: #{forward.2} parent=1 // loop_pre_header
      _
    $region3: #{forward.2} parent=1 // loop_header
      %s12 = sphi 0, %s16
      %p13 = scmp.ge.s32.totalorder %s12, 4
      %s19 = sphi 0, %s31
      %s20 = sphi 0, %s27
      %s21 = sphi 0, %s19
      %s22 = sphi 0, %s20
      %s23 = sphi 0, %s21
      %s24 = sphi 0, %s22
      %s32 = sphi 0, %s32
      %s34 = sphi 0, %s32
      %s35 = sphi 0, %s34
      %s49 = sphi 0, %s35
      %s57 = sphi 0, %s59
      %s60 = sphi 0, %s57
      %s61 = sphi 0, %s60
      %s77 = sphi 0, %s61
      %s85 = sphi 0, %s87
      %s88 = sphi 0, %s85
      %s89 = sphi 0, %s88
      %s105 = sphi 0, %s89
      %s109 = sphi 0, %s109
      %s111 = sphi 0, %s109
      %s112 = sphi 0, %s111
      %s126 = sphi 0, %s112
      %s130 = sphi 0, %s130
      %s132 = sphi 0, %s130
      %s133 = sphi 0, %s132
      %s147 = sphi 0, %s133
      %s155 = sphi 0, %s157
      %s158 = sphi 0, %s155
      %s159 = sphi 0, %s158
      %s175 = sphi 0, %s159
    $region4: #{forward.2} parent=1 // loop_header_branch
      %15 = sbr.rel (%p13) target = $region8
    $region5: #{forward.2} parent=1 // loop_body
      %s17 = ssub.s32 %s12, 1
      %s18 = ssub.s32 %s12, 2
      %s25 = sadd.s32 1, %s20
      %p26 = scmp.ge.s32.totalorder %s25, 1
      %s27 = scalar_select %p26, 0, %s25
      %s28 = sadd.s32 1, %s19
      %s29 = scalar_select %p26, %s28, %s19
      %p30 = scmp.ge.s32.totalorder %s29, 2
      %s31 = scalar_select %p30, 0, %s29
      %s33 = sadd.s32 %s32, 1
      %p36 = scmp.eq.s32.totalorder %s12, 1
      %p37 = scmp.ne.s32.totalorder %s32, %s34
      %p38 = scmp.eq.s32.totalorder %s12, 0
      %p39 = por %p37, %p38
      %p40 = scmp.ne.s32.totalorder %s32, %s34
      %p41 = scmp.eq.s32.totalorder %s17, 1
      %p42 = por %p40, %p41
      %p43 = scmp.ne.s32.totalorder %s34, %s35
      %p44 = scmp.eq.s32.totalorder %s17, 0
      %p45 = por %p43, %p44
      %p46 = scmp.ne.s32.totalorder %s34, %s35
      %p47 = scmp.eq.s32.totalorder %s18, 1
      %p48 = por %p46, %p47
      %p50 = scmp.ne.s32.totalorder %s35, %s49
      %p51 = scmp.eq.s32.totalorder %s18, 0
      %p52 = por %p50, %p51
      %s53 = ssub.s32 %s19, %s31
      %s54 = ssub.s32 %s20, %s27
      %s55 = sor.u32 %s53, %s54
      %p56 = scmp.eq.s32.totalorder %s55, 0
      %s58 = sadd.s32 %s57, 1
      %s59 = scalar_select %p56, %s57, %s58
      %p62 = pneg %p56
      %p63 = scmp.eq.s32.totalorder %s12, 1
      %p64 = por %p62, %p63
      %p65 = scmp.ne.s32.totalorder %s57, %s60
      %p66 = scmp.eq.s32.totalorder %s12, 0
      %p67 = por %p65, %p66
      %p68 = scmp.ne.s32.totalorder %s57, %s60
      %p69 = scmp.eq.s32.totalorder %s17, 1
      %p70 = por %p68, %p69
      %p71 = scmp.ne.s32.totalorder %s60, %s61
      %p72 = scmp.eq.s32.totalorder %s17, 0
      %p73 = por %p71, %p72
      %p74 = scmp.ne.s32.totalorder %s60, %s61
      %p75 = scmp.eq.s32.totalorder %s18, 1
      %p76 = por %p74, %p75
      %p78 = scmp.ne.s32.totalorder %s61, %s77
      %p79 = scmp.eq.s32.totalorder %s18, 0
      %p80 = por %p78, %p79
      %s81 = ssub.s32 %s19, %s31
      %s82 = ssub.s32 %s20, %s27
      %s83 = sor.u32 %s81, %s82
      %p84 = scmp.eq.s32.totalorder %s83, 0
      %s86 = sadd.s32 %s85, 1
      %s87 = scalar_select %p84, %s85, %s86
      %p90 = pneg %p84
      %p91 = scmp.eq.s32.totalorder %s12, 1
      %p92 = por %p90, %p91
      %p93 = scmp.ne.s32.totalorder %s85, %s88
      %p94 = scmp.eq.s32.totalorder %s12, 0
      %p95 = por %p93, %p94
      %p96 = scmp.ne.s32.totalorder %s85, %s88
      %p97 = scmp.eq.s32.totalorder %s17, 1
      %p98 = por %p96, %p97
      %p99 = scmp.ne.s32.totalorder %s88, %s89
      %p100 = scmp.eq.s32.totalorder %s17, 0
      %p101 = por %p99, %p100
      %p102 = scmp.ne.s32.totalorder %s88, %s89
      %p103 = scmp.eq.s32.totalorder %s18, 1
      %p104 = por %p102, %p103
      %p106 = scmp.ne.s32.totalorder %s89, %s105
      %p107 = scmp.eq.s32.totalorder %s18, 0
      %p108 = por %p106, %p107
      %s110 = sadd.s32 %s109, 1
      %p113 = scmp.eq.s32.totalorder %s12, 1
      %p114 = scmp.ne.s32.totalorder %s109, %s111
      %p115 = scmp.eq.s32.totalorder %s12, 0
      %p116 = por %p114, %p115
      %p117 = scmp.ne.s32.totalorder %s109, %s111
      %p118 = scmp.eq.s32.totalorder %s17, 1
      %p119 = por %p117, %p118
      %p120 = scmp.ne.s32.totalorder %s111, %s112
      %p121 = scmp.eq.s32.totalorder %s17, 0
      %p122 = por %p120, %p121
      %p123 = scmp.ne.s32.totalorder %s111, %s112
      %p124 = scmp.eq.s32.totalorder %s18, 1
      %p125 = por %p123, %p124
      %p127 = scmp.ne.s32.totalorder %s112, %s126
      %p128 = scmp.eq.s32.totalorder %s18, 0
      %p129 = por %p127, %p128
      %s131 = sadd.s32 %s130, 1
      %p134 = scmp.eq.s32.totalorder %s12, 1
      %p135 = scmp.ne.s32.totalorder %s130, %s132
      %p136 = scmp.eq.s32.totalorder %s12, 0
      %p137 = por %p135, %p136
      %p138 = scmp.ne.s32.totalorder %s130, %s132
      %p139 = scmp.eq.s32.totalorder %s17, 1
      %p140 = por %p138, %p139
      %p141 = scmp.ne.s32.totalorder %s132, %s133
      %p142 = scmp.eq.s32.totalorder %s17, 0
      %p143 = por %p141, %p142
      %p144 = scmp.ne.s32.totalorder %s132, %s133
      %p145 = scmp.eq.s32.totalorder %s18, 1
      %p146 = por %p144, %p145
      %p148 = scmp.ne.s32.totalorder %s133, %s147
      %p149 = scmp.eq.s32.totalorder %s18, 0
      %p150 = por %p148, %p149
      %s151 = ssub.s32 %s19, %s31
      %s152 = ssub.s32 %s20, %s27
      %s153 = sor.u32 %s151, %s152
      %p154 = scmp.eq.s32.totalorder %s153, 0
      %s156 = sadd.s32 %s155, 1
      %s157 = scalar_select %p154, %s155, %s156
      %p160 = pneg %p154
      %p161 = scmp.eq.s32.totalorder %s12, 1
      %p162 = por %p160, %p161
      %p163 = scmp.ne.s32.totalorder %s155, %s158
      %p164 = scmp.eq.s32.totalorder %s12, 0
      %p165 = por %p163, %p164
      %p166 = scmp.ne.s32.totalorder %s155, %s158
      %p167 = scmp.eq.s32.totalorder %s17, 1
      %p168 = por %p166, %p167
      %p169 = scmp.ne.s32.totalorder %s158, %s159
      %p170 = scmp.eq.s32.totalorder %s17, 0
      %p171 = por %p169, %p170
      %p172 = scmp.ne.s32.totalorder %s158, %s159
      %p173 = scmp.eq.s32.totalorder %s18, 1
      %p174 = por %p172, %p173
      %p176 = scmp.ne.s32.totalorder %s159, %s175
      %p177 = scmp.eq.s32.totalorder %s18, 0
      %p178 = por %p176, %p177
      %p179 = scmp.le.s32.totalorder 1, %s12
      %p180 = scmp.lt.s32.totalorder %s12, 3
      %p181 = pnand %p179, %p180
      %p182 = pneg %p181
      // Predicated region
      $region9: #{forward.2} parent=5 // pred_check
        _
      $region10: #{forward.2} parent=5 // pred_check_branch
        %184 = sbr.rel (%p181) target = $region12
      $region11: #{forward.2} parent=5 // pred_region
        %s185 = ssub.s32 %s12, 1
        // Predicated region
        $region13: #{forward.2} parent=11 // pred_check
          %p186 = pneg %p45
        $region14: #{forward.2} parent=11 // pred_check_branch
          %188 = sbr.rel (%p186) target = $region16
        $region15: #{forward.2} parent=11 // pred_region
          %s190 = ssub.s32 16, 16
          %191 = vsyncadd [#allocation3], %s190
          %s193 = sshll.u32 %s0, 4
          %s194 = int_to_ptr.vmem [resolvable:$true] %s193
          %196 = dma.vmem_to_smem %s194, 16, [#allocation2], [#allocation3]
        $region16: #{forward.2} parent=11 // pred_fallthru
          _
        // Predicated region
        $region17: #{forward.2} parent=11 // pred_check
          %p197 = pneg %p122
        $region18: #{forward.2} parent=11 // pred_check_branch
          %199 = sbr.rel (%p197) target = $region20
        $region19: #{forward.2} parent=11 // pred_region
          _
        $region20: #{forward.2} parent=11 // pred_fallthru
          _
        // Predicated region
        $region21: #{forward.2} parent=11 // pred_check
          %p200 = pneg %p143
        $region22: #{forward.2} parent=11 // pred_check_branch
          %202 = sbr.rel (%p200) target = $region24
        $region23: #{forward.2} parent=11 // pred_region
          _
        $region24: #{forward.2} parent=11 // pred_fallthru
          _
      $region12: #{forward.2} parent=5 // pred_fallthru
        _
      %p203 = scmp.lt.s32.totalorder %s12, 2
      // Predicated region
      $region25: #{forward.2} parent=5 // pred_check
        %p204 = pneg %p203
      $region26: #{forward.2} parent=5 // pred_check_branch
        %206 = sbr.rel (%p204) target = $region28
      $region27: #{forward.2} parent=5 // pred_region
        // Predicated region
        $region29: #{forward.2} parent=27 // pred_check
          %p207 = pneg %p67
        $region30: #{forward.2} parent=27 // pred_check_branch
          %209 = sbr.rel (%p207) target = $region32
        $region31: #{forward.2} parent=27 // pred_region
          %p210 = scmp.lt.s32.totalorder %s19, 1
          %s211 = scalar_select %p210, %s19, 1
          %p212 = scmp.lt.s32.totalorder %s20, 0
          %s213 = scalar_select %p212, %s20, 0
          %s214 = smul.addr %s211, 8
          %s215 = sadd.s32 %s213, %s214
          %s216 = smul.addr %s215, 4
          %s217 = scalar_lea.vmem %s1, %s216
        $region32: #{forward.2} parent=27 // pred_fallthru
          _
        // Predicated region
        $region33: #{forward.2} parent=27 // pred_check
          %p218 = pneg %p95
        $region34: #{forward.2} parent=27 // pred_check_branch
          %220 = sbr.rel (%p218) target = $region36
        $region35: #{forward.2} parent=27 // pred_region
          %p221 = scmp.lt.s32.totalorder %s19, 1
          %s222 = scalar_select %p221, %s19, 1
          %p223 = scmp.lt.s32.totalorder %s20, 0
          %s224 = scalar_select %p223, %s20, 0
          %s225 = smul.addr %s222, 8
          %s226 = sadd.s32 %s224, %s225
          %s227 = smul.addr %s226, 4
          %s228 = scalar_lea.vmem %s2, %s227
        $region36: #{forward.2} parent=27 // pred_fallthru
          _
      $region28: #{forward.2} parent=5 // pred_fallthru
        _
      %p229 = scmp.le.s32.totalorder 1, %s12
      %p230 = scmp.lt.s32.totalorder %s12, 3
      %p231 = pnand %p229, %p230
      %p232 = pneg %p231
      // Predicated region
      $region37: #{forward.2} parent=5 // pred_check
        _
      $region38: #{forward.2} parent=5 // pred_check_branch
        %234 = sbr.rel (%p231) target = $region40
      $region39: #{forward.2} parent=5 // pred_region
        %s235 = ssub.s32 %s12, 1
        // Predicated region
        $region41: #{forward.2} parent=39 // pred_check
          %p236 = pneg %p45
        $region42: #{forward.2} parent=39 // pred_check_branch
          %238 = sbr.rel (%p236) target = $region44
        $region43: #{forward.2} parent=39 // pred_region
          %239 = dma.done [#allocation3], 16
        $region44: #{forward.2} parent=39 // pred_fallthru
          _
        %240 = sfence
        %p241 = pneg %p45
        %p242 = pneg %p42
        %p243 = scmp.lt.s32.totalorder %s21, 1
        %s244 = scalar_select %p243, %s21, 1
        %p245 = scmp.lt.s32.totalorder %s22, 0
        %s246 = scalar_select %p245, %s22, 0
        %s247 = smul.addr %s244, 8
        %s248 = sadd.s32 %s246, %s247
        %s249 = smul.addr %s248, 4
        %s250 = scalar_lea.vmem %s1, %s249
        %p251 = pneg %p73
        %p252 = pneg %p70
        %p253 = scmp.lt.s32.totalorder %s21, 1
        %s254 = scalar_select %p253, %s21, 1
        %p255 = scmp.lt.s32.totalorder %s22, 0
        %s256 = scalar_select %p255, %s22, 0
        %s257 = smul.addr %s254, 8
        %s258 = sadd.s32 %s256, %s257
        %s259 = smul.addr %s258, 4
        %s260 = scalar_lea.vmem %s2, %s259
        %p261 = pneg %p101
        %p262 = pneg %p98
        %p263 = pneg %p122
        %p264 = pneg %p119
        %p265 = pneg %p143
        %p266 = pneg %p140
        %p267 = pneg %p171
        %p268 = pneg %p168
        %p269 = scmp.lt.s32.totalorder %s21, 1
        %s270 = scalar_select %p269, %s21, 1
        %p271 = scmp.lt.s32.totalorder %s22, 0
        %s272 = scalar_select %p271, %s22, 0
        %s273 = sadd.s32 %s272, %s270
        %s274 = smul.addr %s273, 8
        %s275 = scalar_lea.vmem %s5, %s274
        %p276 = scmp.lt.s32.totalorder %s21, 1
        %s277 = scalar_select %p276, %s21, 1
        %p278 = scmp.lt.s32.totalorder %s22, 0
        %s279 = scalar_select %p278, %s22, 0
        %s280 = smul.addr %s277, 8
        %s281 = sadd.s32 %s279, %s280
        %s282 = smul.addr %s281, 4
        %s283 = scalar_lea.vmem %s1, %s282
        %p284 = scmp.lt.s32.totalorder %s21, 1
        %s285 = scalar_select %p284, %s21, 1
        %p286 = scmp.lt.s32.totalorder %s22, 0
        %s287 = scalar_select %p286, %s22, 0
        %s288 = smul.addr %s285, 8
        %s289 = sadd.s32 %s287, %s288
        %s290 = smul.addr %s289, 4
        %s291 = scalar_lea.vmem %s2, %s290
        %p292 = scmp.lt.s32.totalorder %s21, 1
        %s293 = scalar_select %p292, %s21, 1
        %p294 = scmp.lt.s32.totalorder %s22, 0
        %s295 = scalar_select %p294, %s22, 0
        %s296 = sadd.s32 %s295, %s293
        %s297 = smul.addr %s296, 8
        %s298 = scalar_lea.vmem %s5, %s297
        %s299 = sld [smem:[#allocation2]]
        %s300 = sld [smem:[#allocation2 + $0x1]]
        %v301 = vld [vmem:[%s283] sm:$0xf]
        %v302 = vld [vmem:[%s283 + $0x4] sm:$0xf]
        %v303 = vld [vmem:[%s283 + $0x8] sm:$0xf]
        %v304 = vld [vmem:[%s283 + $0xc] sm:$0xf]
        %v305 = vld [vmem:[%s283 + $0x10] sm:$0xf]
        %v306 = vld [vmem:[%s283 + $0x14] sm:$0xf]
        %v307 = vld [vmem:[%s283 + $0x18] sm:$0xf]
        %v308 = vld [vmem:[%s283 + $0x1c] sm:$0xf]
        %v309 = vunpack.c.l.bf16 %v301
        %v310 = vunpack.c.l.bf16 %v302
        %v311 = vunpack.c.l.bf16 %v303
        %v312 = vunpack.c.l.bf16 %v304
        %v313 = vunpack.c.l.bf16 %v305
        %v314 = vunpack.c.l.bf16 %v306
        %v315 = vunpack.c.l.bf16 %v307
        %v316 = vunpack.c.l.bf16 %v308
        %v317 = vld [vmem:[%s291] sm:$0xf]
        %v318 = vld [vmem:[%s291 + $0x4] sm:$0xf]
        %v319 = vld [vmem:[%s291 + $0x8] sm:$0xf]
        %v320 = vld [vmem:[%s291 + $0xc] sm:$0xf]
        %v321 = vld [vmem:[%s291 + $0x10] sm:$0xf]
        %v322 = vld [vmem:[%s291 + $0x14] sm:$0xf]
        %v323 = vld [vmem:[%s291 + $0x18] sm:$0xf]
        %v324 = vld [vmem:[%s291 + $0x1c] sm:$0xf]
        %v325 = vunpack.c.l.bf16 %v317
        %v326 = vunpack.c.l.bf16 %v318
        %v327 = vunpack.c.l.bf16 %v319
        %v328 = vunpack.c.l.bf16 %v320
        %v329 = vunpack.c.l.bf16 %v321
        %v330 = vunpack.c.l.bf16 %v322
        %v331 = vunpack.c.l.bf16 %v323
        %v332 = vunpack.c.l.bf16 %v324
        %vm333 = vcmp.ge.f32.partialorder %v309, 0.0
        %vm334 = vcmp.ge.f32.partialorder %v310, 0.0
        %vm335 = vcmp.ge.f32.partialorder %v311, 0.0
        %vm336 = vcmp.ge.f32.partialorder %v312, 0.0
        %vm337 = vcmp.ge.f32.partialorder %v313, 0.0
        %vm338 = vcmp.ge.f32.partialorder %v314, 0.0
        %vm339 = vcmp.ge.f32.partialorder %v315, 0.0
        %vm340 = vcmp.ge.f32.partialorder %v316, 0.0
        %v341 = vstv %s299
        %v342 = vmul.f32 %v341, %v309
        %v343 = vmul.f32 %v341, %v310
        %v344 = vmul.f32 %v341, %v311
        %v345 = vmul.f32 %v341, %v312
        %v346 = vmul.f32 %v341, %v313
        %v347 = vmul.f32 %v341, %v314
        %v348 = vmul.f32 %v341, %v315
        %v349 = vmul.f32 %v341, %v316
        %v350 = vsel %vm333, %v309, %v342
        %v351 = vsel %vm334, %v310, %v343
        %v352 = vsel %vm335, %v311, %v344
        %v353 = vsel %vm336, %v312, %v345
        %v354 = vsel %vm337, %v313, %v346
        %v355 = vsel %vm338, %v314, %v347
        %v356 = vsel %vm339, %v315, %v348
        %v357 = vsel %vm340, %v316, %v349
        %vm358 = vcmp.ge.f32.partialorder %v325, 0.0
        %vm359 = vcmp.ge.f32.partialorder %v326, 0.0
        %vm360 = vcmp.ge.f32.partialorder %v327, 0.0
        %vm361 = vcmp.ge.f32.partialorder %v328, 0.0
        %vm362 = vcmp.ge.f32.partialorder %v329, 0.0
        %vm363 = vcmp.ge.f32.partialorder %v330, 0.0
        %vm364 = vcmp.ge.f32.partialorder %v331, 0.0
        %vm365 = vcmp.ge.f32.partialorder %v332, 0.0
        %v366 = vstv %s300
        %v367 = vmul.f32 %v366, %v325
        %v368 = vmul.f32 %v366, %v326
        %v369 = vmul.f32 %v366, %v327
        %v370 = vmul.f32 %v366, %v328
        %v371 = vmul.f32 %v366, %v329
        %v372 = vmul.f32 %v366, %v330
        %v373 = vmul.f32 %v366, %v331
        %v374 = vmul.f32 %v366, %v332
        %v375 = vsel %vm358, %v325, %v367
        %v376 = vsel %vm359, %v326, %v368
        %v377 = vsel %vm360, %v327, %v369
        %v378 = vsel %vm361, %v328, %v370
        %v379 = vsel %vm362, %v329, %v371
        %v380 = vsel %vm363, %v330, %v372
        %v381 = vsel %vm364, %v331, %v373
        %v382 = vsel %vm365, %v332, %v374
        %v383 = vld [vmem:[%s3] sm:$0xff]
        %v384 = vld [vmem:[%s4] sm:$0xff]
        %386 = vset.pattern.permute.xlu0 0
        %387 = vperm.xlu0 %386, %v384
        %v388 = vpop.permute.xlu0 %387
        %390 = vmatprep.subr.mxu0 0.0
        %391 = vmatpush1.msra.mxu0 %v350
        %392 = vmatprep.subr.mxu0 0.0
        %393 = vmatpush1.msra.mxu0 %v351
        %394 = vmatprep.subr.mxu0 0.0
        %395 = vmatpush1.msra.mxu0 %v352
        %396 = vmatprep.subr.mxu0 0.0
        %397 = vmatpush1.msra.mxu0 %v353
        %398 = vmatprep.subr.mxu0 0.0
        %399 = vmatpush1.msra.mxu0 %v354
        %400 = vmatprep.subr.mxu0 0.0
        %401 = vmatpush1.msra.mxu0 %v355
        %402 = vmatprep.subr.mxu0 0.0
        %403 = vmatpush1.msra.mxu0 %v356
        %404 = vmatprep.subr.mxu0 0.0
        %405 = vmatpush1.msra.mxu0 %v357
        %406 = vmatprep.subr.mxu0 0.0
        %407 = vmatpush1.msra.mxu0 %v375
        %408 = vmatprep.subr.mxu0 0.0
        %409 = vmatpush1.msra.mxu0 %v376
        %410 = vmatprep.subr.mxu0 0.0
        %411 = vmatpush1.msra.mxu0 %v377
        %412 = vmatprep.subr.mxu0 0.0
        %413 = vmatpush1.msra.mxu0 %v378
        %414 = vmatprep.subr.mxu0 0.0
        %415 = vmatpush1.msra.mxu0 %v379
        %416 = vmatprep.subr.mxu0 0.0
        %417 = vmatpush1.msra.mxu0 %v380
        %418 = vmatprep.subr.mxu0 0.0
        %419 = vmatpush1.msra.mxu0 %v381
        %420 = vmatprep.subr.mxu0 0.0
        %421 = vmatpush1.msra.mxu0 %v382
        %422 = vmatprep.subr.mxu0 0.0
        %423 = vmatpush1.msra.mxu0 0.0
        %424 = vmatprep.subr.mxu0 0.0
        %425 = vmatpush1.msra.mxu0 0.0
        %426 = vmatprep.subr.mxu0 0.0
        %427 = vmatpush1.msra.mxu0 0.0
        %428 = vmatprep.subr.mxu0 0.0
        %429 = vmatpush1.msra.mxu0 0.0
        %430 = vmatprep.subr.mxu0 0.0
        %431 = vmatpush1.msra.mxu0 0.0
        %432 = vmatprep.subr.mxu0 0.0
        %433 = vmatpush1.msra.mxu0 0.0
        %434 = vmatprep.subr.mxu0 0.0
        %435 = vmatpush1.msra.mxu0 0.0
        %436 = vmatprep.subr.mxu0 0.0
        %437 = vmatpush1.msra.mxu0 0.0
        %438 = vmatprep.subr.mxu0 0.0
        %439 = vmatpush1.msra.mxu0 0.0
        %440 = vmatprep.subr.mxu0 0.0
        %441 = vmatpush1.msra.mxu0 0.0
        %442 = vmatprep.subr.mxu0 0.0
        %443 = vmatpush1.msra.mxu0 0.0
        %444 = vmatprep.subr.mxu0 0.0
        %445 = vmatpush1.msra.mxu0 0.0
        %446 = vmatprep.subr.mxu0 0.0
        %447 = vmatpush1.msra.mxu0 0.0
        %448 = vmatprep.subr.mxu0 0.0
        %449 = vmatpush1.msra.mxu0 0.0
        %450 = vmatprep.subr.mxu0 0.0
        %451 = vmatpush1.msra.mxu0 0.0
        %452 = vmatprep.subr.mxu0 0.0
        %453 = vmatpush1.msra.mxu0 0.0
        %454 = vmatprep.mubr.f32.mxu0 0.0
        %455 = vmatmul.mubr.f32.gmra.mrb[0].mxu0 %v383
        %v456 = vpop.f32.mrb[0].mxu0
        %v457 = vadd.f32 %v388, %v456
        %v458 = vpop.f32.mrb[0].mxu0
        %459 = vdwg.mxu0
        %460 = vst [vmem:[%s298] sm:$0xff] %v457
        %p461 = scmp.lt.s32.totalorder %s21, 1
        %s462 = scalar_select %p461, %s21, 1
        %p463 = scmp.lt.s32.totalorder %s22, 0
        %s464 = scalar_select %p463, %s22, 0
        %s465 = sadd.s32 %s464, %s462
        %s466 = smul.addr %s465, 8
        %s467 = scalar_lea.vmem %s5, %s466
        // Predicated region
        $region45: #{forward.2} parent=39 // pred_check
          %p468 = pneg %p168
        $region46: #{forward.2} parent=39 // pred_check_branch
          %470 = sbr.rel (%p468) target = $region48
        $region47: #{forward.2} parent=39 // pred_region
          _
        $region48: #{forward.2} parent=39 // pred_fallthru
          _
      $region40: #{forward.2} parent=5 // pred_fallthru
        _
      %p471 = scmp.le.s32.totalorder 2, %s12
      // Predicated region
      $region49: #{forward.2} parent=5 // pred_check
        %p472 = pneg %p471
      $region50: #{forward.2} parent=5 // pred_check_branch
        %474 = sbr.rel (%p472) target = $region52
      $region51: #{forward.2} parent=5 // pred_region
        %s475 = ssub.s32 %s12, 2
        // Predicated region
        $region53: #{forward.2} parent=51 // pred_check
          %p476 = pneg %p174
        $region54: #{forward.2} parent=51 // pred_check_branch
          %478 = sbr.rel (%p476) target = $region56
        $region55: #{forward.2} parent=51 // pred_region
          %p479 = scmp.lt.s32.totalorder %s23, 1
          %s480 = scalar_select %p479, %s23, 1
          %p481 = scmp.lt.s32.totalorder %s24, 0
          %s482 = scalar_select %p481, %s24, 0
          %s483 = sadd.s32 %s482, %s480
          %s484 = smul.addr %s483, 8
          %s485 = scalar_lea.vmem %s5, %s484
        $region56: #{forward.2} parent=51 // pred_fallthru
          _
      $region52: #{forward.2} parent=5 // pred_fallthru
        _
    $region6: #{forward.2} parent=1 // loop_footer
      %s16 = sadd.s32 1, %s12
    $region7: #{forward.2} parent=1 // loop_footer_branch
      %11 = sbr.rel target = $region3
    $region8: #{forward.2} parent=1 // loop_exit
      _
    %486 = vsyncpa [#allocation3], 1
    %s487 = scalar_lea.sflag [#allocation3], 1
    %488 = vsyncpa %s487, 1

// kernel: forward.3
$region0: #{forward.3}
  #allocation0 [shape = 'u32[]', space=smem, size = 0x4, offset = 0x4, fixed_abs, tag = 'smem constant byte address 0x4 - core index']
  #allocation1 [shape = 'u32[144,128]{1,0:T(1,128)}', space=vmem, size = 0x12000, scoped, tag = 'internal scratch']
  %s0 = inlined_call_operand.vmem [shape: bf16[64,4,99], index: 0, kind: input, shape index: {}]
  %s1 = inlined_call_operand.vmem [shape: bf16[64,4,128], index: 1, kind: input, shape index: {}]
  %s2 = inlined_call_operand.vmem [shape: f32[64,2,99], index: 2, kind: input, shape index: {}]
  %s3 = inlined_call_operand.vmem [shape: f32[64,2,128], index: 3, kind: output, shape index: {}]
  %s4 = sld [smem:[#allocation0]]
  $region45: #{forward.3} parent=0
    _
  %s6 = ssub.s32 1, %s4
  %s7 = scalar_select 0, %s6, %s4
  loop: start=0, step=1, limit=10
  $region2: #{forward.3} parent=0 // loop_pre_header
    _
  $region3: #{forward.3} parent=0 // loop_header
    %s9 = sphi 0, %s13
    %p10 = scmp.ge.s32.totalorder %s9, 10
    %s16 = sphi 0, %s28
    %s17 = sphi 0, %s24
    %s18 = sphi 0, %s16
    %s19 = sphi 0, %s17
    %s20 = sphi 0, %s18
    %s21 = sphi 0, %s19
    %s31 = sphi 0, %s33
    %s34 = sphi 0, %s31
    %s35 = sphi 0, %s34
    %s51 = sphi 0, %s35
    %s59 = sphi 0, %s61
    %s62 = sphi 0, %s59
    %s63 = sphi 0, %s62
    %s79 = sphi 0, %s63
    %s85 = sphi 0, %s87
    %s88 = sphi 0, %s85
    %s89 = sphi 0, %s88
    %s105 = sphi 0, %s89
    %s113 = sphi 0, %s115
    %s116 = sphi 0, %s113
    %s117 = sphi 0, %s116
    %s133 = sphi 0, %s117
  $region4: #{forward.3} parent=0 // loop_header_branch
    %12 = sbr.rel (%p10) target = $region8
  $region5: #{forward.3} parent=0 // loop_body
    %s14 = ssub.s32 %s9, 1
    %s15 = ssub.s32 %s9, 2
    %s22 = sadd.s32 1, %s17
    %p23 = scmp.ge.s32.totalorder %s22, 1
    %s24 = scalar_select %p23, 0, %s22
    %s25 = sadd.s32 1, %s16
    %s26 = scalar_select %p23, %s25, %s16
    %p27 = scmp.ge.s32.totalorder %s26, 8
    %s28 = scalar_select %p27, 0, %s26
    %s29 = ssub.s32 %s16, %s28
    %p30 = scmp.eq.s32.totalorder %s29, 0
    %s32 = sadd.s32 %s31, 1
    %s33 = scalar_select %p30, %s31, %s32
    %p36 = pneg %p30
    %p37 = scmp.eq.s32.totalorder %s9, 7
    %p38 = por %p36, %p37
    %p39 = scmp.ne.s32.totalorder %s31, %s34
    %p40 = scmp.eq.s32.totalorder %s9, 0
    %p41 = por %p39, %p40
    %p42 = scmp.ne.s32.totalorder %s31, %s34
    %p43 = scmp.eq.s32.totalorder %s14, 7
    %p44 = por %p42, %p43
    %p45 = scmp.ne.s32.totalorder %s34, %s35
    %p46 = scmp.eq.s32.totalorder %s14, 0
    %p47 = por %p45, %p46
    %p48 = scmp.ne.s32.totalorder %s34, %s35
    %p49 = scmp.eq.s32.totalorder %s15, 7
    %p50 = por %p48, %p49
    %p52 = scmp.ne.s32.totalorder %s35, %s51
    %p53 = scmp.eq.s32.totalorder %s15, 0
    %p54 = por %p52, %p53
    %s55 = ssub.s32 %s16, %s28
    %s56 = ssub.s32 %s17, %s24
    %s57 = sor.u32 %s55, %s56
    %p58 = scmp.eq.s32.totalorder %s57, 0
    %s60 = sadd.s32 %s59, 1
    %s61 = scalar_select %p58, %s59, %s60
    %p64 = pneg %p58
    %p65 = scmp.eq.s32.totalorder %s9, 7
    %p66 = por %p64, %p65
    %p67 = scmp.ne.s32.totalorder %s59, %s62
    %p68 = scmp.eq.s32.totalorder %s9, 0
    %p69 = por %p67, %p68
    %p70 = scmp.ne.s32.totalorder %s59, %s62
    %p71 = scmp.eq.s32.totalorder %s14, 7
    %p72 = por %p70, %p71
    %p73 = scmp.ne.s32.totalorder %s62, %s63
    %p74 = scmp.eq.s32.totalorder %s14, 0
    %p75 = por %p73, %p74
    %p76 = scmp.ne.s32.totalorder %s62, %s63
    %p77 = scmp.eq.s32.totalorder %s15, 7
    %p78 = por %p76, %p77
    %p80 = scmp.ne.s32.totalorder %s63, %s79
    %p81 = scmp.eq.s32.totalorder %s15, 0
    %p82 = por %p80, %p81
    %s83 = ssub.s32 %s16, %s28
    %p84 = scmp.eq.s32.totalorder %s83, 0
    %s86 = sadd.s32 %s85, 1
    %s87 = scalar_select %p84, %s85, %s86
    %p90 = pneg %p84
    %p91 = scmp.eq.s32.totalorder %s9, 7
    %p92 = por %p90, %p91
    %p93 = scmp.ne.s32.totalorder %s85, %s88
    %p94 = scmp.eq.s32.totalorder %s9, 0
    %p95 = por %p93, %p94
    %p96 = scmp.ne.s32.totalorder %s85, %s88
    %p97 = scmp.eq.s32.totalorder %s14, 7
    %p98 = por %p96, %p97
    %p99 = scmp.ne.s32.totalorder %s88, %s89
    %p100 = scmp.eq.s32.totalorder %s14, 0
    %p101 = por %p99, %p100
    %p102 = scmp.ne.s32.totalorder %s88, %s89
    %p103 = scmp.eq.s32.totalorder %s15, 7
    %p104 = por %p102, %p103
    %p106 = scmp.ne.s32.totalorder %s89, %s105
    %p107 = scmp.eq.s32.totalorder %s15, 0
    %p108 = por %p106, %p107
    %s109 = ssub.s32 %s16, %s28
    %s110 = ssub.s32 %s17, %s24
    %s111 = sor.u32 %s109, %s110
    %p112 = scmp.eq.s32.totalorder %s111, 0
    %s114 = sadd.s32 %s113, 1
    %s115 = scalar_select %p112, %s113, %s114
    %p118 = pneg %p112
    %p119 = scmp.eq.s32.totalorder %s9, 7
    %p120 = por %p118, %p119
    %p121 = scmp.ne.s32.totalorder %s113, %s116
    %p122 = scmp.eq.s32.totalorder %s9, 0
    %p123 = por %p121, %p122
    %p124 = scmp.ne.s32.totalorder %s113, %s116
    %p125 = scmp.eq.s32.totalorder %s14, 7
    %p126 = por %p124, %p125
    %p127 = scmp.ne.s32.totalorder %s116, %s117
    %p128 = scmp.eq.s32.totalorder %s14, 0
    %p129 = por %p127, %p128
    %p130 = scmp.ne.s32.totalorder %s116, %s117
    %p131 = scmp.eq.s32.totalorder %s15, 7
    %p132 = por %p130, %p131
    %p134 = scmp.ne.s32.totalorder %s117, %s133
    %p135 = scmp.eq.s32.totalorder %s15, 0
    %p136 = por %p134, %p135
    %p137 = scmp.le.s32.totalorder 1, %s9
    %p138 = scmp.lt.s32.totalorder %s9, 9
    %p139 = pnand %p137, %p138
    %p140 = pneg %p139
    // Predicated region
    $region9: #{forward.3} parent=5 // pred_check
      _
    $region10: #{forward.3} parent=5 // pred_check_branch
      %142 = sbr.rel (%p139) target = $region12
    $region11: #{forward.3} parent=5 // pred_region
      %s143 = ssub.s32 %s9, 1
    $region12: #{forward.3} parent=5 // pred_fallthru
      _
    %p144 = scmp.lt.s32.totalorder %s9, 8
    // Predicated region
    $region13: #{forward.3} parent=5 // pred_check
      %p145 = pneg %p144
    $region14: #{forward.3} parent=5 // pred_check_branch
      %147 = sbr.rel (%p145) target = $region16
    $region15: #{forward.3} parent=5 // pred_region
      // Predicated region
      $region17: #{forward.3} parent=15 // pred_check
        %p148 = pneg %p41
      $region18: #{forward.3} parent=15 // pred_check_branch
        %150 = sbr.rel (%p148) target = $region20
      $region19: #{forward.3} parent=15 // pred_region
        %s151 = smul.u32 8, %s16
        %p152 = scmp.lt.s32.totalorder %s151, 63
        %s153 = scalar_select %p152, %s151, 63
        %s154 = smul.addr %s153, 2
        %s155 = scalar_lea.vmem %s0, %s154
        %s156 = smul.u32 8, %s16
      $region20: #{forward.3} parent=15 // pred_fallthru
        _
      // Predicated region
      $region21: #{forward.3} parent=15 // pred_check
        %p157 = pneg %p69
      $region22: #{forward.3} parent=15 // pred_check_branch
        %159 = sbr.rel (%p157) target = $region24
      $region23: #{forward.3} parent=15 // pred_region
        %s160 = smul.u32 8, %s16
        %p161 = scmp.lt.s32.totalorder %s160, 63
        %s162 = scalar_select %p161, %s160, 63
        %p163 = scmp.lt.s32.totalorder %s17, 0
        %s164 = scalar_select %p163, %s17, 0
        %s165 = sadd.s32 %s164, %s162
        %s166 = smul.addr %s165, 2
        %s167 = scalar_lea.vmem %s1, %s166
        %s168 = smul.u32 8, %s16
      $region24: #{forward.3} parent=15 // pred_fallthru
        _
      // Predicated region
      $region25: #{forward.3} parent=15 // pred_check
        %p169 = pneg %p95
      $region26: #{forward.3} parent=15 // pred_check_branch
        %171 = sbr.rel (%p169) target = $region28
      $region27: #{forward.3} parent=15 // pred_region
        %s172 = smul.u32 8, %s16
        %p173 = scmp.lt.s32.totalorder %s172, 63
        %s174 = scalar_select %p173, %s172, 63
        %s175 = smul.addr %s174, 2
        %s176 = scalar_lea.vmem %s2, %s175
        %s177 = smul.u32 8, %s16
      $region28: #{forward.3} parent=15 // pred_fallthru
        _
    $region16: #{forward.3} parent=5 // pred_fallthru
      _
    %p178 = scmp.le.s32.totalorder 1, %s9
    %p179 = scmp.lt.s32.totalorder %s9, 9
    %p180 = pnand %p178, %p179
    %p181 = pneg %p180
    // Predicated region
    $region29: #{forward.3} parent=5 // pred_check
      _
    $region30: #{forward.3} parent=5 // pred_check_branch
      %183 = sbr.rel (%p180) target = $region32
    $region31: #{forward.3} parent=5 // pred_region
      %s184 = ssub.s32 %s9, 1
      %s185 = smul.u32 8, %s18
      %p186 = scmp.lt.s32.totalorder %s185, 63
      %s187 = scalar_select %p186, %s185, 63
      %s188 = smul.addr %s187, 2
      %s189 = scalar_lea.vmem %s0, %s188
      %p190 = pneg %p47
      %p191 = pneg %p44
      %s192 = smul.u32 8, %s18
      %p193 = scmp.lt.s32.totalorder %s192, 63
      %s194 = scalar_select %p193, %s192, 63
      %p195 = scmp.lt.s32.totalorder %s19, 0
      %s196 = scalar_select %p195, %s19, 0
      %s197 = sadd.s32 %s196, %s194
      %s198 = smul.addr %s197, 2
      %s199 = scalar_lea.vmem %s1, %s198
      %p200 = pneg %p75
      %p201 = pneg %p72
      %s202 = smul.u32 8, %s18
      %p203 = scmp.lt.s32.totalorder %s202, 63
      %s204 = scalar_select %p203, %s202, 63
      %s205 = smul.addr %s204, 2
      %s206 = scalar_lea.vmem %s2, %s205
      %p207 = pneg %p101
      %p208 = pneg %p98
      %p209 = pneg %p129
      %p210 = pneg %p126
      %s211 = smul.u32 8, %s18
      %p212 = scmp.lt.s32.totalorder %s211, 63
      %s213 = scalar_select %p212, %s211, 63
      %p214 = scmp.lt.s32.totalorder %s19, 0
      %s215 = scalar_select %p214, %s19, 0
      %s216 = sadd.s32 %s215, %s213
      %s217 = smul.addr %s216, 2
      %s218 = scalar_lea.vmem %s3, %s217
      %s219 = smul.u32 8, %s18
      %p220 = scmp.lt.s32.totalorder %s219, 63
      %s221 = scalar_select %p220, %s219, 63
      %s222 = smul.addr %s221, 2
      %s223 = scalar_lea.vmem %s0, %s222
      %s224 = smul.u32 8, %s18
      %s225 = smul.u32 8, %s18
      %p226 = scmp.lt.s32.totalorder %s225, 63
      %s227 = scalar_select %p226, %s225, 63
      %p228 = scmp.lt.s32.totalorder %s19, 0
      %s229 = scalar_select %p228, %s19, 0
      %s230 = sadd.s32 %s229, %s227
      %s231 = smul.addr %s230, 2
      %s232 = scalar_lea.vmem %s1, %s231
      %s233 = smul.u32 8, %s18
      %s234 = smul.u32 8, %s18
      %p235 = scmp.lt.s32.totalorder %s234, 63
      %s236 = scalar_select %p235, %s234, 63
      %s237 = smul.addr %s236, 2
      %s238 = scalar_lea.vmem %s2, %s237
      %s239 = smul.u32 8, %s18
      %s240 = smul.u32 8, %s18
      %p241 = scmp.lt.s32.totalorder %s240, 63
      %s242 = scalar_select %p241, %s240, 63
      %p243 = scmp.lt.s32.totalorder %s19, 0
      %s244 = scalar_select %p243, %s19, 0
      %s245 = sadd.s32 %s244, %s242
      %s246 = smul.addr %s245, 2
      %s247 = scalar_lea.vmem %s3, %s246
      %s248 = smul.u32 8, %s18
      %v249 = vld [vmem:[%s223] sm:$0x3]
      %v250 = vld [vmem:[%s223 + $0x2] sm:$0x3]
      %v251 = vld [vmem:[%s223 + $0x4] sm:$0x3]
      %v252 = vld [vmem:[%s223 + $0x6] sm:$0x3]
      %v253 = vld [vmem:[%s223 + $0x8] sm:$0x3]
      %v254 = vld [vmem:[%s223 + $0xa] sm:$0x3]
      %v255 = vld [vmem:[%s223 + $0xc] sm:$0x3]
      %v256 = vld [vmem:[%s223 + $0xe] sm:$0x3]
      %v257 = vunpack.c.l.bf16 %v249
      %v258 = vunpack.c.l.bf16 %v250
      %v259 = vunpack.c.l.bf16 %v251
      %v260 = vunpack.c.l.bf16 %v252
      %v261 = vunpack.c.l.bf16 %v253
      %v262 = vunpack.c.l.bf16 %v254
      %v263 = vunpack.c.l.bf16 %v255
      %v264 = vunpack.c.l.bf16 %v256
      %v265 = vld [vmem:[%s232] sm:$0x3]
      %v266 = vld [vmem:[%s232 + $0x2] sm:$0x3]
      %v267 = vld [vmem:[%s232 + $0x4] sm:$0x3]
      %v268 = vld [vmem:[%s232 + $0x6] sm:$0x3]
      %v269 = vld [vmem:[%s232 + $0x8] sm:$0x3]
      %v270 = vld [vmem:[%s232 + $0xa] sm:$0x3]
      %v271 = vld [vmem:[%s232 + $0xc] sm:$0x3]
      %v272 = vld [vmem:[%s232 + $0xe] sm:$0x3]
      %v273 = vunpack.c.l.bf16 %v265
      %v274 = vunpack.c.l.bf16 %v266
      %v275 = vunpack.c.l.bf16 %v267
      %v276 = vunpack.c.l.bf16 %v268
      %v277 = vunpack.c.l.bf16 %v269
      %v278 = vunpack.c.l.bf16 %v270
      %v279 = vunpack.c.l.bf16 %v271
      %v280 = vunpack.c.l.bf16 %v272
      %v281 = vld [vmem:[%s238] sm:$0x3]
      %v282 = vld [vmem:[%s238 + $0x2] sm:$0x3]
      %v283 = vld [vmem:[%s238 + $0x4] sm:$0x3]
      %v284 = vld [vmem:[%s238 + $0x6] sm:$0x3]
      %v285 = vld [vmem:[%s238 + $0x8] sm:$0x3]
      %v286 = vld [vmem:[%s238 + $0xa] sm:$0x3]
      %v287 = vld [vmem:[%s238 + $0xc] sm:$0x3]
      %v288 = vld [vmem:[%s238 + $0xe] sm:$0x3]
      %289 = vxpose.xlu0.b32.start [1/16] %v257, 128
      %290 = vxpose.xlu0.b32.cont [2/16] 0.0, 128
      %291 = vxpose.xlu0.b32.cont [3/16] 0.0, 128
      %292 = vxpose.xlu0.b32.cont [4/16] 0.0, 128
      %293 = vxpose.xlu0.b32.cont [5/16] 0.0, 128
      %294 = vxpose.xlu0.b32.cont [6/16] 0.0, 128
      %295 = vxpose.xlu0.b32.cont [7/16] 0.0, 128
      %296 = vxpose.xlu0.b32.cont [8/16] 0.0, 128
      %297 = vxpose.xlu0.b32.cont [9/16] 0.0, 128
      %298 = vxpose.xlu0.b32.cont [10/16] 0.0, 128
      %299 = vxpose.xlu0.b32.cont [11/16] 0.0, 128
      %300 = vxpose.xlu0.b32.cont [12/16] 0.0, 128
      %301 = vxpose.xlu0.b32.cont [13/16] 0.0, 128
      %302 = vxpose.xlu0.b32.cont [14/16] 0.0, 128
      %303 = vxpose.xlu0.b32.cont [15/16] 0.0, 128
      %304 = vxpose.xlu0.b32.end [16/16] 0.0, 128
      %v305 = vpop.trf.xlu0
      %v306 = vpop.trf.xlu0
      %v307 = vpop.trf.xlu0
      %v308 = vpop.trf.xlu0
      %v309 = vpop.trf.xlu0
      %v310 = vpop.trf.xlu0
      %v311 = vpop.trf.xlu0
      %v312 = vpop.trf.xlu0
      %v313 = vpop.trf.xlu0
      %v314 = vpop.trf.xlu0
      %v315 = vpop.trf.xlu0
      %v316 = vpop.trf.xlu0
      %v317 = vpop.trf.xlu0
      %v318 = vpop.trf.xlu0
      %v319 = vpop.trf.xlu0
      %v320 = vpop.trf.xlu0
      %321 = vxpose.xlu0.b32.start [1/16] %v258, 128
      %322 = vxpose.xlu0.b32.cont [2/16] 0.0, 128
      %323 = vxpose.xlu0.b32.cont [3/16] 0.0, 128
      %324 = vxpose.xlu0.b32.cont [4/16] 0.0, 128
      %325 = vxpose.xlu0.b32.cont [5/16] 0.0, 128
      %326 = vxpose.xlu0.b32.cont [6/16] 0.0, 128
      %327 = vxpose.xlu0.b32.cont [7/16] 0.0, 128
      %328 = vxpose.xlu0.b32.cont [8/16] 0.0, 128
      %329 = vxpose.xlu0.b32.cont [9/16] 0.0, 128
      %330 = vxpose.xlu0.b32.cont [10/16] 0.0, 128
      %331 = vxpose.xlu0.b32.cont [11/16] 0.0, 128
      %332 = vxpose.xlu0.b32.cont [12/16] 0.0, 128
      %333 = vxpose.xlu0.b32.cont [13/16] 0.0, 128
      %334 = vxpose.xlu0.b32.cont [14/16] 0.0, 128
      %335 = vxpose.xlu0.b32.cont [15/16] 0.0, 128
      %336 = vxpose.xlu0.b32.end [16/16] 0.0, 128
      %v337 = vpop.trf.xlu0
      %v338 = vpop.trf.xlu0
      %v339 = vpop.trf.xlu0
      %v340 = vpop.trf.xlu0
      %v341 = vpop.trf.xlu0
      %v342 = vpop.trf.xlu0
      %v343 = vpop.trf.xlu0
      %v344 = vpop.trf.xlu0
      %v345 = vpop.trf.xlu0
      %v346 = vpop.trf.xlu0
      %v347 = vpop.trf.xlu0
      %v348 = vpop.trf.xlu0
      %v349 = vpop.trf.xlu0
      %v350 = vpop.trf.xlu0
      %v351 = vpop.trf.xlu0
      %v352 = vpop.trf.xlu0
      %353 = vxpose.xlu0.b32.start [1/16] %v259, 128
      %354 = vxpose.xlu0.b32.cont [2/16] 0.0, 128
      %355 = vxpose.xlu0.b32.cont [3/16] 0.0, 128
      %356 = vxpose.xlu0.b32.cont [4/16] 0.0, 128
      %357 = vxpose.xlu0.b32.cont [5/16] 0.0, 128
      %358 = vxpose.xlu0.b32.cont [6/16] 0.0, 128
      %359 = vxpose.xlu0.b32.cont [7/16] 0.0, 128
      %360 = vxpose.xlu0.b32.cont [8/16] 0.0, 128
      %361 = vxpose.xlu0.b32.cont [9/16] 0.0, 128
      %362 = vxpose.xlu0.b32.cont [10/16] 0.0, 128
      %363 = vxpose.xlu0.b32.cont [11/16] 0.0, 128
      %364 = vxpose.xlu0.b32.cont [12/16] 0.0, 128
      %365 = vxpose.xlu0.b32.cont [13/16] 0.0, 128
      %366 = vxpose.xlu0.b32.cont [14/16] 0.0, 128
      %367 = vxpose.xlu0.b32.cont [15/16] 0.0, 128
      %368 = vxpose.xlu0.b32.end [16/16] 0.0, 128
      %v369 = vpop.trf.xlu0
      %v370 = vpop.trf.xlu0
      %v371 = vpop.trf.xlu0
      %v372 = vpop.trf.xlu0
      %v373 = vpop.trf.xlu0
      %v374 = vpop.trf.xlu0
      %v375 = vpop.trf.xlu0
      %v376 = vpop.trf.xlu0
      %v377 = vpop.trf.xlu0
      %v378 = vpop.trf.xlu0
      %v379 = vpop.trf.xlu0
      %v380 = vpop.trf.xlu0
      %v381 = vpop.trf.xlu0
      %v382 = vpop.trf.xlu0
      %v383 = vpop.trf.xlu0
      %v384 = vpop.trf.xlu0
      %385 = vxpose.xlu0.b32.start [1/16] %v260, 128
      %386 = vxpose.xlu0.b32.cont [2/16] 0.0, 128
      %387 = vxpose.xlu0.b32.cont [3/16] 0.0, 128
      %388 = vxpose.xlu0.b32.cont [4/16] 0.0, 128
      %389 = vxpose.xlu0.b32.cont [5/16] 0.0, 128
      %390 = vxpose.xlu0.b32.cont [6/16] 0.0, 128
      %391 = vxpose.xlu0.b32.cont [7/16] 0.0, 128
      %392 = vxpose.xlu0.b32.cont [8/16] 0.0, 128
      %393 = vxpose.xlu0.b32.cont [9/16] 0.0, 128
      %394 = vxpose.xlu0.b32.cont [10/16] 0.0, 128
      %395 = vxpose.xlu0.b32.cont [11/16] 0.0, 128
      %396 = vxpose.xlu0.b32.cont [12/16] 0.0, 128
      %397 = vxpose.xlu0.b32.cont [13/16] 0.0, 128
      %398 = vxpose.xlu0.b32.cont [14/16] 0.0, 128
      %399 = vxpose.xlu0.b32.cont [15/16] 0.0, 128
      %400 = vxpose.xlu0.b32.end [16/16] 0.0, 128
      %v401 = vpop.trf.xlu0
      %v402 = vpop.trf.xlu0
      %v403 = vpop.trf.xlu0
      %v404 = vpop.trf.xlu0
      %v405 = vpop.trf.xlu0
      %v406 = vpop.trf.xlu0
      %v407 = vpop.trf.xlu0
      %v408 = vpop.trf.xlu0
      %v409 = vpop.trf.xlu0
      %v410 = vpop.trf.xlu0
      %v411 = vpop.trf.xlu0
      %v412 = vpop.trf.xlu0
      %v413 = vpop.trf.xlu0
      %v414 = vpop.trf.xlu0
      %v415 = vpop.trf.xlu0
      %v416 = vpop.trf.xlu0
      %417 = vxpose.xlu0.b32.start [1/16] %v261, 128
      %418 = vxpose.xlu0.b32.cont [2/16] 0.0, 128
      %419 = vxpose.xlu0.b32.cont [3/16] 0.0, 128
      %420 = vxpose.xlu0.b32.cont [4/16] 0.0, 128
      %421 = vxpose.xlu0.b32.cont [5/16] 0.0, 128
      %422 = vxpose.xlu0.b32.cont [6/16] 0.0, 128
      %423 = vxpose.xlu0.b32.cont [7/16] 0.0, 128
      %424 = vxpose.xlu0.b32.cont [8/16] 0.0, 128
      %425 = vxpose.xlu0.b32.cont [9/16] 0.0, 128
      %426 = vxpose.xlu0.b32.cont [10/16] 0.0, 128
      %427 = vxpose.xlu0.b32.cont [11/16] 0.0, 128
      %428 = vxpose.xlu0.b32.cont [12/16] 0.0, 128
      %429 = vxpose.xlu0.b32.cont [13/16] 0.0, 128
      %430 = vxpose.xlu0.b32.cont [14/16] 0.0, 128
      %431 = vxpose.xlu0.b32.cont [15/16] 0.0, 128
      %432 = vxpose.xlu0.b32.end [16/16] 0.0, 128
      %v433 = vpop.trf.xlu0
      %v434 = vpop.trf.xlu0
      %v435 = vpop.trf.xlu0
      %v436 = vpop.trf.xlu0
      %v437 = vpop.trf.xlu0
      %v438 = vpop.trf.xlu0
      %v439 = vpop.trf.xlu0
      %v440 = vpop.trf.xlu0
      %v441 = vpop.trf.xlu0
      %v442 = vpop.trf.xlu0
      %v443 = vpop.trf.xlu0
      %v444 = vpop.trf.xlu0
      %v445 = vpop.trf.xlu0
      %v446 = vpop.trf.xlu0
      %v447 = vpop.trf.xlu0
      %v448 = vpop.trf.xlu0
      %449 = vxpose.xlu0.b32.start [1/16] %v262, 128
      %450 = vxpose.xlu0.b32.cont [2/16] 0.0, 128
      %451 = vxpose.xlu0.b32.cont [3/16] 0.0, 128
      %452 = vxpose.xlu0.b32.cont [4/16] 0.0, 128
      %453 = vxpose.xlu0.b32.cont [5/16] 0.0, 128
      %454 = vxpose.xlu0.b32.cont [6/16] 0.0, 128
      %455 = vxpose.xlu0.b32.cont [7/16] 0.0, 128
      %456 = vxpose.xlu0.b32.cont [8/16] 0.0, 128
      %457 = vxpose.xlu0.b32.cont [9/16] 0.0, 128
      %458 = vxpose.xlu0.b32.cont [10/16] 0.0, 128
      %459 = vxpose.xlu0.b32.cont [11/16] 0.0, 128
      %460 = vxpose.xlu0.b32.cont [12/16] 0.0, 128
      %461 = vxpose.xlu0.b32.cont [13/16] 0.0, 128
      %462 = vxpose.xlu0.b32.cont [14/16] 0.0, 128
      %463 = vxpose.xlu0.b32.cont [15/16] 0.0, 128
      %464 = vxpose.xlu0.b32.end [16/16] 0.0, 128
      %v465 = vpop.trf.xlu0
      %v466 = vpop.trf.xlu0
      %v467 = vpop.trf.xlu0
      %v468 = vpop.trf.xlu0
      %v469 = vpop.trf.xlu0
      %v470 = vpop.trf.xlu0
      %v471 = vpop.trf.xlu0
      %v472 = vpop.trf.xlu0
      %v473 = vpop.trf.xlu0
      %v474 = vpop.trf.xlu0
      %v475 = vpop.trf.xlu0
      %v476 = vpop.trf.xlu0
      %v477 = vpop.trf.xlu0
      %v478 = vpop.trf.xlu0
      %v479 = vpop.trf.xlu0
      %v480 = vpop.trf.xlu0
      %481 = vxpose.xlu0.b32.start [1/16] %v263, 128
      %482 = vxpose.xlu0.b32.cont [2/16] 0.0, 128
      %483 = vxpose.xlu0.b32.cont [3/16] 0.0, 128
      %484 = vxpose.xlu0.b32.cont [4/16] 0.0, 128
      %485 = vxpose.xlu0.b32.cont [5/16] 0.0, 128
      %486 = vxpose.xlu0.b32.cont [6/16] 0.0, 128
      %487 = vxpose.xlu0.b32.cont [7/16] 0.0, 128
      %488 = vxpose.xlu0.b32.cont [8/16] 0.0, 128
      %489 = vxpose.xlu0.b32.cont [9/16] 0.0, 128
      %490 = vxpose.xlu0.b32.cont [10/16] 0.0, 128
      %491 = vxpose.xlu0.b32.cont [11/16] 0.0, 128
      %492 = vxpose.xlu0.b32.cont [12/16] 0.0, 128
      %493 = vxpose.xlu0.b32.cont [13/16] 0.0, 128
      %494 = vxpose.xlu0.b32.cont [14/16] 0.0, 128
      %495 = vxpose.xlu0.b32.cont [15/16] 0.0, 128
      %496 = vxpose.xlu0.b32.end [16/16] 0.0, 128
      %v497 = vpop.trf.xlu0
      %v498 = vpop.trf.xlu0
      %v499 = vpop.trf.xlu0
      %v500 = vpop.trf.xlu0
      %v501 = vpop.trf.xlu0
      %v502 = vpop.trf.xlu0
      %v503 = vpop.trf.xlu0
      %v504 = vpop.trf.xlu0
      %v505 = vpop.trf.xlu0
      %v506 = vpop.trf.xlu0
      %v507 = vpop.trf.xlu0
      %v508 = vpop.trf.xlu0
      %v509 = vpop.trf.xlu0
      %v510 = vpop.trf.xlu0
      %v511 = vpop.trf.xlu0
      %v512 = vpop.trf.xlu0
      %513 = vxpose.xlu0.b32.start [1/16] %v264, 128
      %514 = vxpose.xlu0.b32.cont [2/16] 0.0, 128
      %515 = vxpose.xlu0.b32.cont [3/16] 0.0, 128
      %516 = vxpose.xlu0.b32.cont [4/16] 0.0, 128
      %517 = vxpose.xlu0.b32.cont [5/16] 0.0, 128
      %518 = vxpose.xlu0.b32.cont [6/16] 0.0, 128
      %519 = vxpose.xlu0.b32.cont [7/16] 0.0, 128
      %520 = vxpose.xlu0.b32.cont [8/16] 0.0, 128
      %521 = vxpose.xlu0.b32.cont [9/16] 0.0, 128
      %522 = vxpose.xlu0.b32.cont [10/16] 0.0, 128
      %523 = vxpose.xlu0.b32.cont [11/16] 0.0, 128
      %524 = vxpose.xlu0.b32.cont [12/16] 0.0, 128
      %525 = vxpose.xlu0.b32.cont [13/16] 0.0, 128
      %526 = vxpose.xlu0.b32.cont [14/16] 0.0, 128
      %527 = vxpose.xlu0.b32.cont [15/16] 0.0, 128
      %528 = vxpose.xlu0.b32.end [16/16] 0.0, 128
      %v529 = vpop.trf.xlu0
      %v530 = vpop.trf.xlu0
      %v531 = vpop.trf.xlu0
      %v532 = vpop.trf.xlu0
      %v533 = vpop.trf.xlu0
      %v534 = vpop.trf.xlu0
      %v535 = vpop.trf.xlu0
      %v536 = vpop.trf.xlu0
      %v537 = vpop.trf.xlu0
      %v538 = vpop.trf.xlu0
      %v539 = vpop.trf.xlu0
      %v540 = vpop.trf.xlu0
      %v541 = vpop.trf.xlu0
      %v542 = vpop.trf.xlu0
      %v543 = vpop.trf.xlu0
      %v544 = vpop.trf.xlu0
      %vm545 = vcmask 31744
      %v547 = vsel %vm545, %v305, 0
      %v550 = vsel %vm545, %v306, 0
      %v553 = vsel %vm545, %v307, 0
      %v556 = vsel %vm545, %v308, 0
      %v559 = vsel %vm545, %v309, 0
      %v562 = vsel %vm545, %v310, 0
      %v565 = vsel %vm545, %v311, 0
      %v568 = vsel %vm545, %v312, 0
      %v571 = vsel %vm545, %v313, 0
      %v574 = vsel %vm545, %v314, 0
      %v577 = vsel %vm545, %v315, 0
      %v580 = vsel %vm545, %v316, 0
      %v583 = vsel %vm545, %v317, 0
      %vm585 = vcmask 1043456
      %v587 = vsel %vm585, %v273, 0
      %589 = vmatprep.subr.mxu0 0.0
      %590 = vmatpush1.msra.mxu0 %v587
      %591 = vmatprep.subr.mxu0 0.0
      %592 = vmatpush1.msra.mxu0 0.0
      %593 = vmatprep.subr.mxu0 0.0
      %594 = vmatpush1.msra.mxu0 0.0
      %595 = vmatprep.subr.mxu0 0.0
      %596 = vmatpush1.msra.mxu0 0.0
      %597 = vmatprep.subr.mxu0 0.0
      %598 = vmatpush1.msra.mxu0 0.0
      %599 = vmatprep.subr.mxu0 0.0
      %600 = vmatpush1.msra.mxu0 0.0
      %601 = vmatprep.subr.mxu0 0.0
      %602 = vmatpush1.msra.mxu0 0.0
      %603 = vmatprep.subr.mxu0 0.0
      %604 = vmatpush1.msra.mxu0 0.0
      %605 = vmatprep.subr.mxu0 0.0
      %606 = vmatpush1.msra.mxu0 0.0
      %607 = vmatprep.subr.mxu0 0.0
      %608 = vmatpush1.msra.mxu0 0.0
      %609 = vmatprep.subr.mxu0 0.0
      %610 = vmatpush1.msra.mxu0 0.0
      %611 = vmatprep.subr.mxu0 0.0
      %612 = vmatpush1.msra.mxu0 0.0
      %613 = vmatprep.subr.mxu0 0.0
      %614 = vmatpush1.msra.mxu0 0.0
      %615 = vmatprep.subr.mxu0 0.0
      %616 = vmatpush1.msra.mxu0 0.0
      %617 = vmatprep.subr.mxu0 0.0
      %618 = vmatpush1.msra.mxu0 0.0
      %619 = vmatprep.subr.mxu0 0.0
      %620 = vmatpush1.msra.mxu0 0.0
      %621 = vmatprep.subr.mxu0 0.0
      %622 = vmatpush1.msra.mxu0 0.0
      %623 = vmatprep.subr.mxu0 0.0
      %624 = vmatpush1.msra.mxu0 0.0
      %625 = vmatprep.subr.mxu0 0.0
      %626 = vmatpush1.msra.mxu0 0.0
      %627 = vmatprep.subr.mxu0 0.0
      %628 = vmatpush1.msra.mxu0 0.0
      %629 = vmatprep.subr.mxu0 0.0
      %630 = vmatpush1.msra.mxu0 0.0
      %631 = vmatprep.subr.mxu0 0.0
      %632 = vmatpush1.msra.mxu0 0.0
      %633 = vmatprep.subr.mxu0 0.0
      %634 = vmatpush1.msra.mxu0 0.0
      %635 = vmatprep.subr.mxu0 0.0
      %636 = vmatpush1.msra.mxu0 0.0
      %637 = vmatprep.subr.mxu0 0.0
      %638 = vmatpush1.msra.mxu0 0.0
      %639 = vmatprep.subr.mxu0 0.0
      %640 = vmatpush1.msra.mxu0 0.0
      %641 = vmatprep.subr.mxu0 0.0
      %642 = vmatpush1.msra.mxu0 0.0
      %643 = vmatprep.subr.mxu0 0.0
      %644 = vmatpush1.msra.mxu0 0.0
      %645 = vmatprep.subr.mxu0 0.0
      %646 = vmatpush1.msra.mxu0 0.0
      %647 = vmatprep.subr.mxu0 0.0
      %648 = vmatpush1.msra.mxu0 0.0
      %649 = vmatprep.subr.mxu0 0.0
      %650 = vmatpush1.msra.mxu0 0.0
      %651 = vmatprep.subr.mxu0 0.0
      %652 = vmatpush1.msra.mxu0 0.0
      %653 = vmatprep.mubr.f32.mxu0 0.0
      %654 = vmatmul.mubr.f32.gmra.mrb[0].mxu0 %v547
      %v655 = vpop.f32.mrb[0].mxu0
      %v656 = vadd.f32 0.0, %v655
      %v657 = vpop.f32.mrb[0].mxu0
      %658 = vmatprep.mubr.f32.mxu0 0.0
      %659 = vmatmul.mubr.f32.gmra.mrb[0].mxu0 %v550
      %v660 = vpop.f32.mrb[0].mxu0
      %v661 = vadd.f32 0.0, %v660
      %v662 = vpop.f32.mrb[0].mxu0
      %663 = vmatprep.mubr.f32.mxu0 0.0
      %664 = vmatmul.mubr.f32.gmra.mrb[0].mxu0 %v553
      %v665 = vpop.f32.mrb[0].mxu0
      %v666 = vadd.f32 0.0, %v665
      %v667 = vpop.f32.mrb[0].mxu0
      %668 = vmatprep.mubr.f32.mxu0 0.0
      %669 = vmatmul.mubr.f32.gmra.mrb[0].mxu0 %v556
      %v670 = vpop.f32.mrb[0].mxu0
      %v671 = vadd.f32 0.0, %v670
      %v672 = vpop.f32.mrb[0].mxu0
      %673 = vmatprep.mubr.f32.mxu0 0.0
      %674 = vmatmul.mubr.f32.gmra.mrb[0].mxu0 %v559
      %v675 = vpop.f32.mrb[0].mxu0
      %v676 = vadd.f32 0.0, %v675
      %v677 = vpop.f32.mrb[0].mxu0
      %678 = vmatprep.mubr.f32.mxu0 0.0
      %679 = vmatmul.mubr.f32.gmra.mrb[0].mxu0 %v562
      %v680 = vpop.f32.mrb[0].mxu0
      %v681 = vadd.f32 0.0, %v680
      %v682 = vpop.f32.mrb[0].mxu0
      %683 = vmatprep.mubr.f32.mxu0 0.0
      %684 = vmatmul.mubr.f32.gmra.mrb[0].mxu0 %v565
      %v685 = vpop.f32.mrb[0].mxu0
      %v686 = vadd.f32 0.0, %v685
      %v687 = vpop.f32.mrb[0].mxu0
      %688 = vmatprep.mubr.f32.mxu0 0.0
      %689 = vmatmul.mubr.f32.gmra.mrb[0].mxu0 %v568
      %v690 = vpop.f32.mrb[0].mxu0
      %v691 = vadd.f32 0.0, %v690
      %v692 = vpop.f32.mrb[0].mxu0
      %693 = vmatprep.mubr.f32.mxu0 0.0
      %694 = vmatmul.mubr.f32.gmra.mrb[0].mxu0 %v571
      %v695 = vpop.f32.mrb[0].mxu0
      %v696 = vadd.f32 0.0, %v695
      %v697 = vpop.f32.mrb[0].mxu0
      %698 = vmatprep.mubr.f32.mxu0 0.0
      %699 = vmatmul.mubr.f32.gmra.mrb[0].mxu0 %v574
      %v700 = vpop.f32.mrb[0].mxu0
      %v701 = vadd.f32 0.0, %v700
      %v702 = vpop.f32.mrb[0].mxu0
      %703 = vmatprep.mubr.f32.mxu0 0.0
      %704 = vmatmul.mubr.f32.gmra.mrb[0].mxu0 %v577
      %v705 = vpop.f32.mrb[0].mxu0
      %v706 = vadd.f32 0.0, %v705
      %v707 = vpop.f32.mrb[0].mxu0
      %708 = vmatprep.mubr.f32.mxu0 0.0
      %709 = vmatmul.mubr.f32.gmra.mrb[0].mxu0 %v580
      %v710 = vpop.f32.mrb[0].mxu0
      %v711 = vadd.f32 0.0, %v710
      %v712 = vpop.f32.mrb[0].mxu0
      %713 = vmatprep.mubr.f32.mxu0 0.0
      %714 = vmatmul.mubr.f32.gmra.mrb[0].mxu0 %v583
      %v715 = vpop.f32.mrb[0].mxu0
      %v716 = vadd.f32 0.0, %v715
      %v717 = vpop.f32.mrb[0].mxu0
      %718 = vdwg.mxu0
      %v720 = vsel %vm545, %v337, 0
      %v723 = vsel %vm545, %v338, 0
      %v726 = vsel %vm545, %v339, 0
      %v729 = vsel %vm545, %v340, 0
      %v732 = vsel %vm545, %v341, 0
      %v735 = vsel %vm545, %v342, 0
      %v738 = vsel %vm545, %v343, 0
      %v741 = vsel %vm545, %v344, 0
      %v744 = vsel %vm545, %v345, 0
      %v747 = vsel %vm545, %v346, 0
      %v750 = vsel %vm545, %v347, 0
      %v753 = vsel %vm545, %v348, 0
      %v756 = vsel %vm545, %v349, 0
      %v759 = vsel %vm585, %v274, 0
      %761 = vmatprep.subr.mxu0 0.0
      %762 = vmatpush1.msra.mxu0 %v759
      %763 = vmatprep.subr.mxu0 0.0
      %764 = vmatpush1.msra.mxu0 0.0
      %765 = vmatprep.subr.mxu0 0.0
      %766 = vmatpush1.msra.mxu0 0.0
      %767 = vmatprep.subr.mxu0 0.0
      %768 = vmatpush1.msra.mxu0 0.0
      %769 = vmatprep.subr.mxu0 0.0
      %770 = vmatpush1.msra.mxu0 0.0
      %771 = vmatprep.subr.mxu0 0.0
      %772 = vmatpush1.msra.mxu0 0.0
      %773 = vmatprep.subr.mxu0 0.0
      %774 = vmatpush1.msra.mxu0 0.0
      %775 = vmatprep.subr.mxu0 0.0
      %776 = vmatpush1.msra.mxu0 0.0
      %777 = vmatprep.subr.mxu0 0.0
      %778 = vmatpush1.msra.mxu0 0.0
      %779 = vmatprep.subr.mxu0 0.0
      %780 = vmatpush1.msra.mxu0 0.0
      %781 = vmatprep.subr.mxu0 0.0
      %782 = vmatpush1.msra.mxu0 0.0
      %783 = vmatprep.subr.mxu0 0.0
      %784 = vmatpush1.msra.mxu0 0.0
      %785 = vmatprep.subr.mxu0 0.0
      %786 = vmatpush1.msra.mxu0 0.0
      %787 = vmatprep.subr.mxu0 0.0
      %788 = vmatpush1.msra.mxu0 0.0
      %789 = vmatprep.subr.mxu0 0.0
      %790 = vmatpush1.msra.mxu0 0.0
      %791 = vmatprep.subr.mxu0 0.0
      %792 = vmatpush1.msra.mxu0 0.0
      %793 = vmatprep.subr.mxu0 0.0
      %794 = vmatpush1.msra.mxu0 0.0
      %795 = vmatprep.subr.mxu0 0.0
      %796 = vmatpush1.msra.mxu0 0.0
      %797 = vmatprep.subr.mxu0 0.0
      %798 = vmatpush1.msra.mxu0 0.0
      %799 = vmatprep.subr.mxu0 0.0
      %800 = vmatpush1.msra.mxu0 0.0
      %801 = vmatprep.subr.mxu0 0.0
      %802 = vmatpush1.msra.mxu0 0.0
      %803 = vmatprep.subr.mxu0 0.0
      %804 = vmatpush1.msra.mxu0 0.0
      %805 = vmatprep.subr.mxu0 0.0
      %806 = vmatpush1.msra.mxu0 0.0
      %807 = vmatprep.subr.mxu0 0.0
      %808 = vmatpush1.msra.mxu0 0.0
      %809 = vmatprep.subr.mxu0 0.0
      %810 = vmatpush1.msra.mxu0 0.0
      %811 = vmatprep.subr.mxu0 0.0
      %812 = vmatpush1.msra.mxu0 0.0
      %813 = vmatprep.subr.mxu0 0.0
      %814 = vmatpush1.msra.mxu0 0.0
      %815 = vmatprep.subr.mxu0 0.0
      %816 = vmatpush1.msra.mxu0 0.0
      %817 = vmatprep.subr.mxu0 0.0
      %818 = vmatpush1.msra.mxu0 0.0
      %819 = vmatprep.subr.mxu0 0.0
      %820 = vmatpush1.msra.mxu0 0.0
      %821 = vmatprep.subr.mxu0 0.0
      %822 = vmatpush1.msra.mxu0 0.0
      %823 = vmatprep.subr.mxu0 0.0
      %824 = vmatpush1.msra.mxu0 0.0
      %825 = vmatprep.mubr.f32.mxu0 0.0
      %826 = vmatmul.mubr.f32.gmra.mrb[0].mxu0 %v720
      %v827 = vpop.f32.mrb[0].mxu0
      %v828 = vadd.f32 0.0, %v827
      %v829 = vpop.f32.mrb[0].mxu0
      %830 = vmatprep.mubr.f32.mxu0 0.0
      %831 = vmatmul.mubr.f32.gmra.mrb[0].mxu0 %v723
      %v832 = vpop.f32.mrb[0].mxu0
      %v833 = vadd.f32 0.0, %v832
      %v834 = vpop.f32.mrb[0].mxu0
      %835 = vmatprep.mubr.f32.mxu0 0.0
      %836 = vmatmul.mubr.f32.gmra.mrb[0].mxu0 %v726
      %v837 = vpop.f32.mrb[0].mxu0
      %v838 = vadd.f32 0.0, %v837
      %v839 = vpop.f32.mrb[0].mxu0
      %840 = vmatprep.mubr.f32.mxu0 0.0
      %841 = vmatmul.mubr.f32.gmra.mrb[0].mxu0 %v729
      %v842 = vpop.f32.mrb[0].mxu0
      %v843 = vadd.f32 0.0, %v842
      %v844 = vpop.f32.mrb[0].mxu0
      %845 = vmatprep.mubr.f32.mxu0 0.0
      %846 = vmatmul.mubr.f32.gmra.mrb[0].mxu0 %v732
      %v847 = vpop.f32.mrb[0].mxu0
      %v848 = vadd.f32 0.0, %v847
      %v849 = vpop.f32.mrb[0].mxu0
      %850 = vmatprep.mubr.f32.mxu0 0.0
      %851 = vmatmul.mubr.f32.gmra.mrb[0].mxu0 %v735
      %v852 = vpop.f32.mrb[0].mxu0
      %v853 = vadd.f32 0.0, %v852
      %v854 = vpop.f32.mrb[0].mxu0
      %855 = vmatprep.mubr.f32.mxu0 0.0
      %856 = vmatmul.mubr.f32.gmra.mrb[0].mxu0 %v738
      %v857 = vpop.f32.mrb[0].mxu0
      %v858 = vadd.f32 0.0, %v857
      %v859 = vpop.f32.mrb[0].mxu0
      %860 = vmatprep.mubr.f32.mxu0 0.0
      %861 = vmatmul.mubr.f32.gmra.mrb[0].mxu0 %v741
      %v862 = vpop.f32.mrb[0].mxu0
      %v863 = vadd.f32 0.0, %v862
      %v864 = vpop.f32.mrb[0].mxu0
      %865 = vmatprep.mubr.f32.mxu0 0.0
      %866 = vmatmul.mubr.f32.gmra.mrb[0].mxu0 %v744
      %v867 = vpop.f32.mrb[0].mxu0
      %v868 = vadd.f32 0.0, %v867
      %v869 = vpop.f32.mrb[0].mxu0
      %870 = vmatprep.mubr.f32.mxu0 0.0
      %871 = vmatmul.mubr.f32.gmra.mrb[0].mxu0 %v747
      %v872 = vpop.f32.mrb[0].mxu0
      %v873 = vadd.f32 0.0, %v872
      %v874 = vpop.f32.mrb[0].mxu0
      %875 = vmatprep.mubr.f32.mxu0 0.0
      %876 = vmatmul.mubr.f32.gmra.mrb[0].mxu0 %v750
      %v877 = vpop.f32.mrb[0].mxu0
      %v878 = vadd.f32 0.0, %v877
      %v879 = vpop.f32.mrb[0].mxu0
      %880 = vmatprep.mubr.f32.mxu0 0.0
      %881 = vmatmul.mubr.f32.gmra.mrb[0].mxu0 %v753
      %v882 = vpop.f32.mrb[0].mxu0
      %v883 = vadd.f32 0.0, %v882
      %v884 = vpop.f32.mrb[0].mxu0
      %885 = vmatprep.mubr.f32.mxu0 0.0
      %886 = vmatmul.mubr.f32.gmra.mrb[0].mxu0 %v756
      %v887 = vpop.f32.mrb[0].mxu0
      %v888 = vadd.f32 0.0, %v887
      %v889 = vpop.f32.mrb[0].mxu0
      %890 = vdwg.mxu0
      %v892 = vsel %vm545, %v369, 0
      %v895 = vsel %vm545, %v370, 0
      %v898 = vsel %vm545, %v371, 0
      %v901 = vsel %vm545, %v372, 0
      %v904 = vsel %vm545, %v373, 0
      %v907 = vsel %vm545, %v374, 0
      %v910 = vsel %vm545, %v375, 0
      %v913 = vsel %vm545, %v376, 0
      %v916 = vsel %vm545, %v377, 0
      %v919 = vsel %vm545, %v378, 0
      %v922 = vsel %vm545, %v379, 0
      %v925 = vsel %vm545, %v380, 0
      %v928 = vsel %vm545, %v381, 0
      %v931 = vsel %vm585, %v275, 0
      %933 = vmatprep.subr.mxu0 0.0
      %934 = vmatpush1.msra.mxu0 %v931
      %935 = vmatprep.subr.mxu0 0.0
      %936 = vmatpush1.msra.mxu0 0.0
      %937 = vmatprep.subr.mxu0 0.0
      %938 = vmatpush1.msra.mxu0 0.0
      %939 = vmatprep.subr.mxu0 0.0
      %940 = vmatpush1.msra.mxu0 0.0
      %941 = vmatprep.subr.mxu0 0.0
      %942 = vmatpush1.msra.mxu0 0.0
      %943 = vmatprep.subr.mxu0 0.0
      %944 = vmatpush1.msra.mxu0 0.0
      %945 = vmatprep.subr.mxu0 0.0
      %946 = vmatpush1.msra.mxu0 0.0
      %947 = vmatprep.subr.mxu0 0.0
      %948 = vmatpush1.msra.mxu0 0.0
      %949 = vmatprep.subr.mxu0 0.0
      %950 = vmatpush1.msra.mxu0 0.0
      %951 = vmatprep.subr.mxu0 0.0
      %952 = vmatpush1.msra.mxu0 0.0
      %953 = vmatprep.subr.mxu0 0.0
      %954 = vmatpush1.msra.mxu0 0.0
      %955 = vmatprep.subr.mxu0 0.0
      %956 = vmatpush1.msra.mxu0 0.0
      %957 = vmatprep.subr.mxu0 0.0
      %958 = vmatpush1.msra.mxu0 0.0
      %959 = vmatprep.subr.mxu0 0.0
      %960 = vmatpush1.msra.mxu0 0.0
      %961 = vmatprep.subr.mxu0 0.0
      %962 = vmatpush1.msra.mxu0 0.0
      %963 = vmatprep.subr.mxu0 0.0
      %964 = vmatpush1.msra.mxu0 0.0
      %965 = vmatprep.subr.mxu0 0.0
      %966 = vmatpush1.msra.mxu0 0.0
      %967 = vmatprep.subr.mxu0 0.0
      %968 = vmatpush1.msra.mxu0 0.0
      %969 = vmatprep.subr.mxu0 0.0
      %970 = vmatpush1.msra.mxu0 0.0
      %971 = vmatprep.subr.mxu0 0.0
      %972 = vmatpush1.msra.mxu0 0.0
      %973 = vmatprep.subr.mxu0 0.0
      %974 = vmatpush1.msra.mxu0 0.0
      %975 = vmatprep.subr.mxu0 0.0
      %976 = vmatpush1.msra.mxu0 0.0
      %977 = vmatprep.subr.mxu0 0.0
      %978 = vmatpush1.msra.mxu0 0.0
      %979 = vmatprep.subr.mxu0 0.0
      %980 = vmatpush1.msra.mxu0 0.0
      %981 = vmatprep.subr.mxu0 0.0
      %982 = vmatpush1.msra.mxu0 0.0
      %983 = vmatprep.subr.mxu0 0.0
      %984 = vmatpush1.msra.mxu0 0.0
      %985 = vmatprep.subr.mxu0 0.0
      %986 = vmatpush1.msra.mxu0 0.0
      %987 = vmatprep.subr.mxu0 0.0
      %988 = vmatpush1.msra.mxu0 0.0
      %989 = vmatprep.subr.mxu0 0.0
      %990 = vmatpush1.msra.mxu0 0.0
      %991 = vmatprep.subr.mxu0 0.0
      %992 = vmatpush1.msra.mxu0 0.0
      %993 = vmatprep.subr.mxu0 0.0
      %994 = vmatpush1.msra.mxu0 0.0
      %995 = vmatprep.subr.mxu0 0.0
      %996 = vmatpush1.msra.mxu0 0.0
      %997 = vmatprep.mubr.f32.mxu0 0.0
      %998 = vmatmul.mubr.f32.gmra.mrb[0].mxu0 %v892
      %v999 = vpop.f32.mrb[0].mxu0
      %v1000 = vadd.f32 0.0, %v999
      %v1001 = vpop.f32.mrb[0].mxu0
      %1002 = vmatprep.mubr.f32.mxu0 0.0
      %1003 = vmatmul.mubr.f32.gmra.mrb[0].mxu0 %v895
      %v1004 = vpop.f32.mrb[0].mxu0
      %v1005 = vadd.f32 0.0, %v1004
      %v1006 = vpop.f32.mrb[0].mxu0
      %1007 = vmatprep.mubr.f32.mxu0 0.0
      %1008 = vmatmul.mubr.f32.gmra.mrb[0].mxu0 %v898
      %v1009 = vpop.f32.mrb[0].mxu0
      %v1010 = vadd.f32 0.0, %v1009
      %v1011 = vpop.f32.mrb[0].mxu0
      %1012 = vmatprep.mubr.f32.mxu0 0.0
      %1013 = vmatmul.mubr.f32.gmra.mrb[0].mxu0 %v901
      %v1014 = vpop.f32.mrb[0].mxu0
      %v1015 = vadd.f32 0.0, %v1014
      %v1016 = vpop.f32.mrb[0].mxu0
      %1017 = vmatprep.mubr.f32.mxu0 0.0
      %1018 = vmatmul.mubr.f32.gmra.mrb[0].mxu0 %v904
      %v1019 = vpop.f32.mrb[0].mxu0
      %v1020 = vadd.f32 0.0, %v1019
      %v1021 = vpop.f32.mrb[0].mxu0
      %1022 = vmatprep.mubr.f32.mxu0 0.0
      %1023 = vmatmul.mubr.f32.gmra.mrb[0].mxu0 %v907
      %v1024 = vpop.f32.mrb[0].mxu0
      %v1025 = vadd.f32 0.0, %v1024
      %v1026 = vpop.f32.mrb[0].mxu0
      %1027 = vmatprep.mubr.f32.mxu0 0.0
      %1028 = vmatmul.mubr.f32.gmra.mrb[0].mxu0 %v910
      %v1029 = vpop.f32.mrb[0].mxu0
      %v1030 = vadd.f32 0.0, %v1029
      %v1031 = vpop.f32.mrb[0].mxu0
      %1032 = vmatprep.mubr.f32.mxu0 0.0
      %1033 = vmatmul.mubr.f32.gmra.mrb[0].mxu0 %v913
      %v1034 = vpop.f32.mrb[0].mxu0
      %v1035 = vadd.f32 0.0, %v1034
      %v1036 = vpop.f32.mrb[0].mxu0
      %1037 = vmatprep.mubr.f32.mxu0 0.0
      %1038 = vmatmul.mubr.f32.gmra.mrb[0].mxu0 %v916
      %v1039 = vpop.f32.mrb[0].mxu0
      %v1040 = vadd.f32 0.0, %v1039
      %v1041 = vpop.f32.mrb[0].mxu0
      %1042 = vmatprep.mubr.f32.mxu0 0.0
      %1043 = vmatmul.mubr.f32.gmra.mrb[0].mxu0 %v919
      %v1044 = vpop.f32.mrb[0].mxu0
      %v1045 = vadd.f32 0.0, %v1044
      %v1046 = vpop.f32.mrb[0].mxu0
      %1047 = vmatprep.mubr.f32.mxu0 0.0
      %1048 = vmatmul.mubr.f32.gmra.mrb[0].mxu0 %v922
      %v1049 = vpop.f32.mrb[0].mxu0
      %v1050 = vadd.f32 0.0, %v1049
      %v1051 = vpop.f32.mrb[0].mxu0
      %1052 = vmatprep.mubr.f32.mxu0 0.0
      %1053 = vmatmul.mubr.f32.gmra.mrb[0].mxu0 %v925
      %v1054 = vpop.f32.mrb[0].mxu0
      %v1055 = vadd.f32 0.0, %v1054
      %v1056 = vpop.f32.mrb[0].mxu0
      %1057 = vmatprep.mubr.f32.mxu0 0.0
      %1058 = vmatmul.mubr.f32.gmra.mrb[0].mxu0 %v928
      %v1059 = vpop.f32.mrb[0].mxu0
      %v1060 = vadd.f32 0.0, %v1059
      %v1061 = vpop.f32.mrb[0].mxu0
      %1062 = vdwg.mxu0
      %v1064 = vsel %vm545, %v401, 0
      %v1067 = vsel %vm545, %v402, 0
      %v1070 = vsel %vm545, %v403, 0
      %v1073 = vsel %vm545, %v404, 0
      %v1076 = vsel %vm545, %v405, 0
      %v1079 = vsel %vm545, %v406, 0
      %v1082 = vsel %vm545, %v407, 0
      %v1085 = vsel %vm545, %v408, 0
      %v1088 = vsel %vm545, %v409, 0
      %v1091 = vsel %vm545, %v410, 0
      %v1094 = vsel %vm545, %v411, 0
      %v1097 = vsel %vm545, %v412, 0
      %v1100 = vsel %vm545, %v413, 0
      %v1103 = vsel %vm585, %v276, 0
      %1105 = vmatprep.subr.mxu0 0.0
      %1106 = vmatpush1.msra.mxu0 %v1103
      %1107 = vmatprep.subr.mxu0 0.0
      %1108 = vmatpush1.msra.mxu0 0.0
      %1109 = vmatprep.subr.mxu0 0.0
      %1110 = vmatpush1.msra.mxu0 0.0
      %1111 = vmatprep.subr.mxu0 0.0
      %1112 = vmatpush1.msra.mxu0 0.0
      %1113 = vmatprep.subr.mxu0 0.0
      %1114 = vmatpush1.msra.mxu0 0.0
      %1115 = vmatprep.subr.mxu0 0.0
      %1116 = vmatpush1.msra.mxu0 0.0
      %1117 = vmatprep.subr.mxu0 0.0
      %1118 = vmatpush1.msra.mxu0 0.0
      %1119 = vmatprep.subr.mxu0 0.0
      %1120 = vmatpush1.msra.mxu0 0.0
      %1121 = vmatprep.subr.mxu0 0.0
      %1122 = vmatpush1.msra.mxu0 0.0
      %1123 = vmatprep.subr.mxu0 0.0
      %1124 = vmatpush1.msra.mxu0 0.0
      %1125 = vmatprep.subr.mxu0 0.0
      %1126 = vmatpush1.msra.mxu0 0.0
      %1127 = vmatprep.subr.mxu0 0.0
      %1128 = vmatpush1.msra.mxu0 0.0
      %1129 = vmatprep.subr.mxu0 0.0
      %1130 = vmatpush1.msra.mxu0 0.0
      %1131 = vmatprep.subr.mxu0 0.0
      %1132 = vmatpush1.msra.mxu0 0.0
      %1133 = vmatprep.subr.mxu0 0.0
      %1134 = vmatpush1.msra.mxu0 0.0
      %1135 = vmatprep.subr.mxu0 0.0
      %1136 = vmatpush1.msra.mxu0 0.0
      %1137 = vmatprep.subr.mxu0 0.0
      %1138 = vmatpush1.msra.mxu0 0.0
      %1139 = vmatprep.subr.mxu0 0.0
      %1140 = vmatpush1.msra.mxu0 0.0
      %1141 = vmatprep.subr.mxu0 0.0
      %1142 = vmatpush1.msra.mxu0 0.0
      %1143 = vmatprep.subr.mxu0 0.0
      %1144 = vmatpush1.msra.mxu0 0.0
      %1145 = vmatprep.subr.mxu0 0.0
      %1146 = vmatpush1.msra.mxu0 0.0
      %1147 = vmatprep.subr.mxu0 0.0
      %1148 = vmatpush1.msra.mxu0 0.0
      %1149 = vmatprep.subr.mxu0 0.0
      %1150 = vmatpush1.msra.mxu0 0.0
      %1151 = vmatprep.subr.mxu0 0.0
      %1152 = vmatpush1.msra.mxu0 0.0
      %1153 = vmatprep.subr.mxu0 0.0
      %1154 = vmatpush1.msra.mxu0 0.0
      %1155 = vmatprep.subr.mxu0 0.0
      %1156 = vmatpush1.msra.mxu0 0.0
      %1157 = vmatprep.subr.mxu0 0.0
      %1158 = vmatpush1.msra.mxu0 0.0
      %1159 = vmatprep.subr.mxu0 0.0
      %1160 = vmatpush1.msra.mxu0 0.0
      %1161 = vmatprep.subr.mxu0 0.0
      %1162 = vmatpush1.msra.mxu0 0.0
      %1163 = vmatprep.subr.mxu0 0.0
      %1164 = vmatpush1.msra.mxu0 0.0
      %1165 = vmatprep.subr.mxu0 0.0
      %1166 = vmatpush1.msra.mxu0 0.0
      %1167 = vmatprep.subr.mxu0 0.0
      %1168 = vmatpush1.msra.mxu0 0.0
      %1169 = vmatprep.mubr.f32.mxu0 0.0
      %1170 = vmatmul.mubr.f32.gmra.mrb[0].mxu0 %v1064
      %v1171 = vpop.f32.mrb[0].mxu0
      %v1172 = vadd.f32 0.0, %v1171
      %v1173 = vpop.f32.mrb[0].mxu0
      %1174 = vmatprep.mubr.f32.mxu0 0.0
      %1175 = vmatmul.mubr.f32.gmra.mrb[0].mxu0 %v1067
      %v1176 = vpop.f32.mrb[0].mxu0
      %v1177 = vadd.f32 0.0, %v1176
      %v1178 = vpop.f32.mrb[0].mxu0
      %1179 = vmatprep.mubr.f32.mxu0 0.0
      %1180 = vmatmul.mubr.f32.gmra.mrb[0].mxu0 %v1070
      %v1181 = vpop.f32.mrb[0].mxu0
      %v1182 = vadd.f32 0.0, %v1181
      %v1183 = vpop.f32.mrb[0].mxu0
      %1184 = vmatprep.mubr.f32.mxu0 0.0
      %1185 = vmatmul.mubr.f32.gmra.mrb[0].mxu0 %v1073
      %v1186 = vpop.f32.mrb[0].mxu0
      %v1187 = vadd.f32 0.0, %v1186
      %v1188 = vpop.f32.mrb[0].mxu0
      %1189 = vmatprep.mubr.f32.mxu0 0.0
      %1190 = vmatmul.mubr.f32.gmra.mrb[0].mxu0 %v1076
      %v1191 = vpop.f32.mrb[0].mxu0
      %v1192 = vadd.f32 0.0, %v1191
      %v1193 = vpop.f32.mrb[0].mxu0
      %1194 = vmatprep.mubr.f32.mxu0 0.0
      %1195 = vmatmul.mubr.f32.gmra.mrb[0].mxu0 %v1079
      %v1196 = vpop.f32.mrb[0].mxu0
      %v1197 = vadd.f32 0.0, %v1196
      %v1198 = vpop.f32.mrb[0].mxu0
      %1199 = vmatprep.mubr.f32.mxu0 0.0
      %1200 = vmatmul.mubr.f32.gmra.mrb[0].mxu0 %v1082
      %v1201 = vpop.f32.mrb[0].mxu0
      %v1202 = vadd.f32 0.0, %v1201
      %v1203 = vpop.f32.mrb[0].mxu0
      %1204 = vmatprep.mubr.f32.mxu0 0.0
      %1205 = vmatmul.mubr.f32.gmra.mrb[0].mxu0 %v1085
      %v1206 = vpop.f32.mrb[0].mxu0
      %v1207 = vadd.f32 0.0, %v1206
      %v1208 = vpop.f32.mrb[0].mxu0
      %1209 = vmatprep.mubr.f32.mxu0 0.0
      %1210 = vmatmul.mubr.f32.gmra.mrb[0].mxu0 %v1088
      %v1211 = vpop.f32.mrb[0].mxu0
      %v1212 = vadd.f32 0.0, %v1211
      %v1213 = vpop.f32.mrb[0].mxu0
      %1214 = vmatprep.mubr.f32.mxu0 0.0
      %1215 = vmatmul.mubr.f32.gmra.mrb[0].mxu0 %v1091
      %v1216 = vpop.f32.mrb[0].mxu0
      %v1217 = vadd.f32 0.0, %v1216
      %v1218 = vpop.f32.mrb[0].mxu0
      %1219 = vmatprep.mubr.f32.mxu0 0.0
      %1220 = vmatmul.mubr.f32.gmra.mrb[0].mxu0 %v1094
      %v1221 = vpop.f32.mrb[0].mxu0
      %v1222 = vadd.f32 0.0, %v1221
      %v1223 = vpop.f32.mrb[0].mxu0
      %1224 = vmatprep.mubr.f32.mxu0 0.0
      %1225 = vmatmul.mubr.f32.gmra.mrb[0].mxu0 %v1097
      %v1226 = vpop.f32.mrb[0].mxu0
      %v1227 = vadd.f32 0.0, %v1226
      %v1228 = vpop.f32.mrb[0].mxu0
      %1229 = vmatprep.mubr.f32.mxu0 0.0
      %1230 = vmatmul.mubr.f32.gmra.mrb[0].mxu0 %v1100
      %v1231 = vpop.f32.mrb[0].mxu0
      %v1232 = vadd.f32 0.0, %v1231
      %v1233 = vpop.f32.mrb[0].mxu0
      %1234 = vdwg.mxu0
      %v1236 = vsel %vm545, %v433, 0
      %v1239 = vsel %vm545, %v434, 0
      %v1242 = vsel %vm545, %v435, 0
      %v1245 = vsel %vm545, %v436, 0
      %v1248 = vsel %vm545, %v437, 0
      %v1251 = vsel %vm545, %v438, 0
      %v1254 = vsel %vm545, %v439, 0
      %v1257 = vsel %vm545, %v440, 0
      %v1260 = vsel %vm545, %v441, 0
      %v1263 = vsel %vm545, %v442, 0
      %v1266 = vsel %vm545, %v443, 0
      %v1269 = vsel %vm545, %v444, 0
      %v1272 = vsel %vm545, %v445, 0
      %v1275 = vsel %vm585, %v277, 0
      %1277 = vmatprep.subr.mxu0 0.0
      %1278 = vmatpush1.msra.mxu0 %v1275
      %1279 = vmatprep.subr.mxu0 0.0
      %1280 = vmatpush1.msra.mxu0 0.0
      %1281 = vmatprep.subr.mxu0 0.0
      %1282 = vmatpush1.msra.mxu0 0.0
      %1283 = vmatprep.subr.mxu0 0.0
      %1284 = vmatpush1.msra.mxu0 0.0
      %1285 = vmatprep.subr.mxu0 0.0
      %1286 = vmatpush1.msra.mxu0 0.0
      %1287 = vmatprep.subr.mxu0 0.0
      %1288 = vmatpush1.msra.mxu0 0.0
      %1289 = vmatprep.subr.mxu0 0.0
      %1290 = vmatpush1.msra.mxu0 0.0
      %1291 = vmatprep.subr.mxu0 0.0
      %1292 = vmatpush1.msra.mxu0 0.0
      %1293 = vmatprep.subr.mxu0 0.0
      %1294 = vmatpush1.msra.mxu0 0.0
      %1295 = vmatprep.subr.mxu0 0.0
      %1296 = vmatpush1.msra.mxu0 0.0
      %1297 = vmatprep.subr.mxu0 0.0
      %1298 = vmatpush1.msra.mxu0 0.0
      %1299 = vmatprep.subr.mxu0 0.0
      %1300 = vmatpush1.msra.mxu0 0.0
      %1301 = vmatprep.subr.mxu0 0.0
      %1302 = vmatpush1.msra.mxu0 0.0
      %1303 = vmatprep.subr.mxu0 0.0
      %1304 = vmatpush1.msra.mxu0 0.0
      %1305 = vmatprep.subr.mxu0 0.0
      %1306 = vmatpush1.msra.mxu0 0.0
      %1307 = vmatprep.subr.mxu0 0.0
      %1308 = vmatpush1.msra.mxu0 0.0
      %1309 = vmatprep.subr.mxu0 0.0
      %1310 = vmatpush1.msra.mxu0 0.0
      %1311 = vmatprep.subr.mxu0 0.0
      %1312 = vmatpush1.msra.mxu0 0.0
      %1313 = vmatprep.subr.mxu0 0.0
      %1314 = vmatpush1.msra.mxu0 0.0
      %1315 = vmatprep.subr.mxu0 0.0
      %1316 = vmatpush1.msra.mxu0 0.0
      %1317 = vmatprep.subr.mxu0 0.0
      %1318 = vmatpush1.msra.mxu0 0.0
      %1319 = vmatprep.subr.mxu0 0.0
      %1320 = vmatpush1.msra.mxu0 0.0
      %1321 = vmatprep.subr.mxu0 0.0
      %1322 = vmatpush1.msra.mxu0 0.0
      %1323 = vmatprep.subr.mxu0 0.0
      %1324 = vmatpush1.msra.mxu0 0.0
      %1325 = vmatprep.subr.mxu0 0.0
      %1326 = vmatpush1.msra.mxu0 0.0
      %1327 = vmatprep.subr.mxu0 0.0
      %1328 = vmatpush1.msra.mxu0 0.0
      %1329 = vmatprep.subr.mxu0 0.0
      %1330 = vmatpush1.msra.mxu0 0.0
      %1331 = vmatprep.subr.mxu0 0.0
      %1332 = vmatpush1.msra.mxu0 0.0
      %1333 = vmatprep.subr.mxu0 0.0
      %1334 = vmatpush1.msra.mxu0 0.0
      %1335 = vmatprep.subr.mxu0 0.0
      %1336 = vmatpush1.msra.mxu0 0.0
      %1337 = vmatprep.subr.mxu0 0.0
      %1338 = vmatpush1.msra.mxu0 0.0
      %1339 = vmatprep.subr.mxu0 0.0
      %1340 = vmatpush1.msra.mxu0 0.0
      %1341 = vmatprep.mubr.f32.mxu0 0.0
      %1342 = vmatmul.mubr.f32.gmra.mrb[0].mxu0 %v1236
      %v1343 = vpop.f32.mrb[0].mxu0
      %v1344 = vadd.f32 0.0, %v1343
      %v1345 = vpop.f32.mrb[0].mxu0
      %1346 = vmatprep.mubr.f32.mxu0 0.0
      %1347 = vmatmul.mubr.f32.gmra.mrb[0].mxu0 %v1239
      %v1348 = vpop.f32.mrb[0].mxu0
      %v1349 = vadd.f32 0.0, %v1348
      %v1350 = vpop.f32.mrb[0].mxu0
      %1351 = vmatprep.mubr.f32.mxu0 0.0
      %1352 = vmatmul.mubr.f32.gmra.mrb[0].mxu0 %v1242
      %v1353 = vpop.f32.mrb[0].mxu0
      %v1354 = vadd.f32 0.0, %v1353
      %v1355 = vpop.f32.mrb[0].mxu0
      %1356 = vmatprep.mubr.f32.mxu0 0.0
      %1357 = vmatmul.mubr.f32.gmra.mrb[0].mxu0 %v1245
      %v1358 = vpop.f32.mrb[0].mxu0
      %v1359 = vadd.f32 0.0, %v1358
      %v1360 = vpop.f32.mrb[0].mxu0
      %1361 = vmatprep.mubr.f32.mxu0 0.0
      %1362 = vmatmul.mubr.f32.gmra.mrb[0].mxu0 %v1248
      %v1363 = vpop.f32.mrb[0].mxu0
      %v1364 = vadd.f32 0.0, %v1363
      %v1365 = vpop.f32.mrb[0].mxu0
      %1366 = vmatprep.mubr.f32.mxu0 0.0
      %1367 = vmatmul.mubr.f32.gmra.mrb[0].mxu0 %v1251
      %v1368 = vpop.f32.mrb[0].mxu0
      %v1369 = vadd.f32 0.0, %v1368
      %v1370 = vpop.f32.mrb[0].mxu0
      %1371 = vmatprep.mubr.f32.mxu0 0.0
      %1372 = vmatmul.mubr.f32.gmra.mrb[0].mxu0 %v1254
      %v1373 = vpop.f32.mrb[0].mxu0
      %v1374 = vadd.f32 0.0, %v1373
      %v1375 = vpop.f32.mrb[0].mxu0
      %1376 = vmatprep.mubr.f32.mxu0 0.0
      %1377 = vmatmul.mubr.f32.gmra.mrb[0].mxu0 %v1257
      %v1378 = vpop.f32.mrb[0].mxu0
      %v1379 = vadd.f32 0.0, %v1378
      %v1380 = vpop.f32.mrb[0].mxu0
      %1381 = vmatprep.mubr.f32.mxu0 0.0
      %1382 = vmatmul.mubr.f32.gmra.mrb[0].mxu0 %v1260
      %v1383 = vpop.f32.mrb[0].mxu0
      %v1384 = vadd.f32 0.0, %v1383
      %v1385 = vpop.f32.mrb[0].mxu0
      %1386 = vmatprep.mubr.f32.mxu0 0.0
      %1387 = vmatmul.mubr.f32.gmra.mrb[0].mxu0 %v1263
      %v1388 = vpop.f32.mrb[0].mxu0
      %v1389 = vadd.f32 0.0, %v1388
      %v1390 = vpop.f32.mrb[0].mxu0
      %1391 = vmatprep.mubr.f32.mxu0 0.0
      %1392 = vmatmul.mubr.f32.gmra.mrb[0].mxu0 %v1266
      %v1393 = vpop.f32.mrb[0].mxu0
      %v1394 = vadd.f32 0.0, %v1393
      %v1395 = vpop.f32.mrb[0].mxu0
      %1396 = vmatprep.mubr.f32.mxu0 0.0
      %1397 = vmatmul.mubr.f32.gmra.mrb[0].mxu0 %v1269
      %v1398 = vpop.f32.mrb[0].mxu0
      %v1399 = vadd.f32 0.0, %v1398
      %v1400 = vpop.f32.mrb[0].mxu0
      %1401 = vmatprep.mubr.f32.mxu0 0.0
      %1402 = vmatmul.mubr.f32.gmra.mrb[0].mxu0 %v1272
      %v1403 = vpop.f32.mrb[0].mxu0
      %v1404 = vadd.f32 0.0, %v1403
      %v1405 = vpop.f32.mrb[0].mxu0
      %1406 = vdwg.mxu0
      %v1408 = vsel %vm545, %v465, 0
      %v1411 = vsel %vm545, %v466, 0
      %v1414 = vsel %vm545, %v467, 0
      %v1417 = vsel %vm545, %v468, 0
      %v1420 = vsel %vm545, %v469, 0
      %v1423 = vsel %vm545, %v470, 0
      %v1426 = vsel %vm545, %v471, 0
      %v1429 = vsel %vm545, %v472, 0
      %v1432 = vsel %vm545, %v473, 0
      %v1435 = vsel %vm545, %v474, 0
      %v1438 = vsel %vm545, %v475, 0
      %v1441 = vsel %vm545, %v476, 0
      %v1444 = vsel %vm545, %v477, 0
      %v1447 = vsel %vm585, %v278, 0
      %1449 = vmatprep.subr.mxu0 0.0
      %1450 = vmatpush1.msra.mxu0 %v1447
      %1451 = vmatprep.subr.mxu0 0.0
      %1452 = vmatpush1.msra.mxu0 0.0
      %1453 = vmatprep.subr.mxu0 0.0
      %1454 = vmatpush1.msra.mxu0 0.0
      %1455 = vmatprep.subr.mxu0 0.0
      %1456 = vmatpush1.msra.mxu0 0.0
      %1457 = vmatprep.subr.mxu0 0.0
      %1458 = vmatpush1.msra.mxu0 0.0
      %1459 = vmatprep.subr.mxu0 0.0
      %1460 = vmatpush1.msra.mxu0 0.0
      %1461 = vmatprep.subr.mxu0 0.0
      %1462 = vmatpush1.msra.mxu0 0.0
      %1463 = vmatprep.subr.mxu0 0.0
      %1464 = vmatpush1.msra.mxu0 0.0
      %1465 = vmatprep.subr.mxu0 0.0
      %1466 = vmatpush1.msra.mxu0 0.0
      %1467 = vmatprep.subr.mxu0 0.0
      %1468 = vmatpush1.msra.mxu0 0.0
      %1469 = vmatprep.subr.mxu0 0.0
      %1470 = vmatpush1.msra.mxu0 0.0
      %1471 = vmatprep.subr.mxu0 0.0
      %1472 = vmatpush1.msra.mxu0 0.0
      %1473 = vmatprep.subr.mxu0 0.0
      %1474 = vmatpush1.msra.mxu0 0.0
      %1475 = vmatprep.subr.mxu0 0.0
      %1476 = vmatpush1.msra.mxu0 0.0
      %1477 = vmatprep.subr.mxu0 0.0
      %1478 = vmatpush1.msra.mxu0 0.0
      %1479 = vmatprep.subr.mxu0 0.0
      %1480 = vmatpush1.msra.mxu0 0.0
      %1481 = vmatprep.subr.mxu0 0.0
      %1482 = vmatpush1.msra.mxu0 0.0
      %1483 = vmatprep.subr.mxu0 0.0
      %1484 = vmatpush1.msra.mxu0 0.0
      %1485 = vmatprep.subr.mxu0 0.0
      %1486 = vmatpush1.msra.mxu0 0.0
      %1487 = vmatprep.subr.mxu0 0.0
      %1488 = vmatpush1.msra.mxu0 0.0
      %1489 = vmatprep.subr.mxu0 0.0
      %1490 = vmatpush1.msra.mxu0 0.0
      %1491 = vmatprep.subr.mxu0 0.0
      %1492 = vmatpush1.msra.mxu0 0.0
      %1493 = vmatprep.subr.mxu0 0.0
      %1494 = vmatpush1.msra.mxu0 0.0
      %1495 = vmatprep.subr.mxu0 0.0
      %1496 = vmatpush1.msra.mxu0 0.0
      %1497 = vmatprep.subr.mxu0 0.0
      %1498 = vmatpush1.msra.mxu0 0.0
      %1499 = vmatprep.subr.mxu0 0.0
      %1500 = vmatpush1.msra.mxu0 0.0
      %1501 = vmatprep.subr.mxu0 0.0
      %1502 = vmatpush1.msra.mxu0 0.0
      %1503 = vmatprep.subr.mxu0 0.0
      %1504 = vmatpush1.msra.mxu0 0.0
      %1505 = vmatprep.subr.mxu0 0.0
      %1506 = vmatpush1.msra.mxu0 0.0
      %1507 = vmatprep.subr.mxu0 0.0
      %1508 = vmatpush1.msra.mxu0 0.0
      %1509 = vmatprep.subr.mxu0 0.0
      %1510 = vmatpush1.msra.mxu0 0.0
      %1511 = vmatprep.subr.mxu0 0.0
      %1512 = vmatpush1.msra.mxu0 0.0
      %1513 = vmatprep.mubr.f32.mxu0 0.0
      %1514 = vmatmul.mubr.f32.gmra.mrb[0].mxu0 %v1408
      %v1515 = vpop.f32.mrb[0].mxu0
      %v1516 = vadd.f32 0.0, %v1515
      %v1517 = vpop.f32.mrb[0].mxu0
      %1518 = vmatprep.mubr.f32.mxu0 0.0
      %1519 = vmatmul.mubr.f32.gmra.mrb[0].mxu0 %v1411
      %v1520 = vpop.f32.mrb[0].mxu0
      %v1521 = vadd.f32 0.0, %v1520
      %v1522 = vpop.f32.mrb[0].mxu0
      %1523 = vmatprep.mubr.f32.mxu0 0.0
      %1524 = vmatmul.mubr.f32.gmra.mrb[0].mxu0 %v1414
      %v1525 = vpop.f32.mrb[0].mxu0
      %v1526 = vadd.f32 0.0, %v1525
      %v1527 = vpop.f32.mrb[0].mxu0
      %1528 = vmatprep.mubr.f32.mxu0 0.0
      %1529 = vmatmul.mubr.f32.gmra.mrb[0].mxu0 %v1417
      %v1530 = vpop.f32.mrb[0].mxu0
      %v1531 = vadd.f32 0.0, %v1530
      %v1532 = vpop.f32.mrb[0].mxu0
      %1533 = vmatprep.mubr.f32.mxu0 0.0
      %1534 = vmatmul.mubr.f32.gmra.mrb[0].mxu0 %v1420
      %v1535 = vpop.f32.mrb[0].mxu0
      %v1536 = vadd.f32 0.0, %v1535
      %v1537 = vpop.f32.mrb[0].mxu0
      %1538 = vmatprep.mubr.f32.mxu0 0.0
      %1539 = vmatmul.mubr.f32.gmra.mrb[0].mxu0 %v1423
      %v1540 = vpop.f32.mrb[0].mxu0
      %v1541 = vadd.f32 0.0, %v1540
      %v1542 = vpop.f32.mrb[0].mxu0
      %1543 = vmatprep.mubr.f32.mxu0 0.0
      %1544 = vmatmul.mubr.f32.gmra.mrb[0].mxu0 %v1426
      %v1545 = vpop.f32.mrb[0].mxu0
      %v1546 = vadd.f32 0.0, %v1545
      %v1547 = vpop.f32.mrb[0].mxu0
      %1548 = vmatprep.mubr.f32.mxu0 0.0
      %1549 = vmatmul.mubr.f32.gmra.mrb[0].mxu0 %v1429
      %v1550 = vpop.f32.mrb[0].mxu0
      %v1551 = vadd.f32 0.0, %v1550
      %v1552 = vpop.f32.mrb[0].mxu0
      %1553 = vmatprep.mubr.f32.mxu0 0.0
      %1554 = vmatmul.mubr.f32.gmra.mrb[0].mxu0 %v1432
      %v1555 = vpop.f32.mrb[0].mxu0
      %v1556 = vadd.f32 0.0, %v1555
      %v1557 = vpop.f32.mrb[0].mxu0
      %1558 = vmatprep.mubr.f32.mxu0 0.0
      %1559 = vmatmul.mubr.f32.gmra.mrb[0].mxu0 %v1435
      %v1560 = vpop.f32.mrb[0].mxu0
      %v1561 = vadd.f32 0.0, %v1560
      %v1562 = vpop.f32.mrb[0].mxu0
      %1563 = vmatprep.mubr.f32.mxu0 0.0
      %1564 = vmatmul.mubr.f32.gmra.mrb[0].mxu0 %v1438
      %v1565 = vpop.f32.mrb[0].mxu0
      %v1566 = vadd.f32 0.0, %v1565
      %v1567 = vpop.f32.mrb[0].mxu0
      %1568 = vmatprep.mubr.f32.mxu0 0.0
      %1569 = vmatmul.mubr.f32.gmra.mrb[0].mxu0 %v1441
      %v1570 = vpop.f32.mrb[0].mxu0
      %v1571 = vadd.f32 0.0, %v1570
      %v1572 = vpop.f32.mrb[0].mxu0
      %1573 = vmatprep.mubr.f32.mxu0 0.0
      %1574 = vmatmul.mubr.f32.gmra.mrb[0].mxu0 %v1444
      %v1575 = vpop.f32.mrb[0].mxu0
      %v1576 = vadd.f32 0.0, %v1575
      %v1577 = vpop.f32.mrb[0].mxu0
      %1578 = vdwg.mxu0
      %v1580 = vsel %vm545, %v497, 0
      %v1583 = vsel %vm545, %v498, 0
      %v1586 = vsel %vm545, %v499, 0
      %v1589 = vsel %vm545, %v500, 0
      %v1592 = vsel %vm545, %v501, 0
      %v1595 = vsel %vm545, %v502, 0
      %v1598 = vsel %vm545, %v503, 0
      %v1601 = vsel %vm545, %v504, 0
      %v1604 = vsel %vm545, %v505, 0
      %v1607 = vsel %vm545, %v506, 0
      %v1610 = vsel %vm545, %v507, 0
      %v1613 = vsel %vm545, %v508, 0
      %v1616 = vsel %vm545, %v509, 0
      %v1619 = vsel %vm585, %v279, 0
      %1621 = vmatprep.subr.mxu0 0.0
      %1622 = vmatpush1.msra.mxu0 %v1619
      %1623 = vmatprep.subr.mxu0 0.0
      %1624 = vmatpush1.msra.mxu0 0.0
      %1625 = vmatprep.subr.mxu0 0.0
      %1626 = vmatpush1.msra.mxu0 0.0
      %1627 = vmatprep.subr.mxu0 0.0
      %1628 = vmatpush1.msra.mxu0 0.0
      %1629 = vmatprep.subr.mxu0 0.0
      %1630 = vmatpush1.msra.mxu0 0.0
      %1631 = vmatprep.subr.mxu0 0.0
      %1632 = vmatpush1.msra.mxu0 0.0
      %1633 = vmatprep.subr.mxu0 0.0
      %1634 = vmatpush1.msra.mxu0 0.0
      %1635 = vmatprep.subr.mxu0 0.0
      %1636 = vmatpush1.msra.mxu0 0.0
      %1637 = vmatprep.subr.mxu0 0.0
      %1638 = vmatpush1.msra.mxu0 0.0
      %1639 = vmatprep.subr.mxu0 0.0
      %1640 = vmatpush1.msra.mxu0 0.0
      %1641 = vmatprep.subr.mxu0 0.0
      %1642 = vmatpush1.msra.mxu0 0.0
      %1643 = vmatprep.subr.mxu0 0.0
      %1644 = vmatpush1.msra.mxu0 0.0
      %1645 = vmatprep.subr.mxu0 0.0
      %1646 = vmatpush1.msra.mxu0 0.0
      %1647 = vmatprep.subr.mxu0 0.0
      %1648 = vmatpush1.msra.mxu0 0.0
      %1649 = vmatprep.subr.mxu0 0.0
      %1650 = vmatpush1.msra.mxu0 0.0
      %1651 = vmatprep.subr.mxu0 0.0
      %1652 = vmatpush1.msra.mxu0 0.0
      %1653 = vmatprep.subr.mxu0 0.0
      %1654 = vmatpush1.msra.mxu0 0.0
      %1655 = vmatprep.subr.mxu0 0.0
      %1656 = vmatpush1.msra.mxu0 0.0
      %1657 = vmatprep.subr.mxu0 0.0
      %1658 = vmatpush1.msra.mxu0 0.0
      %1659 = vmatprep.subr.mxu0 0.0
      %1660 = vmatpush1.msra.mxu0 0.0
      %1661 = vmatprep.subr.mxu0 0.0
      %1662 = vmatpush1.msra.mxu0 0.0
      %1663 = vmatprep.subr.mxu0 0.0
      %1664 = vmatpush1.msra.mxu0 0.0
      %1665 = vmatprep.subr.mxu0 0.0
      %1666 = vmatpush1.msra.mxu0 0.0
      %1667 = vmatprep.subr.mxu0 0.0
      %1668 = vmatpush1.msra.mxu0 0.0
      %1669 = vmatprep.subr.mxu0 0.0
      %1670 = vmatpush1.msra.mxu0 0.0
      %1671 = vmatprep.subr.mxu0 0.0
      %1672 = vmatpush1.msra.mxu0 0.0
      %1673 = vmatprep.subr.mxu0 0.0
      %1674 = vmatpush1.msra.mxu0 0.0
      %1675 = vmatprep.subr.mxu0 0.0
      %1676 = vmatpush1.msra.mxu0 0.0
      %1677 = vmatprep.subr.mxu0 0.0
      %1678 = vmatpush1.msra.mxu0 0.0
      %1679 = vmatprep.subr.mxu0 0.0
      %1680 = vmatpush1.msra.mxu0 0.0
      %1681 = vmatprep.subr.mxu0 0.0
      %1682 = vmatpush1.msra.mxu0 0.0
      %1683 = vmatprep.subr.mxu0 0.0
      %1684 = vmatpush1.msra.mxu0 0.0
      %1685 = vmatprep.mubr.f32.mxu0 0.0
      %1686 = vmatmul.mubr.f32.gmra.mrb[0].mxu0 %v1580
      %v1687 = vpop.f32.mrb[0].mxu0
      %v1688 = vadd.f32 0.0, %v1687
      %v1689 = vpop.f32.mrb[0].mxu0
      %1690 = vmatprep.mubr.f32.mxu0 0.0
      %1691 = vmatmul.mubr.f32.gmra.mrb[0].mxu0 %v1583
      %v1692 = vpop.f32.mrb[0].mxu0
      %v1693 = vadd.f32 0.0, %v1692
      %v1694 = vpop.f32.mrb[0].mxu0
      %1695 = vmatprep.mubr.f32.mxu0 0.0
      %1696 = vmatmul.mubr.f32.gmra.mrb[0].mxu0 %v1586
      %v1697 = vpop.f32.mrb[0].mxu0
      %v1698 = vadd.f32 0.0, %v1697
      %v1699 = vpop.f32.mrb[0].mxu0
      %1700 = vmatprep.mubr.f32.mxu0 0.0
      %1701 = vmatmul.mubr.f32.gmra.mrb[0].mxu0 %v1589
      %v1702 = vpop.f32.mrb[0].mxu0
      %v1703 = vadd.f32 0.0, %v1702
      %v1704 = vpop.f32.mrb[0].mxu0
      %1705 = vmatprep.mubr.f32.mxu0 0.0
      %1706 = vmatmul.mubr.f32.gmra.mrb[0].mxu0 %v1592
      %v1707 = vpop.f32.mrb[0].mxu0
      %v1708 = vadd.f32 0.0, %v1707
      %v1709 = vpop.f32.mrb[0].mxu0
      %1710 = vmatprep.mubr.f32.mxu0 0.0
      %1711 = vmatmul.mubr.f32.gmra.mrb[0].mxu0 %v1595
      %v1712 = vpop.f32.mrb[0].mxu0
      %v1713 = vadd.f32 0.0, %v1712
      %v1714 = vpop.f32.mrb[0].mxu0
      %1715 = vmatprep.mubr.f32.mxu0 0.0
      %1716 = vmatmul.mubr.f32.gmra.mrb[0].mxu0 %v1598
      %v1717 = vpop.f32.mrb[0].mxu0
      %v1718 = vadd.f32 0.0, %v1717
      %v1719 = vpop.f32.mrb[0].mxu0
      %1720 = vmatprep.mubr.f32.mxu0 0.0
      %1721 = vmatmul.mubr.f32.gmra.mrb[0].mxu0 %v1601
      %v1722 = vpop.f32.mrb[0].mxu0
      %v1723 = vadd.f32 0.0, %v1722
      %v1724 = vpop.f32.mrb[0].mxu0
      %1725 = vmatprep.mubr.f32.mxu0 0.0
      %1726 = vmatmul.mubr.f32.gmra.mrb[0].mxu0 %v1604
      %v1727 = vpop.f32.mrb[0].mxu0
      %v1728 = vadd.f32 0.0, %v1727
      %v1729 = vpop.f32.mrb[0].mxu0
      %1730 = vmatprep.mubr.f32.mxu0 0.0
      %1731 = vmatmul.mubr.f32.gmra.mrb[0].mxu0 %v1607
      %v1732 = vpop.f32.mrb[0].mxu0
      %v1733 = vadd.f32 0.0, %v1732
      %v1734 = vpop.f32.mrb[0].mxu0
      %1735 = vmatprep.mubr.f32.mxu0 0.0
      %1736 = vmatmul.mubr.f32.gmra.mrb[0].mxu0 %v1610
      %v1737 = vpop.f32.mrb[0].mxu0
      %v1738 = vadd.f32 0.0, %v1737
      %v1739 = vpop.f32.mrb[0].mxu0
      %1740 = vmatprep.mubr.f32.mxu0 0.0
      %1741 = vmatmul.mubr.f32.gmra.mrb[0].mxu0 %v1613
      %v1742 = vpop.f32.mrb[0].mxu0
      %v1743 = vadd.f32 0.0, %v1742
      %v1744 = vpop.f32.mrb[0].mxu0
      %1745 = vmatprep.mubr.f32.mxu0 0.0
      %1746 = vmatmul.mubr.f32.gmra.mrb[0].mxu0 %v1616
      %v1747 = vpop.f32.mrb[0].mxu0
      %v1748 = vadd.f32 0.0, %v1747
      %v1749 = vpop.f32.mrb[0].mxu0
      %1750 = vdwg.mxu0
      %v1752 = vsel %vm545, %v529, 0
      %v1755 = vsel %vm545, %v530, 0
      %v1758 = vsel %vm545, %v531, 0
      %v1761 = vsel %vm545, %v532, 0
      %v1764 = vsel %vm545, %v533, 0
      %v1767 = vsel %vm545, %v534, 0
      %v1770 = vsel %vm545, %v535, 0
      %v1773 = vsel %vm545, %v536, 0
      %v1776 = vsel %vm545, %v537, 0
      %v1779 = vsel %vm545, %v538, 0
      %v1782 = vsel %vm545, %v539, 0
      %v1785 = vsel %vm545, %v540, 0
      %v1788 = vsel %vm545, %v541, 0
      %v1791 = vsel %vm585, %v280, 0
      %1793 = vmatprep.subr.mxu0 0.0
      %1794 = vmatpush1.msra.mxu0 %v1791
      %1795 = vmatprep.subr.mxu0 0.0
      %1796 = vmatpush1.msra.mxu0 0.0
      %1797 = vmatprep.subr.mxu0 0.0
      %1798 = vmatpush1.msra.mxu0 0.0
      %1799 = vmatprep.subr.mxu0 0.0
      %1800 = vmatpush1.msra.mxu0 0.0
      %1801 = vmatprep.subr.mxu0 0.0
      %1802 = vmatpush1.msra.mxu0 0.0
      %1803 = vmatprep.subr.mxu0 0.0
      %1804 = vmatpush1.msra.mxu0 0.0
      %1805 = vmatprep.subr.mxu0 0.0
      %1806 = vmatpush1.msra.mxu0 0.0
      %1807 = vmatprep.subr.mxu0 0.0
      %1808 = vmatpush1.msra.mxu0 0.0
      %1809 = vmatprep.subr.mxu0 0.0
      %1810 = vmatpush1.msra.mxu0 0.0
      %1811 = vmatprep.subr.mxu0 0.0
      %1812 = vmatpush1.msra.mxu0 0.0
      %1813 = vmatprep.subr.mxu0 0.0
      %1814 = vmatpush1.msra.mxu0 0.0
      %1815 = vmatprep.subr.mxu0 0.0
      %1816 = vmatpush1.msra.mxu0 0.0
      %1817 = vmatprep.subr.mxu0 0.0
      %1818 = vmatpush1.msra.mxu0 0.0
      %1819 = vmatprep.subr.mxu0 0.0
      %1820 = vmatpush1.msra.mxu0 0.0
      %1821 = vmatprep.subr.mxu0 0.0
      %1822 = vmatpush1.msra.mxu0 0.0
      %1823 = vmatprep.subr.mxu0 0.0
      %1824 = vmatpush1.msra.mxu0 0.0
      %1825 = vmatprep.subr.mxu0 0.0
      %1826 = vmatpush1.msra.mxu0 0.0
      %1827 = vmatprep.subr.mxu0 0.0
      %1828 = vmatpush1.msra.mxu0 0.0
      %1829 = vmatprep.subr.mxu0 0.0
      %1830 = vmatpush1.msra.mxu0 0.0
      %1831 = vmatprep.subr.mxu0 0.0
      %1832 = vmatpush1.msra.mxu0 0.0
      %1833 = vmatprep.subr.mxu0 0.0
      %1834 = vmatpush1.msra.mxu0 0.0
      %1835 = vmatprep.subr.mxu0 0.0
      %1836 = vmatpush1.msra.mxu0 0.0
      %1837 = vmatprep.subr.mxu0 0.0
      %1838 = vmatpush1.msra.mxu0 0.0
      %1839 = vmatprep.subr.mxu0 0.0
      %1840 = vmatpush1.msra.mxu0 0.0
      %1841 = vmatprep.subr.mxu0 0.0
      %1842 = vmatpush1.msra.mxu0 0.0
      %1843 = vmatprep.subr.mxu0 0.0
      %1844 = vmatpush1.msra.mxu0 0.0
      %1845 = vmatprep.subr.mxu0 0.0
      %1846 = vmatpush1.msra.mxu0 0.0
      %1847 = vmatprep.subr.mxu0 0.0
      %1848 = vmatpush1.msra.mxu0 0.0
      %1849 = vmatprep.subr.mxu0 0.0
      %1850 = vmatpush1.msra.mxu0 0.0
      %1851 = vmatprep.subr.mxu0 0.0
      %1852 = vmatpush1.msra.mxu0 0.0
      %1853 = vmatprep.subr.mxu0 0.0
      %1854 = vmatpush1.msra.mxu0 0.0
      %1855 = vmatprep.subr.mxu0 0.0
      %1856 = vmatpush1.msra.mxu0 0.0
      %1857 = vmatprep.mubr.f32.mxu0 0.0
      %1858 = vmatmul.mubr.f32.gmra.mrb[0].mxu0 %v1752
      %v1859 = vpop.f32.mrb[0].mxu0
      %v1860 = vadd.f32 0.0, %v1859
      %v1861 = vpop.f32.mrb[0].mxu0
      %1862 = vmatprep.mubr.f32.mxu0 0.0
      %1863 = vmatmul.mubr.f32.gmra.mrb[0].mxu0 %v1755
      %v1864 = vpop.f32.mrb[0].mxu0
      %v1865 = vadd.f32 0.0, %v1864
      %v1866 = vpop.f32.mrb[0].mxu0
      %1867 = vmatprep.mubr.f32.mxu0 0.0
      %1868 = vmatmul.mubr.f32.gmra.mrb[0].mxu0 %v1758
      %v1869 = vpop.f32.mrb[0].mxu0
      %v1870 = vadd.f32 0.0, %v1869
      %v1871 = vpop.f32.mrb[0].mxu0
      %1872 = vmatprep.mubr.f32.mxu0 0.0
      %1873 = vmatmul.mubr.f32.gmra.mrb[0].mxu0 %v1761
      %v1874 = vpop.f32.mrb[0].mxu0
      %v1875 = vadd.f32 0.0, %v1874
      %v1876 = vpop.f32.mrb[0].mxu0
      %1877 = vmatprep.mubr.f32.mxu0 0.0
      %1878 = vmatmul.mubr.f32.gmra.mrb[0].mxu0 %v1764
      %v1879 = vpop.f32.mrb[0].mxu0
      %v1880 = vadd.f32 0.0, %v1879
      %v1881 = vpop.f32.mrb[0].mxu0
      %1882 = vmatprep.mubr.f32.mxu0 0.0
      %1883 = vmatmul.mubr.f32.gmra.mrb[0].mxu0 %v1767
      %v1884 = vpop.f32.mrb[0].mxu0
      %v1885 = vadd.f32 0.0, %v1884
      %v1886 = vpop.f32.mrb[0].mxu0
      %1887 = vmatprep.mubr.f32.mxu0 0.0
      %1888 = vmatmul.mubr.f32.gmra.mrb[0].mxu0 %v1770
      %v1889 = vpop.f32.mrb[0].mxu0
      %v1890 = vadd.f32 0.0, %v1889
      %v1891 = vpop.f32.mrb[0].mxu0
      %1892 = vmatprep.mubr.f32.mxu0 0.0
      %1893 = vmatmul.mubr.f32.gmra.mrb[0].mxu0 %v1773
      %v1894 = vpop.f32.mrb[0].mxu0
      %v1895 = vadd.f32 0.0, %v1894
      %v1896 = vpop.f32.mrb[0].mxu0
      %1897 = vmatprep.mubr.f32.mxu0 0.0
      %1898 = vmatmul.mubr.f32.gmra.mrb[0].mxu0 %v1776
      %v1899 = vpop.f32.mrb[0].mxu0
      %v1900 = vadd.f32 0.0, %v1899
      %v1901 = vpop.f32.mrb[0].mxu0
      %1902 = vmatprep.mubr.f32.mxu0 0.0
      %1903 = vmatmul.mubr.f32.gmra.mrb[0].mxu0 %v1779
      %v1904 = vpop.f32.mrb[0].mxu0
      %v1905 = vadd.f32 0.0, %v1904
      %v1906 = vpop.f32.mrb[0].mxu0
      %1907 = vmatprep.mubr.f32.mxu0 0.0
      %1908 = vmatmul.mubr.f32.gmra.mrb[0].mxu0 %v1782
      %v1909 = vpop.f32.mrb[0].mxu0
      %v1910 = vadd.f32 0.0, %v1909
      %v1911 = vpop.f32.mrb[0].mxu0
      %1912 = vmatprep.mubr.f32.mxu0 0.0
      %1913 = vmatmul.mubr.f32.gmra.mrb[0].mxu0 %v1785
      %v1914 = vpop.f32.mrb[0].mxu0
      %v1915 = vadd.f32 0.0, %v1914
      %v1916 = vpop.f32.mrb[0].mxu0
      %1917 = vmatprep.mubr.f32.mxu0 0.0
      %1918 = vmatmul.mubr.f32.gmra.mrb[0].mxu0 %v1788
      %v1919 = vpop.f32.mrb[0].mxu0
      %v1920 = vadd.f32 0.0, %v1919
      %v1921 = vpop.f32.mrb[0].mxu0
      %1922 = vdwg.mxu0
      %v1923 = vmax.f32 %v656, %v661
      %v1924 = vmax.f32 %v1923, %v666
      %v1925 = vmax.f32 %v1924, %v671
      %v1926 = vmax.f32 %v1925, %v676
      %v1927 = vmax.f32 %v1926, %v681
      %v1928 = vmax.f32 %v1927, %v686
      %v1929 = vmax.f32 %v1928, %v691
      %v1930 = vmax.f32 %v1929, %v696
      %v1931 = vmax.f32 %v1930, %v701
      %v1932 = vmax.f32 %v1931, %v706
      %v1933 = vmax.f32 %v1932, %v711
      %vm1934 = vcmask 1042432
      %v1935 = vsel %vm1934, %v716, -inf
      %v1936 = vmax.f32 %v1933, %v1935
      %v1937 = vrot.slane %v1936, 4
      %v1938 = vmax.f32 %v1936, %v1937
      %v1939 = vrot.slane %v1938, 2
      %v1940 = vmax.f32 %v1938, %v1939
      %v1941 = vrot.slane %v1940, 1
      %v1942 = vmax.f32 %v1940, %v1941
      %v1943 = vmax.f32 %v828, %v833
      %v1944 = vmax.f32 %v1943, %v838
      %v1945 = vmax.f32 %v1944, %v843
      %v1946 = vmax.f32 %v1945, %v848
      %v1947 = vmax.f32 %v1946, %v853
      %v1948 = vmax.f32 %v1947, %v858
      %v1949 = vmax.f32 %v1948, %v863
      %v1950 = vmax.f32 %v1949, %v868
      %v1951 = vmax.f32 %v1950, %v873
      %v1952 = vmax.f32 %v1951, %v878
      %v1953 = vmax.f32 %v1952, %v883
      %v1954 = vsel %vm1934, %v888, -inf
      %v1955 = vmax.f32 %v1953, %v1954
      %v1956 = vrot.slane %v1955, 4
      %v1957 = vmax.f32 %v1955, %v1956
      %v1958 = vrot.slane %v1957, 2
      %v1959 = vmax.f32 %v1957, %v1958
      %v1960 = vrot.slane %v1959, 1
      %v1961 = vmax.f32 %v1959, %v1960
      %v1962 = vmax.f32 %v1000, %v1005
      %v1963 = vmax.f32 %v1962, %v1010
      %v1964 = vmax.f32 %v1963, %v1015
      %v1965 = vmax.f32 %v1964, %v1020
      %v1966 = vmax.f32 %v1965, %v1025
      %v1967 = vmax.f32 %v1966, %v1030
      %v1968 = vmax.f32 %v1967, %v1035
      %v1969 = vmax.f32 %v1968, %v1040
      %v1970 = vmax.f32 %v1969, %v1045
      %v1971 = vmax.f32 %v1970, %v1050
      %v1972 = vmax.f32 %v1971, %v1055
      %v1973 = vsel %vm1934, %v1060, -inf
      %v1974 = vmax.f32 %v1972, %v1973
      %v1975 = vrot.slane %v1974, 4
      %v1976 = vmax.f32 %v1974, %v1975
      %v1977 = vrot.slane %v1976, 2
      %v1978 = vmax.f32 %v1976, %v1977
      %v1979 = vrot.slane %v1978, 1
      %v1980 = vmax.f32 %v1978, %v1979
      %v1981 = vmax.f32 %v1172, %v1177
      %v1982 = vmax.f32 %v1981, %v1182
      %v1983 = vmax.f32 %v1982, %v1187
      %v1984 = vmax.f32 %v1983, %v1192
      %v1985 = vmax.f32 %v1984, %v1197
      %v1986 = vmax.f32 %v1985, %v1202
      %v1987 = vmax.f32 %v1986, %v1207
      %v1988 = vmax.f32 %v1987, %v1212
      %v1989 = vmax.f32 %v1988, %v1217
      %v1990 = vmax.f32 %v1989, %v1222
      %v1991 = vmax.f32 %v1990, %v1227
      %v1992 = vsel %vm1934, %v1232, -inf
      %v1993 = vmax.f32 %v1991, %v1992
      %v1994 = vrot.slane %v1993, 4
      %v1995 = vmax.f32 %v1993, %v1994
      %v1996 = vrot.slane %v1995, 2
      %v1997 = vmax.f32 %v1995, %v1996
      %v1998 = vrot.slane %v1997, 1
      %v1999 = vmax.f32 %v1997, %v1998
      %v2000 = vmax.f32 %v1344, %v1349
      %v2001 = vmax.f32 %v2000, %v1354
      %v2002 = vmax.f32 %v2001, %v1359
      %v2003 = vmax.f32 %v2002, %v1364
      %v2004 = vmax.f32 %v2003, %v1369
      %v2005 = vmax.f32 %v2004, %v1374
      %v2006 = vmax.f32 %v2005, %v1379
      %v2007 = vmax.f32 %v2006, %v1384
      %v2008 = vmax.f32 %v2007, %v1389
      %v2009 = vmax.f32 %v2008, %v1394
      %v2010 = vmax.f32 %v2009, %v1399
      %v2011 = vsel %vm1934, %v1404, -inf
      %v2012 = vmax.f32 %v2010, %v2011
      %v2013 = vrot.slane %v2012, 4
      %v2014 = vmax.f32 %v2012, %v2013
      %v2015 = vrot.slane %v2014, 2
      %v2016 = vmax.f32 %v2014, %v2015
      %v2017 = vrot.slane %v2016, 1
      %v2018 = vmax.f32 %v2016, %v2017
      %v2019 = vmax.f32 %v1516, %v1521
      %v2020 = vmax.f32 %v2019, %v1526
      %v2021 = vmax.f32 %v2020, %v1531
      %v2022 = vmax.f32 %v2021, %v1536
      %v2023 = vmax.f32 %v2022, %v1541
      %v2024 = vmax.f32 %v2023, %v1546
      %v2025 = vmax.f32 %v2024, %v1551
      %v2026 = vmax.f32 %v2025, %v1556
      %v2027 = vmax.f32 %v2026, %v1561
      %v2028 = vmax.f32 %v2027, %v1566
      %v2029 = vmax.f32 %v2028, %v1571
      %v2030 = vsel %vm1934, %v1576, -inf
      %v2031 = vmax.f32 %v2029, %v2030
      %v2032 = vrot.slane %v2031, 4
      %v2033 = vmax.f32 %v2031, %v2032
      %v2034 = vrot.slane %v2033, 2
      %v2035 = vmax.f32 %v2033, %v2034
      %v2036 = vrot.slane %v2035, 1
      %v2037 = vmax.f32 %v2035, %v2036
      %v2038 = vmax.f32 %v1688, %v1693
      %v2039 = vmax.f32 %v2038, %v1698
      %v2040 = vmax.f32 %v2039, %v1703
      %v2041 = vmax.f32 %v2040, %v1708
      %v2042 = vmax.f32 %v2041, %v1713
      %v2043 = vmax.f32 %v2042, %v1718
      %v2044 = vmax.f32 %v2043, %v1723
      %v2045 = vmax.f32 %v2044, %v1728
      %v2046 = vmax.f32 %v2045, %v1733
      %v2047 = vmax.f32 %v2046, %v1738
      %v2048 = vmax.f32 %v2047, %v1743
      %v2049 = vsel %vm1934, %v1748, -inf
      %v2050 = vmax.f32 %v2048, %v2049
      %v2051 = vrot.slane %v2050, 4
      %v2052 = vmax.f32 %v2050, %v2051
      %v2053 = vrot.slane %v2052, 2
      %v2054 = vmax.f32 %v2052, %v2053
      %v2055 = vrot.slane %v2054, 1
      %v2056 = vmax.f32 %v2054, %v2055
      %v2057 = vmax.f32 %v1860, %v1865
      %v2058 = vmax.f32 %v2057, %v1870
      %v2059 = vmax.f32 %v2058, %v1875
      %v2060 = vmax.f32 %v2059, %v1880
      %v2061 = vmax.f32 %v2060, %v1885
      %v2062 = vmax.f32 %v2061, %v1890
      %v2063 = vmax.f32 %v2062, %v1895
      %v2064 = vmax.f32 %v2063, %v1900
      %v2065 = vmax.f32 %v2064, %v1905
      %v2066 = vmax.f32 %v2065, %v1910
      %v2067 = vmax.f32 %v2066, %v1915
      %v2068 = vsel %vm1934, %v1920, -inf
      %v2069 = vmax.f32 %v2067, %v2068
      %v2070 = vrot.slane %v2069, 4
      %v2071 = vmax.f32 %v2069, %v2070
      %v2072 = vrot.slane %v2071, 2
      %v2073 = vmax.f32 %v2071, %v2072
      %v2074 = vrot.slane %v2073, 1
      %v2075 = vmax.f32 %v2073, %v2074
      %v2076 = vsub.f32 %v656, %v1942
      %v2077 = vsub.f32 %v661, %v1942
      %v2078 = vsub.f32 %v666, %v1942
      %v2079 = vsub.f32 %v671, %v1942
      %v2080 = vsub.f32 %v676, %v1942
      %v2081 = vsub.f32 %v681, %v1942
      %v2082 = vsub.f32 %v686, %v1942
      %v2083 = vsub.f32 %v691, %v1942
      %v2084 = vsub.f32 %v696, %v1942
      %v2085 = vsub.f32 %v701, %v1942
      %v2086 = vsub.f32 %v706, %v1942
      %v2087 = vsub.f32 %v711, %v1942
      %v2088 = vsub.f32 %v716, %v1942
      %v2089 = vsub.f32 %v828, %v1961
      %v2090 = vsub.f32 %v833, %v1961
      %v2091 = vsub.f32 %v838, %v1961
      %v2092 = vsub.f32 %v843, %v1961
      %v2093 = vsub.f32 %v848, %v1961
      %v2094 = vsub.f32 %v853, %v1961
      %v2095 = vsub.f32 %v858, %v1961
      %v2096 = vsub.f32 %v863, %v1961
      %v2097 = vsub.f32 %v868, %v1961
      %v2098 = vsub.f32 %v873, %v1961
      %v2099 = vsub.f32 %v878, %v1961
      %v2100 = vsub.f32 %v883, %v1961
      %v2101 = vsub.f32 %v888, %v1961
      %v2102 = vsub.f32 %v1000, %v1980
      %v2103 = vsub.f32 %v1005, %v1980
      %v2104 = vsub.f32 %v1010, %v1980
      %v2105 = vsub.f32 %v1015, %v1980
      %v2106 = vsub.f32 %v1020, %v1980
      %v2107 = vsub.f32 %v1025, %v1980
      %v2108 = vsub.f32 %v1030, %v1980
      %v2109 = vsub.f32 %v1035, %v1980
      %v2110 = vsub.f32 %v1040, %v1980
      %v2111 = vsub.f32 %v1045, %v1980
      %v2112 = vsub.f32 %v1050, %v1980
      %v2113 = vsub.f32 %v1055, %v1980
      %v2114 = vsub.f32 %v1060, %v1980
      %v2115 = vsub.f32 %v1172, %v1999
      %v2116 = vsub.f32 %v1177, %v1999
      %v2117 = vsub.f32 %v1182, %v1999
      %v2118 = vsub.f32 %v1187, %v1999
      %v2119 = vsub.f32 %v1192, %v1999
      %v2120 = vsub.f32 %v1197, %v1999
      %v2121 = vsub.f32 %v1202, %v1999
      %v2122 = vsub.f32 %v1207, %v1999
      %v2123 = vsub.f32 %v1212, %v1999
      %v2124 = vsub.f32 %v1217, %v1999
      %v2125 = vsub.f32 %v1222, %v1999
      %v2126 = vsub.f32 %v1227, %v1999
      %v2127 = vsub.f32 %v1232, %v1999
      %v2128 = vsub.f32 %v1344, %v2018
      %v2129 = vsub.f32 %v1349, %v2018
      %v2130 = vsub.f32 %v1354, %v2018
      %v2131 = vsub.f32 %v1359, %v2018
      %v2132 = vsub.f32 %v1364, %v2018
      %v2133 = vsub.f32 %v1369, %v2018
      %v2134 = vsub.f32 %v1374, %v2018
      %v2135 = vsub.f32 %v1379, %v2018
      %v2136 = vsub.f32 %v1384, %v2018
      %v2137 = vsub.f32 %v1389, %v2018
      %v2138 = vsub.f32 %v1394, %v2018
      %v2139 = vsub.f32 %v1399, %v2018
      %v2140 = vsub.f32 %v1404, %v2018
      %v2141 = vsub.f32 %v1516, %v2037
      %v2142 = vsub.f32 %v1521, %v2037
      %v2143 = vsub.f32 %v1526, %v2037
      %v2144 = vsub.f32 %v1531, %v2037
      %v2145 = vsub.f32 %v1536, %v2037
      %v2146 = vsub.f32 %v1541, %v2037
      %v2147 = vsub.f32 %v1546, %v2037
      %v2148 = vsub.f32 %v1551, %v2037
      %v2149 = vsub.f32 %v1556, %v2037
      %v2150 = vsub.f32 %v1561, %v2037
      %v2151 = vsub.f32 %v1566, %v2037
      %v2152 = vsub.f32 %v1571, %v2037
      %v2153 = vsub.f32 %v1576, %v2037
      %v2154 = vsub.f32 %v1688, %v2056
      %v2155 = vsub.f32 %v1693, %v2056
      %v2156 = vsub.f32 %v1698, %v2056
      %v2157 = vsub.f32 %v1703, %v2056
      %v2158 = vsub.f32 %v1708, %v2056
      %v2159 = vsub.f32 %v1713, %v2056
      %v2160 = vsub.f32 %v1718, %v2056
      %v2161 = vsub.f32 %v1723, %v2056
      %v2162 = vsub.f32 %v1728, %v2056
      %v2163 = vsub.f32 %v1733, %v2056
      %v2164 = vsub.f32 %v1738, %v2056
      %v2165 = vsub.f32 %v1743, %v2056
      %v2166 = vsub.f32 %v1748, %v2056
      %v2167 = vsub.f32 %v1860, %v2075
      %v2168 = vsub.f32 %v1865, %v2075
      %v2169 = vsub.f32 %v1870, %v2075
      %v2170 = vsub.f32 %v1875, %v2075
      %v2171 = vsub.f32 %v1880, %v2075
      %v2172 = vsub.f32 %v1885, %v2075
      %v2173 = vsub.f32 %v1890, %v2075
      %v2174 = vsub.f32 %v1895, %v2075
      %v2175 = vsub.f32 %v1900, %v2075
      %v2176 = vsub.f32 %v1905, %v2075
      %v2177 = vsub.f32 %v1910, %v2075
      %v2178 = vsub.f32 %v1915, %v2075
      %v2179 = vsub.f32 %v1920, %v2075
      %v2180 = vmul.f32 %v2076, 1.442695
      %v2181 = vpow.pop %v2180
      %v2182 = vmul.f32 %v2077, 1.442695
      %v2183 = vpow.pop %v2182
      %v2184 = vmul.f32 %v2078, 1.442695
      %v2185 = vpow.pop %v2184
      %v2186 = vmul.f32 %v2079, 1.442695
      %v2187 = vpow.pop %v2186
      %v2188 = vmul.f32 %v2080, 1.442695
      %v2189 = vpow.pop %v2188
      %v2190 = vmul.f32 %v2081, 1.442695
      %v2191 = vpow.pop %v2190
      %v2192 = vmul.f32 %v2082, 1.442695
      %v2193 = vpow.pop %v2192
      %v2194 = vmul.f32 %v2083, 1.442695
      %v2195 = vpow.pop %v2194
      %v2196 = vmul.f32 %v2084, 1.442695
      %v2197 = vpow.pop %v2196
      %v2198 = vmul.f32 %v2085, 1.442695
      %v2199 = vpow.pop %v2198
      %v2200 = vmul.f32 %v2086, 1.442695
      %v2201 = vpow.pop %v2200
      %v2202 = vmul.f32 %v2087, 1.442695
      %v2203 = vpow.pop %v2202
      %v2204 = vmul.f32 %v2088, 1.442695
      %v2205 = vpow.pop %v2204
      %v2206 = vmul.f32 %v2089, 1.442695
      %v2207 = vpow.pop %v2206
      %v2208 = vmul.f32 %v2090, 1.442695
      %v2209 = vpow.pop %v2208
      %v2210 = vmul.f32 %v2091, 1.442695
      %v2211 = vpow.pop %v2210
      %v2212 = vmul.f32 %v2092, 1.442695
      %v2213 = vpow.pop %v2212
      %v2214 = vmul.f32 %v2093, 1.442695
      %v2215 = vpow.pop %v2214
      %v2216 = vmul.f32 %v2094, 1.442695
      %v2217 = vpow.pop %v2216
      %v2218 = vmul.f32 %v2095, 1.442695
      %v2219 = vpow.pop %v2218
      %v2220 = vmul.f32 %v2096, 1.442695
      %v2221 = vpow.pop %v2220
      %v2222 = vmul.f32 %v2097, 1.442695
      %v2223 = vpow.pop %v2222
      %v2224 = vmul.f32 %v2098, 1.442695
      %v2225 = vpow.pop %v2224
      %v2226 = vmul.f32 %v2099, 1.442695
      %v2227 = vpow.pop %v2226
      %v2228 = vmul.f32 %v2100, 1.442695
      %v2229 = vpow.pop %v2228
      %v2230 = vmul.f32 %v2101, 1.442695
      %v2231 = vpow.pop %v2230
      %v2232 = vmul.f32 %v2102, 1.442695
      %v2233 = vpow.pop %v2232
      %v2234 = vmul.f32 %v2103, 1.442695
      %v2235 = vpow.pop %v2234
      %v2236 = vmul.f32 %v2104, 1.442695
      %v2237 = vpow.pop %v2236
      %v2238 = vmul.f32 %v2105, 1.442695
      %v2239 = vpow.pop %v2238
      %v2240 = vmul.f32 %v2106, 1.442695
      %v2241 = vpow.pop %v2240
      %v2242 = vmul.f32 %v2107, 1.442695
      %v2243 = vpow.pop %v2242
      %v2244 = vmul.f32 %v2108, 1.442695
      %v2245 = vpow.pop %v2244
      %v2246 = vmul.f32 %v2109, 1.442695
      %v2247 = vpow.pop %v2246
      %v2248 = vmul.f32 %v2110, 1.442695
      %v2249 = vpow.pop %v2248
      %v2250 = vmul.f32 %v2111, 1.442695
      %v2251 = vpow.pop %v2250
      %v2252 = vmul.f32 %v2112, 1.442695
      %v2253 = vpow.pop %v2252
      %v2254 = vmul.f32 %v2113, 1.442695
      %v2255 = vpow.pop %v2254
      %v2256 = vmul.f32 %v2114, 1.442695
      %v2257 = vpow.pop %v2256
      %v2258 = vmul.f32 %v2115, 1.442695
      %v2259 = vpow.pop %v2258
      %v2260 = vmul.f32 %v2116, 1.442695
      %v2261 = vpow.pop %v2260
      %v2262 = vmul.f32 %v2117, 1.442695
      %v2263 = vpow.pop %v2262
      %v2264 = vmul.f32 %v2118, 1.442695
      %v2265 = vpow.pop %v2264
      %v2266 = vmul.f32 %v2119, 1.442695
      %v2267 = vpow.pop %v2266
      %v2268 = vmul.f32 %v2120, 1.442695
      %v2269 = vpow.pop %v2268
      %v2270 = vmul.f32 %v2121, 1.442695
      %v2271 = vpow.pop %v2270
      %v2272 = vmul.f32 %v2122, 1.442695
      %v2273 = vpow.pop %v2272
      %v2274 = vmul.f32 %v2123, 1.442695
      %v2275 = vpow.pop %v2274
      %v2276 = vmul.f32 %v2124, 1.442695
      %v2277 = vpow.pop %v2276
      %v2278 = vmul.f32 %v2125, 1.442695
      %v2279 = vpow.pop %v2278
      %v2280 = vmul.f32 %v2126, 1.442695
      %v2281 = vpow.pop %v2280
      %v2282 = vmul.f32 %v2127, 1.442695
      %v2283 = vpow.pop %v2282
      %v2284 = vmul.f32 %v2128, 1.442695
      %v2285 = vpow.pop %v2284
      %v2286 = vmul.f32 %v2129, 1.442695
      %v2287 = vpow.pop %v2286
      %v2288 = vmul.f32 %v2130, 1.442695
      %v2289 = vpow.pop %v2288
      %v2290 = vmul.f32 %v2131, 1.442695
      %v2291 = vpow.pop %v2290
      %v2292 = vmul.f32 %v2132, 1.442695
      %v2293 = vpow.pop %v2292
      %v2294 = vmul.f32 %v2133, 1.442695
      %v2295 = vpow.pop %v2294
      %v2296 = vmul.f32 %v2134, 1.442695
      %v2297 = vpow.pop %v2296
      %v2298 = vmul.f32 %v2135, 1.442695
      %v2299 = vpow.pop %v2298
      %v2300 = vmul.f32 %v2136, 1.442695
      %v2301 = vpow.pop %v2300
      %v2302 = vmul.f32 %v2137, 1.442695
      %v2303 = vpow.pop %v2302
      %v2304 = vmul.f32 %v2138, 1.442695
      %v2305 = vpow.pop %v2304
      %v2306 = vmul.f32 %v2139, 1.442695
      %v2307 = vpow.pop %v2306
      %v2308 = vmul.f32 %v2140, 1.442695
      %v2309 = vpow.pop %v2308
      %v2310 = vmul.f32 %v2141, 1.442695
      %v2311 = vpow.pop %v2310
      %v2312 = vmul.f32 %v2142, 1.442695
      %v2313 = vpow.pop %v2312
      %v2314 = vmul.f32 %v2143, 1.442695
      %v2315 = vpow.pop %v2314
      %v2316 = vmul.f32 %v2144, 1.442695
      %v2317 = vpow.pop %v2316
      %v2318 = vmul.f32 %v2145, 1.442695
      %v2319 = vpow.pop %v2318
      %v2320 = vmul.f32 %v2146, 1.442695
      %v2321 = vpow.pop %v2320
      %v2322 = vmul.f32 %v2147, 1.442695
      %v2323 = vpow.pop %v2322
      %v2324 = vmul.f32 %v2148, 1.442695
      %v2325 = vpow.pop %v2324
      %v2326 = vmul.f32 %v2149, 1.442695
      %v2327 = vpow.pop %v2326
      %v2328 = vmul.f32 %v2150, 1.442695
      %v2329 = vpow.pop %v2328
      %v2330 = vmul.f32 %v2151, 1.442695
      %v2331 = vpow.pop %v2330
      %v2332 = vmul.f32 %v2152, 1.442695
      %v2333 = vpow.pop %v2332
      %v2334 = vmul.f32 %v2153, 1.442695
      %v2335 = vpow.pop %v2334
      %v2336 = vmul.f32 %v2154, 1.442695
      %v2337 = vpow.pop %v2336
      %v2338 = vmul.f32 %v2155, 1.442695
      %v2339 = vpow.pop %v2338
      %v2340 = vmul.f32 %v2156, 1.442695
      %v2341 = vpow.pop %v2340
      %v2342 = vmul.f32 %v2157, 1.442695
      %v2343 = vpow.pop %v2342
      %v2344 = vmul.f32 %v2158, 1.442695
      %v2345 = vpow.pop %v2344
      %v2346 = vmul.f32 %v2159, 1.442695
      %v2347 = vpow.pop %v2346
      %v2348 = vmul.f32 %v2160, 1.442695
      %v2349 = vpow.pop %v2348
      %v2350 = vmul.f32 %v2161, 1.442695
      %v2351 = vpow.pop %v2350
      %v2352 = vmul.f32 %v2162, 1.442695
      %v2353 = vpow.pop %v2352
      %v2354 = vmul.f32 %v2163, 1.442695
      %v2355 = vpow.pop %v2354
      %v2356 = vmul.f32 %v2164, 1.442695
      %v2357 = vpow.pop %v2356
      %v2358 = vmul.f32 %v2165, 1.442695
      %v2359 = vpow.pop %v2358
      %v2360 = vmul.f32 %v2166, 1.442695
      %v2361 = vpow.pop %v2360
      %v2362 = vmul.f32 %v2167, 1.442695
      %v2363 = vpow.pop %v2362
      %v2364 = vmul.f32 %v2168, 1.442695
      %v2365 = vpow.pop %v2364
      %v2366 = vmul.f32 %v2169, 1.442695
      %v2367 = vpow.pop %v2366
      %v2368 = vmul.f32 %v2170, 1.442695
      %v2369 = vpow.pop %v2368
      %v2370 = vmul.f32 %v2171, 1.442695
      %v2371 = vpow.pop %v2370
      %v2372 = vmul.f32 %v2172, 1.442695
      %v2373 = vpow.pop %v2372
      %v2374 = vmul.f32 %v2173, 1.442695
      %v2375 = vpow.pop %v2374
      %v2376 = vmul.f32 %v2174, 1.442695
      %v2377 = vpow.pop %v2376
      %v2378 = vmul.f32 %v2175, 1.442695
      %v2379 = vpow.pop %v2378
      %v2380 = vmul.f32 %v2176, 1.442695
      %v2381 = vpow.pop %v2380
      %v2382 = vmul.f32 %v2177, 1.442695
      %v2383 = vpow.pop %v2382
      %v2384 = vmul.f32 %v2178, 1.442695
      %v2385 = vpow.pop %v2384
      %v2386 = vmul.f32 %v2179, 1.442695
      %v2387 = vpow.pop %v2386
      %v2388 = vadd.f32 %v2181, %v2183
      %v2389 = vadd.f32 %v2388, %v2185
      %v2390 = vadd.f32 %v2389, %v2187
      %v2391 = vadd.f32 %v2390, %v2189
      %v2392 = vadd.f32 %v2391, %v2191
      %v2393 = vadd.f32 %v2392, %v2193
      %v2394 = vadd.f32 %v2393, %v2195
      %v2395 = vadd.f32 %v2394, %v2197
      %v2396 = vadd.f32 %v2395, %v2199
      %v2397 = vadd.f32 %v2396, %v2201
      %v2398 = vadd.f32 %v2397, %v2203
      %v2399 = vsel %vm1934, %v2205, 0.0
      %v2400 = vadd.f32 %v2398, %v2399
      %v2401 = vrot.slane %v2400, 4
      %v2402 = vadd.f32 %v2400, %v2401
      %v2403 = vrot.slane %v2402, 2
      %v2404 = vadd.f32 %v2402, %v2403
      %v2405 = vrot.slane %v2404, 1
      %v2406 = vadd.f32 %v2404, %v2405
      %v2407 = vadd.f32 %v2207, %v2209
      %v2408 = vadd.f32 %v2407, %v2211
      %v2409 = vadd.f32 %v2408, %v2213
      %v2410 = vadd.f32 %v2409, %v2215
      %v2411 = vadd.f32 %v2410, %v2217
      %v2412 = vadd.f32 %v2411, %v2219
      %v2413 = vadd.f32 %v2412, %v2221
      %v2414 = vadd.f32 %v2413, %v2223
      %v2415 = vadd.f32 %v2414, %v2225
      %v2416 = vadd.f32 %v2415, %v2227
      %v2417 = vadd.f32 %v2416, %v2229
      %v2418 = vsel %vm1934, %v2231, 0.0
      %v2419 = vadd.f32 %v2417, %v2418
      %v2420 = vrot.slane %v2419, 4
      %v2421 = vadd.f32 %v2419, %v2420
      %v2422 = vrot.slane %v2421, 2
      %v2423 = vadd.f32 %v2421, %v2422
      %v2424 = vrot.slane %v2423, 1
      %v2425 = vadd.f32 %v2423, %v2424
      %v2426 = vadd.f32 %v2233, %v2235
      %v2427 = vadd.f32 %v2426, %v2237
      %v2428 = vadd.f32 %v2427, %v2239
      %v2429 = vadd.f32 %v2428, %v2241
      %v2430 = vadd.f32 %v2429, %v2243
      %v2431 = vadd.f32 %v2430, %v2245
      %v2432 = vadd.f32 %v2431, %v2247
      %v2433 = vadd.f32 %v2432, %v2249
      %v2434 = vadd.f32 %v2433, %v2251
      %v2435 = vadd.f32 %v2434, %v2253
      %v2436 = vadd.f32 %v2435, %v2255
      %v2437 = vsel %vm1934, %v2257, 0.0
      %v2438 = vadd.f32 %v2436, %v2437
      %v2439 = vrot.slane %v2438, 4
      %v2440 = vadd.f32 %v2438, %v2439
      %v2441 = vrot.slane %v2440, 2
      %v2442 = vadd.f32 %v2440, %v2441
      %v2443 = vrot.slane %v2442, 1
      %v2444 = vadd.f32 %v2442, %v2443
      %v2445 = vadd.f32 %v2259, %v2261
      %v2446 = vadd.f32 %v2445, %v2263
      %v2447 = vadd.f32 %v2446, %v2265
      %v2448 = vadd.f32 %v2447, %v2267
      %v2449 = vadd.f32 %v2448, %v2269
      %v2450 = vadd.f32 %v2449, %v2271
      %v2451 = vadd.f32 %v2450, %v2273
      %v2452 = vadd.f32 %v2451, %v2275
      %v2453 = vadd.f32 %v2452, %v2277
      %v2454 = vadd.f32 %v2453, %v2279
      %v2455 = vadd.f32 %v2454, %v2281
      %v2456 = vsel %vm1934, %v2283, 0.0
      %v2457 = vadd.f32 %v2455, %v2456
      %v2458 = vrot.slane %v2457, 4
      %v2459 = vadd.f32 %v2457, %v2458
      %v2460 = vrot.slane %v2459, 2
      %v2461 = vadd.f32 %v2459, %v2460
      %v2462 = vrot.slane %v2461, 1
      %v2463 = vadd.f32 %v2461, %v2462
      %v2464 = vadd.f32 %v2285, %v2287
      %v2465 = vadd.f32 %v2464, %v2289
      %v2466 = vadd.f32 %v2465, %v2291
      %v2467 = vadd.f32 %v2466, %v2293
      %v2468 = vadd.f32 %v2467, %v2295
      %v2469 = vadd.f32 %v2468, %v2297
      %v2470 = vadd.f32 %v2469, %v2299
      %v2471 = vadd.f32 %v2470, %v2301
      %v2472 = vadd.f32 %v2471, %v2303
      %v2473 = vadd.f32 %v2472, %v2305
      %v2474 = vadd.f32 %v2473, %v2307
      %v2475 = vsel %vm1934, %v2309, 0.0
      %v2476 = vadd.f32 %v2474, %v2475
      %v2477 = vrot.slane %v2476, 4
      %v2478 = vadd.f32 %v2476, %v2477
      %v2479 = vrot.slane %v2478, 2
      %v2480 = vadd.f32 %v2478, %v2479
      %v2481 = vrot.slane %v2480, 1
      %v2482 = vadd.f32 %v2480, %v2481
      %v2483 = vadd.f32 %v2311, %v2313
      %v2484 = vadd.f32 %v2483, %v2315
      %v2485 = vadd.f32 %v2484, %v2317
      %v2486 = vadd.f32 %v2485, %v2319
      %v2487 = vadd.f32 %v2486, %v2321
      %v2488 = vadd.f32 %v2487, %v2323
      %v2489 = vadd.f32 %v2488, %v2325
      %v2490 = vadd.f32 %v2489, %v2327
      %v2491 = vadd.f32 %v2490, %v2329
      %v2492 = vadd.f32 %v2491, %v2331
      %v2493 = vadd.f32 %v2492, %v2333
      %v2494 = vsel %vm1934, %v2335, 0.0
      %v2495 = vadd.f32 %v2493, %v2494
      %v2496 = vrot.slane %v2495, 4
      %v2497 = vadd.f32 %v2495, %v2496
      %v2498 = vrot.slane %v2497, 2
      %v2499 = vadd.f32 %v2497, %v2498
      %v2500 = vrot.slane %v2499, 1
      %v2501 = vadd.f32 %v2499, %v2500
      %v2502 = vadd.f32 %v2337, %v2339
      %v2503 = vadd.f32 %v2502, %v2341
      %v2504 = vadd.f32 %v2503, %v2343
      %v2505 = vadd.f32 %v2504, %v2345
      %v2506 = vadd.f32 %v2505, %v2347
      %v2507 = vadd.f32 %v2506, %v2349
      %v2508 = vadd.f32 %v2507, %v2351
      %v2509 = vadd.f32 %v2508, %v2353
      %v2510 = vadd.f32 %v2509, %v2355
      %v2511 = vadd.f32 %v2510, %v2357
      %v2512 = vadd.f32 %v2511, %v2359
      %v2513 = vsel %vm1934, %v2361, 0.0
      %v2514 = vadd.f32 %v2512, %v2513
      %v2515 = vrot.slane %v2514, 4
      %v2516 = vadd.f32 %v2514, %v2515
      %v2517 = vrot.slane %v2516, 2
      %v2518 = vadd.f32 %v2516, %v2517
      %v2519 = vrot.slane %v2518, 1
      %v2520 = vadd.f32 %v2518, %v2519
      %v2521 = vadd.f32 %v2363, %v2365
      %v2522 = vadd.f32 %v2521, %v2367
      %v2523 = vadd.f32 %v2522, %v2369
      %v2524 = vadd.f32 %v2523, %v2371
      %v2525 = vadd.f32 %v2524, %v2373
      %v2526 = vadd.f32 %v2525, %v2375
      %v2527 = vadd.f32 %v2526, %v2377
      %v2528 = vadd.f32 %v2527, %v2379
      %v2529 = vadd.f32 %v2528, %v2381
      %v2530 = vadd.f32 %v2529, %v2383
      %v2531 = vadd.f32 %v2530, %v2385
      %v2532 = vsel %vm1934, %v2387, 0.0
      %v2533 = vadd.f32 %v2531, %v2532
      %v2534 = vrot.slane %v2533, 4
      %v2535 = vadd.f32 %v2533, %v2534
      %v2536 = vrot.slane %v2535, 2
      %v2537 = vadd.f32 %v2535, %v2536
      %v2538 = vrot.slane %v2537, 1
      %v2539 = vadd.f32 %v2537, %v2538
      %v2540 = vrcp.pop %v2406
      %v2541 = vmul.f32 %v2181, %v2540
      %v2542 = vmul.f32 %v2183, %v2540
      %v2543 = vmul.f32 %v2185, %v2540
      %v2544 = vmul.f32 %v2187, %v2540
      %v2545 = vmul.f32 %v2189, %v2540
      %v2546 = vmul.f32 %v2191, %v2540
      %v2547 = vmul.f32 %v2193, %v2540
      %v2548 = vmul.f32 %v2195, %v2540
      %v2549 = vmul.f32 %v2197, %v2540
      %v2550 = vmul.f32 %v2199, %v2540
      %v2551 = vmul.f32 %v2201, %v2540
      %v2552 = vmul.f32 %v2203, %v2540
      %v2553 = vmul.f32 %v2205, %v2540
      %v2554 = vrcp.pop %v2425
      %v2555 = vmul.f32 %v2207, %v2554
      %v2556 = vmul.f32 %v2209, %v2554
      %v2557 = vmul.f32 %v2211, %v2554
      %v2558 = vmul.f32 %v2213, %v2554
      %v2559 = vmul.f32 %v2215, %v2554
      %v2560 = vmul.f32 %v2217, %v2554
      %v2561 = vmul.f32 %v2219, %v2554
      %v2562 = vmul.f32 %v2221, %v2554
      %v2563 = vmul.f32 %v2223, %v2554
      %v2564 = vmul.f32 %v2225, %v2554
      %v2565 = vmul.f32 %v2227, %v2554
      %v2566 = vmul.f32 %v2229, %v2554
      %v2567 = vmul.f32 %v2231, %v2554
      %v2568 = vrcp.pop %v2444
      %v2569 = vmul.f32 %v2233, %v2568
      %v2570 = vmul.f32 %v2235, %v2568
      %v2571 = vmul.f32 %v2237, %v2568
      %v2572 = vmul.f32 %v2239, %v2568
      %v2573 = vmul.f32 %v2241, %v2568
      %v2574 = vmul.f32 %v2243, %v2568
      %v2575 = vmul.f32 %v2245, %v2568
      %v2576 = vmul.f32 %v2247, %v2568
      %v2577 = vmul.f32 %v2249, %v2568
      %v2578 = vmul.f32 %v2251, %v2568
      %v2579 = vmul.f32 %v2253, %v2568
      %v2580 = vmul.f32 %v2255, %v2568
      %v2581 = vmul.f32 %v2257, %v2568
      %v2582 = vrcp.pop %v2463
      %v2583 = vmul.f32 %v2259, %v2582
      %v2584 = vmul.f32 %v2261, %v2582
      %v2585 = vmul.f32 %v2263, %v2582
      %v2586 = vmul.f32 %v2265, %v2582
      %v2587 = vmul.f32 %v2267, %v2582
      %v2588 = vmul.f32 %v2269, %v2582
      %v2589 = vmul.f32 %v2271, %v2582
      %v2590 = vmul.f32 %v2273, %v2582
      %v2591 = vmul.f32 %v2275, %v2582
      %v2592 = vmul.f32 %v2277, %v2582
      %v2593 = vmul.f32 %v2279, %v2582
      %v2594 = vmul.f32 %v2281, %v2582
      %v2595 = vmul.f32 %v2283, %v2582
      %v2596 = vrcp.pop %v2482
      %v2597 = vmul.f32 %v2285, %v2596
      %v2598 = vmul.f32 %v2287, %v2596
      %v2599 = vmul.f32 %v2289, %v2596
      %v2600 = vmul.f32 %v2291, %v2596
      %v2601 = vmul.f32 %v2293, %v2596
      %v2602 = vmul.f32 %v2295, %v2596
      %v2603 = vmul.f32 %v2297, %v2596
      %v2604 = vmul.f32 %v2299, %v2596
      %v2605 = vmul.f32 %v2301, %v2596
      %v2606 = vmul.f32 %v2303, %v2596
      %v2607 = vmul.f32 %v2305, %v2596
      %v2608 = vmul.f32 %v2307, %v2596
      %v2609 = vmul.f32 %v2309, %v2596
      %v2610 = vrcp.pop %v2501
      %v2611 = vmul.f32 %v2311, %v2610
      %v2612 = vmul.f32 %v2313, %v2610
      %v2613 = vmul.f32 %v2315, %v2610
      %v2614 = vmul.f32 %v2317, %v2610
      %v2615 = vmul.f32 %v2319, %v2610
      %v2616 = vmul.f32 %v2321, %v2610
      %v2617 = vmul.f32 %v2323, %v2610
      %v2618 = vmul.f32 %v2325, %v2610
      %v2619 = vmul.f32 %v2327, %v2610
      %v2620 = vmul.f32 %v2329, %v2610
      %v2621 = vmul.f32 %v2331, %v2610
      %v2622 = vmul.f32 %v2333, %v2610
      %v2623 = vmul.f32 %v2335, %v2610
      %v2624 = vrcp.pop %v2520
      %v2625 = vmul.f32 %v2337, %v2624
      %v2626 = vmul.f32 %v2339, %v2624
      %v2627 = vmul.f32 %v2341, %v2624
      %v2628 = vmul.f32 %v2343, %v2624
      %v2629 = vmul.f32 %v2345, %v2624
      %v2630 = vmul.f32 %v2347, %v2624
      %v2631 = vmul.f32 %v2349, %v2624
      %v2632 = vmul.f32 %v2351, %v2624
      %v2633 = vmul.f32 %v2353, %v2624
      %v2634 = vmul.f32 %v2355, %v2624
      %v2635 = vmul.f32 %v2357, %v2624
      %v2636 = vmul.f32 %v2359, %v2624
      %v2637 = vmul.f32 %v2361, %v2624
      %v2638 = vrcp.pop %v2539
      %v2639 = vmul.f32 %v2363, %v2638
      %v2640 = vmul.f32 %v2365, %v2638
      %v2641 = vmul.f32 %v2367, %v2638
      %v2642 = vmul.f32 %v2369, %v2638
      %v2643 = vmul.f32 %v2371, %v2638
      %v2644 = vmul.f32 %v2373, %v2638
      %v2645 = vmul.f32 %v2375, %v2638
      %v2646 = vmul.f32 %v2377, %v2638
      %v2647 = vmul.f32 %v2379, %v2638
      %v2648 = vmul.f32 %v2381, %v2638
      %v2649 = vmul.f32 %v2383, %v2638
      %v2650 = vmul.f32 %v2385, %v2638
      %v2651 = vmul.f32 %v2387, %v2638
      %vm2652 = vcmask 809984
      %v2654 = vsel %vm2652, %v281, 0
      %v2657 = vsel %vm1934, %v2553, 0
      %2659 = vmatprep.subr.mxu0 0.0
      %2660 = vmatpush1.msra.mxu0 %v2541
      %2661 = vmatprep.subr.mxu0 0.0
      %2662 = vmatpush1.msra.mxu0 %v2542
      %2663 = vmatprep.subr.mxu0 0.0
      %2664 = vmatpush1.msra.mxu0 %v2543
      %2665 = vmatprep.subr.mxu0 0.0
      %2666 = vmatpush1.msra.mxu0 %v2544
      %2667 = vmatprep.subr.mxu0 0.0
      %2668 = vmatpush1.msra.mxu0 %v2545
      %2669 = vmatprep.subr.mxu0 0.0
      %2670 = vmatpush1.msra.mxu0 %v2546
      %2671 = vmatprep.subr.mxu0 0.0
      %2672 = vmatpush1.msra.mxu0 %v2547
      %2673 = vmatprep.subr.mxu0 0.0
      %2674 = vmatpush1.msra.mxu0 %v2548
      %2675 = vmatprep.subr.mxu0 0.0
      %2676 = vmatpush1.msra.mxu0 %v2549
      %2677 = vmatprep.subr.mxu0 0.0
      %2678 = vmatpush1.msra.mxu0 %v2550
      %2679 = vmatprep.subr.mxu0 0.0
      %2680 = vmatpush1.msra.mxu0 %v2551
      %2681 = vmatprep.subr.mxu0 0.0
      %2682 = vmatpush1.msra.mxu0 %v2552
      %2683 = vmatprep.subr.mxu0 0.0
      %2684 = vmatpush1.msra.mxu0 %v2657
      %2685 = vmatprep.subr.mxu0 0.0
      %2686 = vmatpush1.msra.mxu0 0.0
      %2687 = vmatprep.subr.mxu0 0.0
      %2688 = vmatpush1.msra.mxu0 0.0
      %2689 = vmatprep.subr.mxu0 0.0
      %2690 = vmatpush1.msra.mxu0 0.0
      %2691 = vmatprep.subr.mxu0 0.0
      %2692 = vmatpush1.msra.mxu0 0.0
      %2693 = vmatprep.subr.mxu0 0.0
      %2694 = vmatpush1.msra.mxu0 0.0
      %2695 = vmatprep.subr.mxu0 0.0
      %2696 = vmatpush1.msra.mxu0 0.0
      %2697 = vmatprep.subr.mxu0 0.0
      %2698 = vmatpush1.msra.mxu0 0.0
      %2699 = vmatprep.subr.mxu0 0.0
      %2700 = vmatpush1.msra.mxu0 0.0
      %2701 = vmatprep.subr.mxu0 0.0
      %2702 = vmatpush1.msra.mxu0 0.0
      %2703 = vmatprep.subr.mxu0 0.0
      %2704 = vmatpush1.msra.mxu0 0.0
      %2705 = vmatprep.subr.mxu0 0.0
      %2706 = vmatpush1.msra.mxu0 0.0
      %2707 = vmatprep.subr.mxu0 0.0
      %2708 = vmatpush1.msra.mxu0 0.0
      %2709 = vmatprep.subr.mxu0 0.0
      %2710 = vmatpush1.msra.mxu0 0.0
      %2711 = vmatprep.subr.mxu0 0.0
      %2712 = vmatpush1.msra.mxu0 0.0
      %2713 = vmatprep.subr.mxu0 0.0
      %2714 = vmatpush1.msra.mxu0 0.0
      %2715 = vmatprep.subr.mxu0 0.0
      %2716 = vmatpush1.msra.mxu0 0.0
      %2717 = vmatprep.subr.mxu0 0.0
      %2718 = vmatpush1.msra.mxu0 0.0
      %2719 = vmatprep.subr.mxu0 0.0
      %2720 = vmatpush1.msra.mxu0 0.0
      %2721 = vmatprep.subr.mxu0 0.0
      %2722 = vmatpush1.msra.mxu0 0.0
      %2723 = vmatprep.mubr.f32.mxu0 0.0
      %2724 = vmatmul.mubr.f32.gmra.mrb[0].mxu0 %v2654
      %v2725 = vpop.f32.mrb[0].mxu0
      %v2726 = vadd.f32 0.0, %v2725
      %v2727 = vpop.f32.mrb[0].mxu0
      %2728 = vdwg.mxu0
      %v2730 = vsel %vm2652, %v282, 0
      %v2733 = vsel %vm1934, %v2567, 0
      %2735 = vmatprep.subr.mxu0 0.0
      %2736 = vmatpush1.msra.mxu0 %v2555
      %2737 = vmatprep.subr.mxu0 0.0
      %2738 = vmatpush1.msra.mxu0 %v2556
      %2739 = vmatprep.subr.mxu0 0.0
      %2740 = vmatpush1.msra.mxu0 %v2557
      %2741 = vmatprep.subr.mxu0 0.0
      %2742 = vmatpush1.msra.mxu0 %v2558
      %2743 = vmatprep.subr.mxu0 0.0
      %2744 = vmatpush1.msra.mxu0 %v2559
      %2745 = vmatprep.subr.mxu0 0.0
      %2746 = vmatpush1.msra.mxu0 %v2560
      %2747 = vmatprep.subr.mxu0 0.0
      %2748 = vmatpush1.msra.mxu0 %v2561
      %2749 = vmatprep.subr.mxu0 0.0
      %2750 = vmatpush1.msra.mxu0 %v2562
      %2751 = vmatprep.subr.mxu0 0.0
      %2752 = vmatpush1.msra.mxu0 %v2563
      %2753 = vmatprep.subr.mxu0 0.0
      %2754 = vmatpush1.msra.mxu0 %v2564
      %2755 = vmatprep.subr.mxu0 0.0
      %2756 = vmatpush1.msra.mxu0 %v2565
      %2757 = vmatprep.subr.mxu0 0.0
      %2758 = vmatpush1.msra.mxu0 %v2566
      %2759 = vmatprep.subr.mxu0 0.0
      %2760 = vmatpush1.msra.mxu0 %v2733
      %2761 = vmatprep.subr.mxu0 0.0
      %2762 = vmatpush1.msra.mxu0 0.0
      %2763 = vmatprep.subr.mxu0 0.0
      %2764 = vmatpush1.msra.mxu0 0.0
      %2765 = vmatprep.subr.mxu0 0.0
      %2766 = vmatpush1.msra.mxu0 0.0
      %2767 = vmatprep.subr.mxu0 0.0
      %2768 = vmatpush1.msra.mxu0 0.0
      %2769 = vmatprep.subr.mxu0 0.0
      %2770 = vmatpush1.msra.mxu0 0.0
      %2771 = vmatprep.subr.mxu0 0.0
      %2772 = vmatpush1.msra.mxu0 0.0
      %2773 = vmatprep.subr.mxu0 0.0
      %2774 = vmatpush1.msra.mxu0 0.0
      %2775 = vmatprep.subr.mxu0 0.0
      %2776 = vmatpush1.msra.mxu0 0.0
      %2777 = vmatprep.subr.mxu0 0.0
      %2778 = vmatpush1.msra.mxu0 0.0
      %2779 = vmatprep.subr.mxu0 0.0
      %2780 = vmatpush1.msra.mxu0 0.0
      %2781 = vmatprep.subr.mxu0 0.0
      %2782 = vmatpush1.msra.mxu0 0.0
      %2783 = vmatprep.subr.mxu0 0.0
      %2784 = vmatpush1.msra.mxu0 0.0
      %2785 = vmatprep.subr.mxu0 0.0
      %2786 = vmatpush1.msra.mxu0 0.0
      %2787 = vmatprep.subr.mxu0 0.0
      %2788 = vmatpush1.msra.mxu0 0.0
      %2789 = vmatprep.subr.mxu0 0.0
      %2790 = vmatpush1.msra.mxu0 0.0
      %2791 = vmatprep.subr.mxu0 0.0
      %2792 = vmatpush1.msra.mxu0 0.0
      %2793 = vmatprep.subr.mxu0 0.0
      %2794 = vmatpush1.msra.mxu0 0.0
      %2795 = vmatprep.subr.mxu0 0.0
      %2796 = vmatpush1.msra.mxu0 0.0
      %2797 = vmatprep.subr.mxu0 0.0
      %2798 = vmatpush1.msra.mxu0 0.0
      %2799 = vmatprep.mubr.f32.mxu0 0.0
      %2800 = vmatmul.mubr.f32.gmra.mrb[0].mxu0 %v2730
      %v2801 = vpop.f32.mrb[0].mxu0
      %v2802 = vadd.f32 0.0, %v2801
      %v2803 = vpop.f32.mrb[0].mxu0
      %2804 = vdwg.mxu0
      %v2806 = vsel %vm2652, %v283, 0
      %v2809 = vsel %vm1934, %v2581, 0
      %2811 = vmatprep.subr.mxu0 0.0
      %2812 = vmatpush1.msra.mxu0 %v2569
      %2813 = vmatprep.subr.mxu0 0.0
      %2814 = vmatpush1.msra.mxu0 %v2570
      %2815 = vmatprep.subr.mxu0 0.0
      %2816 = vmatpush1.msra.mxu0 %v2571
      %2817 = vmatprep.subr.mxu0 0.0
      %2818 = vmatpush1.msra.mxu0 %v2572
      %2819 = vmatprep.subr.mxu0 0.0
      %2820 = vmatpush1.msra.mxu0 %v2573
      %2821 = vmatprep.subr.mxu0 0.0
      %2822 = vmatpush1.msra.mxu0 %v2574
      %2823 = vmatprep.subr.mxu0 0.0
      %2824 = vmatpush1.msra.mxu0 %v2575
      %2825 = vmatprep.subr.mxu0 0.0
      %2826 = vmatpush1.msra.mxu0 %v2576
      %2827 = vmatprep.subr.mxu0 0.0
      %2828 = vmatpush1.msra.mxu0 %v2577
      %2829 = vmatprep.subr.mxu0 0.0
      %2830 = vmatpush1.msra.mxu0 %v2578
      %2831 = vmatprep.subr.mxu0 0.0
      %2832 = vmatpush1.msra.mxu0 %v2579
      %2833 = vmatprep.subr.mxu0 0.0
      %2834 = vmatpush1.msra.mxu0 %v2580
      %2835 = vmatprep.subr.mxu0 0.0
      %2836 = vmatpush1.msra.mxu0 %v2809
      %2837 = vmatprep.subr.mxu0 0.0
      %2838 = vmatpush1.msra.mxu0 0.0
      %2839 = vmatprep.subr.mxu0 0.0
      %2840 = vmatpush1.msra.mxu0 0.0
      %2841 = vmatprep.subr.mxu0 0.0
      %2842 = vmatpush1.msra.mxu0 0.0
      %2843 = vmatprep.subr.mxu0 0.0
      %2844 = vmatpush1.msra.mxu0 0.0
      %2845 = vmatprep.subr.mxu0 0.0
      %2846 = vmatpush1.msra.mxu0 0.0
      %2847 = vmatprep.subr.mxu0 0.0
      %2848 = vmatpush1.msra.mxu0 0.0
      %2849 = vmatprep.subr.mxu0 0.0
      %2850 = vmatpush1.msra.mxu0 0.0
      %2851 = vmatprep.subr.mxu0 0.0
      %2852 = vmatpush1.msra.mxu0 0.0
      %2853 = vmatprep.subr.mxu0 0.0
      %2854 = vmatpush1.msra.mxu0 0.0
      %2855 = vmatprep.subr.mxu0 0.0
      %2856 = vmatpush1.msra.mxu0 0.0
      %2857 = vmatprep.subr.mxu0 0.0
      %2858 = vmatpush1.msra.mxu0 0.0
      %2859 = vmatprep.subr.mxu0 0.0
      %2860 = vmatpush1.msra.mxu0 0.0
      %2861 = vmatprep.subr.mxu0 0.0
      %2862 = vmatpush1.msra.mxu0 0.0
      %2863 = vmatprep.subr.mxu0 0.0
      %2864 = vmatpush1.msra.mxu0 0.0
      %2865 = vmatprep.subr.mxu0 0.0
      %2866 = vmatpush1.msra.mxu0 0.0
      %2867 = vmatprep.subr.mxu0 0.0
      %2868 = vmatpush1.msra.mxu0 0.0
      %2869 = vmatprep.subr.mxu0 0.0
      %2870 = vmatpush1.msra.mxu0 0.0
      %2871 = vmatprep.subr.mxu0 0.0
      %2872 = vmatpush1.msra.mxu0 0.0
      %2873 = vmatprep.subr.mxu0 0.0
      %2874 = vmatpush1.msra.mxu0 0.0
      %2875 = vmatprep.mubr.f32.mxu0 0.0
      %2876 = vmatmul.mubr.f32.gmra.mrb[0].mxu0 %v2806
      %v2877 = vpop.f32.mrb[0].mxu0
      %v2878 = vadd.f32 0.0, %v2877
      %v2879 = vpop.f32.mrb[0].mxu0
      %2880 = vdwg.mxu0
      %v2882 = vsel %vm2652, %v284, 0
      %v2885 = vsel %vm1934, %v2595, 0
      %2887 = vmatprep.subr.mxu0 0.0
      %2888 = vmatpush1.msra.mxu0 %v2583
      %2889 = vmatprep.subr.mxu0 0.0
      %2890 = vmatpush1.msra.mxu0 %v2584
      %2891 = vmatprep.subr.mxu0 0.0
      %2892 = vmatpush1.msra.mxu0 %v2585
      %2893 = vmatprep.subr.mxu0 0.0
      %2894 = vmatpush1.msra.mxu0 %v2586
      %2895 = vmatprep.subr.mxu0 0.0
      %2896 = vmatpush1.msra.mxu0 %v2587
      %2897 = vmatprep.subr.mxu0 0.0
      %2898 = vmatpush1.msra.mxu0 %v2588
      %2899 = vmatprep.subr.mxu0 0.0
      %2900 = vmatpush1.msra.mxu0 %v2589
      %2901 = vmatprep.subr.mxu0 0.0
      %2902 = vmatpush1.msra.mxu0 %v2590
      %2903 = vmatprep.subr.mxu0 0.0
      %2904 = vmatpush1.msra.mxu0 %v2591
      %2905 = vmatprep.subr.mxu0 0.0
      %2906 = vmatpush1.msra.mxu0 %v2592
      %2907 = vmatprep.subr.mxu0 0.0
      %2908 = vmatpush1.msra.mxu0 %v2593
      %2909 = vmatprep.subr.mxu0 0.0
      %2910 = vmatpush1.msra.mxu0 %v2594
      %2911 = vmatprep.subr.mxu0 0.0
      %2912 = vmatpush1.msra.mxu0 %v2885
      %2913 = vmatprep.subr.mxu0 0.0
      %2914 = vmatpush1.msra.mxu0 0.0
      %2915 = vmatprep.subr.mxu0 0.0
      %2916 = vmatpush1.msra.mxu0 0.0
      %2917 = vmatprep.subr.mxu0 0.0
      %2918 = vmatpush1.msra.mxu0 0.0
      %2919 = vmatprep.subr.mxu0 0.0
      %2920 = vmatpush1.msra.mxu0 0.0
      %2921 = vmatprep.subr.mxu0 0.0
      %2922 = vmatpush1.msra.mxu0 0.0
      %2923 = vmatprep.subr.mxu0 0.0
      %2924 = vmatpush1.msra.mxu0 0.0
      %2925 = vmatprep.subr.mxu0 0.0
      %2926 = vmatpush1.msra.mxu0 0.0
      %2927 = vmatprep.subr.mxu0 0.0
      %2928 = vmatpush1.msra.mxu0 0.0
      %2929 = vmatprep.subr.mxu0 0.0
      %2930 = vmatpush1.msra.mxu0 0.0
      %2931 = vmatprep.subr.mxu0 0.0
      %2932 = vmatpush1.msra.mxu0 0.0
      %2933 = vmatprep.subr.mxu0 0.0
      %2934 = vmatpush1.msra.mxu0 0.0
      %2935 = vmatprep.subr.mxu0 0.0
      %2936 = vmatpush1.msra.mxu0 0.0
      %2937 = vmatprep.subr.mxu0 0.0
      %2938 = vmatpush1.msra.mxu0 0.0
      %2939 = vmatprep.subr.mxu0 0.0
      %2940 = vmatpush1.msra.mxu0 0.0
      %2941 = vmatprep.subr.mxu0 0.0
      %2942 = vmatpush1.msra.mxu0 0.0
      %2943 = vmatprep.subr.mxu0 0.0
      %2944 = vmatpush1.msra.mxu0 0.0
      %2945 = vmatprep.subr.mxu0 0.0
      %2946 = vmatpush1.msra.mxu0 0.0
      %2947 = vmatprep.subr.mxu0 0.0
      %2948 = vmatpush1.msra.mxu0 0.0
      %2949 = vmatprep.subr.mxu0 0.0
      %2950 = vmatpush1.msra.mxu0 0.0
      %2951 = vmatprep.mubr.f32.mxu0 0.0
      %2952 = vmatmul.mubr.f32.gmra.mrb[0].mxu0 %v2882
      %v2953 = vpop.f32.mrb[0].mxu0
      %v2954 = vadd.f32 0.0, %v2953
      %v2955 = vpop.f32.mrb[0].mxu0
      %2956 = vdwg.mxu0
      %v2958 = vsel %vm2652, %v285, 0
      %v2961 = vsel %vm1934, %v2609, 0
      %2963 = vmatprep.subr.mxu0 0.0
      %2964 = vmatpush1.msra.mxu0 %v2597
      %2965 = vmatprep.subr.mxu0 0.0
      %2966 = vmatpush1.msra.mxu0 %v2598
      %2967 = vmatprep.subr.mxu0 0.0
      %2968 = vmatpush1.msra.mxu0 %v2599
      %2969 = vmatprep.subr.mxu0 0.0
      %2970 = vmatpush1.msra.mxu0 %v2600
      %2971 = vmatprep.subr.mxu0 0.0
      %2972 = vmatpush1.msra.mxu0 %v2601
      %2973 = vmatprep.subr.mxu0 0.0
      %2974 = vmatpush1.msra.mxu0 %v2602
      %2975 = vmatprep.subr.mxu0 0.0
      %2976 = vmatpush1.msra.mxu0 %v2603
      %2977 = vmatprep.subr.mxu0 0.0
      %2978 = vmatpush1.msra.mxu0 %v2604
      %2979 = vmatprep.subr.mxu0 0.0
      %2980 = vmatpush1.msra.mxu0 %v2605
      %2981 = vmatprep.subr.mxu0 0.0
      %2982 = vmatpush1.msra.mxu0 %v2606
      %2983 = vmatprep.subr.mxu0 0.0
      %2984 = vmatpush1.msra.mxu0 %v2607
      %2985 = vmatprep.subr.mxu0 0.0
      %2986 = vmatpush1.msra.mxu0 %v2608
      %2987 = vmatprep.subr.mxu0 0.0
      %2988 = vmatpush1.msra.mxu0 %v2961
      %2989 = vmatprep.subr.mxu0 0.0
      %2990 = vmatpush1.msra.mxu0 0.0
      %2991 = vmatprep.subr.mxu0 0.0
      %2992 = vmatpush1.msra.mxu0 0.0
      %2993 = vmatprep.subr.mxu0 0.0
      %2994 = vmatpush1.msra.mxu0 0.0
      %2995 = vmatprep.subr.mxu0 0.0
      %2996 = vmatpush1.msra.mxu0 0.0
      %2997 = vmatprep.subr.mxu0 0.0
      %2998 = vmatpush1.msra.mxu0 0.0
      %2999 = vmatprep.subr.mxu0 0.0
      %3000 = vmatpush1.msra.mxu0 0.0
      %3001 = vmatprep.subr.mxu0 0.0
      %3002 = vmatpush1.msra.mxu0 0.0
      %3003 = vmatprep.subr.mxu0 0.0
      %3004 = vmatpush1.msra.mxu0 0.0
      %3005 = vmatprep.subr.mxu0 0.0
      %3006 = vmatpush1.msra.mxu0 0.0
      %3007 = vmatprep.subr.mxu0 0.0
      %3008 = vmatpush1.msra.mxu0 0.0
      %3009 = vmatprep.subr.mxu0 0.0
      %3010 = vmatpush1.msra.mxu0 0.0
      %3011 = vmatprep.subr.mxu0 0.0
      %3012 = vmatpush1.msra.mxu0 0.0
      %3013 = vmatprep.subr.mxu0 0.0
      %3014 = vmatpush1.msra.mxu0 0.0
      %3015 = vmatprep.subr.mxu0 0.0
      %3016 = vmatpush1.msra.mxu0 0.0
      %3017 = vmatprep.subr.mxu0 0.0
      %3018 = vmatpush1.msra.mxu0 0.0
      %3019 = vmatprep.subr.mxu0 0.0
      %3020 = vmatpush1.msra.mxu0 0.0
      %3021 = vmatprep.subr.mxu0 0.0
      %3022 = vmatpush1.msra.mxu0 0.0
      %3023 = vmatprep.subr.mxu0 0.0
      %3024 = vmatpush1.msra.mxu0 0.0
      %3025 = vmatprep.subr.mxu0 0.0
      %3026 = vmatpush1.msra.mxu0 0.0
      %3027 = vmatprep.mubr.f32.mxu0 0.0
      %3028 = vmatmul.mubr.f32.gmra.mrb[0].mxu0 %v2958
      %v3029 = vpop.f32.mrb[0].mxu0
      %v3030 = vadd.f32 0.0, %v3029
      %v3031 = vpop.f32.mrb[0].mxu0
      %3032 = vdwg.mxu0
      %v3034 = vsel %vm2652, %v286, 0
      %v3037 = vsel %vm1934, %v2623, 0
      %3039 = vmatprep.subr.mxu0 0.0
      %3040 = vmatpush1.msra.mxu0 %v2611
      %3041 = vmatprep.subr.mxu0 0.0
      %3042 = vmatpush1.msra.mxu0 %v2612
      %3043 = vmatprep.subr.mxu0 0.0
      %3044 = vmatpush1.msra.mxu0 %v2613
      %3045 = vmatprep.subr.mxu0 0.0
      %3046 = vmatpush1.msra.mxu0 %v2614
      %3047 = vmatprep.subr.mxu0 0.0
      %3048 = vmatpush1.msra.mxu0 %v2615
      %3049 = vmatprep.subr.mxu0 0.0
      %3050 = vmatpush1.msra.mxu0 %v2616
      %3051 = vmatprep.subr.mxu0 0.0
      %3052 = vmatpush1.msra.mxu0 %v2617
      %3053 = vmatprep.subr.mxu0 0.0
      %3054 = vmatpush1.msra.mxu0 %v2618
      %3055 = vmatprep.subr.mxu0 0.0
      %3056 = vmatpush1.msra.mxu0 %v2619
      %3057 = vmatprep.subr.mxu0 0.0
      %3058 = vmatpush1.msra.mxu0 %v2620
      %3059 = vmatprep.subr.mxu0 0.0
      %3060 = vmatpush1.msra.mxu0 %v2621
      %3061 = vmatprep.subr.mxu0 0.0
      %3062 = vmatpush1.msra.mxu0 %v2622
      %3063 = vmatprep.subr.mxu0 0.0
      %3064 = vmatpush1.msra.mxu0 %v3037
      %3065 = vmatprep.subr.mxu0 0.0
      %3066 = vmatpush1.msra.mxu0 0.0
      %3067 = vmatprep.subr.mxu0 0.0
      %3068 = vmatpush1.msra.mxu0 0.0
      %3069 = vmatprep.subr.mxu0 0.0
      %3070 = vmatpush1.msra.mxu0 0.0
      %3071 = vmatprep.subr.mxu0 0.0
      %3072 = vmatpush1.msra.mxu0 0.0
      %3073 = vmatprep.subr.mxu0 0.0
      %3074 = vmatpush1.msra.mxu0 0.0
      %3075 = vmatprep.subr.mxu0 0.0
      %3076 = vmatpush1.msra.mxu0 0.0
      %3077 = vmatprep.subr.mxu0 0.0
      %3078 = vmatpush1.msra.mxu0 0.0
      %3079 = vmatprep.subr.mxu0 0.0
      %3080 = vmatpush1.msra.mxu0 0.0
      %3081 = vmatprep.subr.mxu0 0.0
      %3082 = vmatpush1.msra.mxu0 0.0
      %3083 = vmatprep.subr.mxu0 0.0
      %3084 = vmatpush1.msra.mxu0 0.0
      %3085 = vmatprep.subr.mxu0 0.0
      %3086 = vmatpush1.msra.mxu0 0.0
      %3087 = vmatprep.subr.mxu0 0.0
      %3088 = vmatpush1.msra.mxu0 0.0
      %3089 = vmatprep.subr.mxu0 0.0
      %3090 = vmatpush1.msra.mxu0 0.0
      %3091 = vmatprep.subr.mxu0 0.0
      %3092 = vmatpush1.msra.mxu0 0.0
      %3093 = vmatprep.subr.mxu0 0.0
      %3094 = vmatpush1.msra.mxu0 0.0
      %3095 = vmatprep.subr.mxu0 0.0
      %3096 = vmatpush1.msra.mxu0 0.0
      %3097 = vmatprep.subr.mxu0 0.0
      %3098 = vmatpush1.msra.mxu0 0.0
      %3099 = vmatprep.subr.mxu0 0.0
      %3100 = vmatpush1.msra.mxu0 0.0
      %3101 = vmatprep.subr.mxu0 0.0
      %3102 = vmatpush1.msra.mxu0 0.0
      %3103 = vmatprep.mubr.f32.mxu0 0.0
      %3104 = vmatmul.mubr.f32.gmra.mrb[0].mxu0 %v3034
      %v3105 = vpop.f32.mrb[0].mxu0
      %v3106 = vadd.f32 0.0, %v3105
      %v3107 = vpop.f32.mrb[0].mxu0
      %3108 = vdwg.mxu0
      %v3110 = vsel %vm2652, %v287, 0
      %v3113 = vsel %vm1934, %v2637, 0
      %3115 = vmatprep.subr.mxu0 0.0
      %3116 = vmatpush1.msra.mxu0 %v2625
      %3117 = vmatprep.subr.mxu0 0.0
      %3118 = vmatpush1.msra.mxu0 %v2626
      %3119 = vmatprep.subr.mxu0 0.0
      %3120 = vmatpush1.msra.mxu0 %v2627
      %3121 = vmatprep.subr.mxu0 0.0
      %3122 = vmatpush1.msra.mxu0 %v2628
      %3123 = vmatprep.subr.mxu0 0.0
      %3124 = vmatpush1.msra.mxu0 %v2629
      %3125 = vmatprep.subr.mxu0 0.0
      %3126 = vmatpush1.msra.mxu0 %v2630
      %3127 = vmatprep.subr.mxu0 0.0
      %3128 = vmatpush1.msra.mxu0 %v2631
      %3129 = vmatprep.subr.mxu0 0.0
      %3130 = vmatpush1.msra.mxu0 %v2632
      %3131 = vmatprep.subr.mxu0 0.0
      %3132 = vmatpush1.msra.mxu0 %v2633
      %3133 = vmatprep.subr.mxu0 0.0
      %3134 = vmatpush1.msra.mxu0 %v2634
      %3135 = vmatprep.subr.mxu0 0.0
      %3136 = vmatpush1.msra.mxu0 %v2635
      %3137 = vmatprep.subr.mxu0 0.0
      %3138 = vmatpush1.msra.mxu0 %v2636
      %3139 = vmatprep.subr.mxu0 0.0
      %3140 = vmatpush1.msra.mxu0 %v3113
      %3141 = vmatprep.subr.mxu0 0.0
      %3142 = vmatpush1.msra.mxu0 0.0
      %3143 = vmatprep.subr.mxu0 0.0
      %3144 = vmatpush1.msra.mxu0 0.0
      %3145 = vmatprep.subr.mxu0 0.0
      %3146 = vmatpush1.msra.mxu0 0.0
      %3147 = vmatprep.subr.mxu0 0.0
      %3148 = vmatpush1.msra.mxu0 0.0
      %3149 = vmatprep.subr.mxu0 0.0
      %3150 = vmatpush1.msra.mxu0 0.0
      %3151 = vmatprep.subr.mxu0 0.0
      %3152 = vmatpush1.msra.mxu0 0.0
      %3153 = vmatprep.subr.mxu0 0.0
      %3154 = vmatpush1.msra.mxu0 0.0
      %3155 = vmatprep.subr.mxu0 0.0
      %3156 = vmatpush1.msra.mxu0 0.0
      %3157 = vmatprep.subr.mxu0 0.0
      %3158 = vmatpush1.msra.mxu0 0.0
      %3159 = vmatprep.subr.mxu0 0.0
      %3160 = vmatpush1.msra.mxu0 0.0
      %3161 = vmatprep.subr.mxu0 0.0
      %3162 = vmatpush1.msra.mxu0 0.0
      %3163 = vmatprep.subr.mxu0 0.0
      %3164 = vmatpush1.msra.mxu0 0.0
      %3165 = vmatprep.subr.mxu0 0.0
      %3166 = vmatpush1.msra.mxu0 0.0
      %3167 = vmatprep.subr.mxu0 0.0
      %3168 = vmatpush1.msra.mxu0 0.0
      %3169 = vmatprep.subr.mxu0 0.0
      %3170 = vmatpush1.msra.mxu0 0.0
      %3171 = vmatprep.subr.mxu0 0.0
      %3172 = vmatpush1.msra.mxu0 0.0
      %3173 = vmatprep.subr.mxu0 0.0
      %3174 = vmatpush1.msra.mxu0 0.0
      %3175 = vmatprep.subr.mxu0 0.0
      %3176 = vmatpush1.msra.mxu0 0.0
      %3177 = vmatprep.subr.mxu0 0.0
      %3178 = vmatpush1.msra.mxu0 0.0
      %3179 = vmatprep.mubr.f32.mxu0 0.0
      %3180 = vmatmul.mubr.f32.gmra.mrb[0].mxu0 %v3110
      %v3181 = vpop.f32.mrb[0].mxu0
      %v3182 = vadd.f32 0.0, %v3181
      %v3183 = vpop.f32.mrb[0].mxu0
      %3184 = vdwg.mxu0
      %v3186 = vsel %vm2652, %v288, 0
      %v3189 = vsel %vm1934, %v2651, 0
      %3191 = vmatprep.subr.mxu0 0.0
      %3192 = vmatpush1.msra.mxu0 %v2639
      %3193 = vmatprep.subr.mxu0 0.0
      %3194 = vmatpush1.msra.mxu0 %v2640
      %3195 = vmatprep.subr.mxu0 0.0
      %3196 = vmatpush1.msra.mxu0 %v2641
      %3197 = vmatprep.subr.mxu0 0.0
      %3198 = vmatpush1.msra.mxu0 %v2642
      %3199 = vmatprep.subr.mxu0 0.0
      %3200 = vmatpush1.msra.mxu0 %v2643
      %3201 = vmatprep.subr.mxu0 0.0
      %3202 = vmatpush1.msra.mxu0 %v2644
      %3203 = vmatprep.subr.mxu0 0.0
      %3204 = vmatpush1.msra.mxu0 %v2645
      %3205 = vmatprep.subr.mxu0 0.0
      %3206 = vmatpush1.msra.mxu0 %v2646
      %3207 = vmatprep.subr.mxu0 0.0
      %3208 = vmatpush1.msra.mxu0 %v2647
      %3209 = vmatprep.subr.mxu0 0.0
      %3210 = vmatpush1.msra.mxu0 %v2648
      %3211 = vmatprep.subr.mxu0 0.0
      %3212 = vmatpush1.msra.mxu0 %v2649
      %3213 = vmatprep.subr.mxu0 0.0
      %3214 = vmatpush1.msra.mxu0 %v2650
      %3215 = vmatprep.subr.mxu0 0.0
      %3216 = vmatpush1.msra.mxu0 %v3189
      %3217 = vmatprep.subr.mxu0 0.0
      %3218 = vmatpush1.msra.mxu0 0.0
      %3219 = vmatprep.subr.mxu0 0.0
      %3220 = vmatpush1.msra.mxu0 0.0
      %3221 = vmatprep.subr.mxu0 0.0
      %3222 = vmatpush1.msra.mxu0 0.0
      %3223 = vmatprep.subr.mxu0 0.0
      %3224 = vmatpush1.msra.mxu0 0.0
      %3225 = vmatprep.subr.mxu0 0.0
      %3226 = vmatpush1.msra.mxu0 0.0
      %3227 = vmatprep.subr.mxu0 0.0
      %3228 = vmatpush1.msra.mxu0 0.0
      %3229 = vmatprep.subr.mxu0 0.0
      %3230 = vmatpush1.msra.mxu0 0.0
      %3231 = vmatprep.subr.mxu0 0.0
      %3232 = vmatpush1.msra.mxu0 0.0
      %3233 = vmatprep.subr.mxu0 0.0
      %3234 = vmatpush1.msra.mxu0 0.0
      %3235 = vmatprep.subr.mxu0 0.0
      %3236 = vmatpush1.msra.mxu0 0.0
      %3237 = vmatprep.subr.mxu0 0.0
      %3238 = vmatpush1.msra.mxu0 0.0
      %3239 = vmatprep.subr.mxu0 0.0
      %3240 = vmatpush1.msra.mxu0 0.0
      %3241 = vmatprep.subr.mxu0 0.0
      %3242 = vmatpush1.msra.mxu0 0.0
      %3243 = vmatprep.subr.mxu0 0.0
      %3244 = vmatpush1.msra.mxu0 0.0
      %3245 = vmatprep.subr.mxu0 0.0
      %3246 = vmatpush1.msra.mxu0 0.0
      %3247 = vmatprep.subr.mxu0 0.0
      %3248 = vmatpush1.msra.mxu0 0.0
      %3249 = vmatprep.subr.mxu0 0.0
      %3250 = vmatpush1.msra.mxu0 0.0
      %3251 = vmatprep.subr.mxu0 0.0
      %3252 = vmatpush1.msra.mxu0 0.0
      %3253 = vmatprep.subr.mxu0 0.0
      %3254 = vmatpush1.msra.mxu0 0.0
      %3255 = vmatprep.mubr.f32.mxu0 0.0
      %3256 = vmatmul.mubr.f32.gmra.mrb[0].mxu0 %v3186
      %v3257 = vpop.f32.mrb[0].mxu0
      %v3258 = vadd.f32 0.0, %v3257
      %v3259 = vpop.f32.mrb[0].mxu0
      %3260 = vdwg.mxu0
      %3261 = vst [vmem:[%s247] sm:$0x3] %v2726
      %3262 = vst [vmem:[%s247 + $0x2] sm:$0x3] %v2802
      %3263 = vst [vmem:[%s247 + $0x4] sm:$0x3] %v2878
      %3264 = vst [vmem:[%s247 + $0x6] sm:$0x3] %v2954
      %3265 = vst [vmem:[%s247 + $0x8] sm:$0x3] %v3030
      %3266 = vst [vmem:[%s247 + $0xa] sm:$0x3] %v3106
      %3267 = vst [vmem:[%s247 + $0xc] sm:$0x3] %v3182
      %3268 = vst [vmem:[%s247 + $0xe] sm:$0x3] %v3258
      %s3269 = smul.u32 8, %s18
      %p3270 = scmp.lt.s32.totalorder %s3269, 63
      %s3271 = scalar_select %p3270, %s3269, 63
      %p3272 = scmp.lt.s32.totalorder %s19, 0
      %s3273 = scalar_select %p3272, %s19, 0
      %s3274 = sadd.s32 %s3273, %s3271
      %s3275 = smul.addr %s3274, 2
      %s3276 = scalar_lea.vmem %s3, %s3275
      // Predicated region
      $region33: #{forward.3} parent=31 // pred_check
        %p3277 = pneg %p126
      $region34: #{forward.3} parent=31 // pred_check_branch
        %3279 = sbr.rel (%p3277) target = $region36
      $region35: #{forward.3} parent=31 // pred_region
        %s3280 = smul.u32 8, %s18
      $region36: #{forward.3} parent=31 // pred_fallthru
        _
    $region32: #{forward.3} parent=5 // pred_fallthru
      _
    %p3281 = scmp.le.s32.totalorder 2, %s9
    // Predicated region
    $region37: #{forward.3} parent=5 // pred_check
      %p3282 = pneg %p3281
    $region38: #{forward.3} parent=5 // pred_check_branch
      %3284 = sbr.rel (%p3282) target = $region40
    $region39: #{forward.3} parent=5 // pred_region
      %s3285 = ssub.s32 %s9, 2
      // Predicated region
      $region41: #{forward.3} parent=39 // pred_check
        %p3286 = pneg %p132
      $region42: #{forward.3} parent=39 // pred_check_branch
        %3288 = sbr.rel (%p3286) target = $region44
      $region43: #{forward.3} parent=39 // pred_region
        %s3289 = smul.u32 8, %s20
        %p3290 = scmp.lt.s32.totalorder %s3289, 63
        %s3291 = scalar_select %p3290, %s3289, 63
        %p3292 = scmp.lt.s32.totalorder %s21, 0
        %s3293 = scalar_select %p3292, %s21, 0
        %s3294 = sadd.s32 %s3293, %s3291
        %s3295 = smul.addr %s3294, 2
        %s3296 = scalar_lea.vmem %s3, %s3295
      $region44: #{forward.3} parent=39 // pred_fallthru
        _
    $region40: #{forward.3} parent=5 // pred_fallthru
      _
  $region6: #{forward.3} parent=0 // loop_footer
    %s13 = sadd.s32 1, %s9
  $region7: #{forward.3} parent=0 // loop_footer_branch
    %8 = sbr.rel target = $region3
  $region8: #{forward.3} parent=0 // loop_exit
    _

</llo_original>
